<compile_context>
chip_gen: v6e
topology: v6e:2x2x1
jax: 0.10.0
libtpu: 0.0.40
codegen_flags: <defaults>
</compile_context>

<pallas_src>
import functools

import jax
import jax.numpy as jnp
from jax.experimental import pallas as pl
from jax.experimental.pallas import tpu as pltpu

MAX_DIM = 1024
TM = TN = TK = 128            # matmul tile sizes (fit VMEM on v5e/v6e/v7x)
STAT_ROWS = 8                 # sublane-aligned rows for (sum, sumsq) block
BN_EPS = 1e-3                 # matches nn.BatchNorm2d(..., eps=0.001)
VMEM_LIMIT = 32 * 1024 * 1024


def _round_up(x, m):
    return ((x + m - 1) // m) * m


def _pad_to(x, axis, target):
    pad = target - x.shape[axis]
    if pad == 0:
        return x
    cfg = [(0, 0)] * x.ndim
    cfg[axis] = (0, pad)
    return jnp.pad(x, cfg)


# ----------------------------------------------------------------------------
# Kernel 1: tiled matmul  Y = P @ W  (+ bias + optional tanh epilogue)
#           with one-sweep per-channel partial (sum, sum of squares) output.
# ----------------------------------------------------------------------------
def _mm_stats_kernel(p_ref, w_ref, b_ref, y_ref, s_ref, acc_ref, *, act):
    k = pl.program_id(3)

    @pl.when(k == 0)
    def _init():
        acc_ref[...] = jnp.zeros_like(acc_ref)

    acc_ref[...] += jnp.dot(p_ref[...], w_ref[...],
                            preferred_element_type=jnp.float32)

    @pl.when(k == pl.num_programs(3) - 1)
    def _finalize():
        y = acc_ref[...]
        # one-sweep partial BN statistics (pre-bias / pre-activation)
        s_sum = jnp.sum(y, axis=0, keepdims=True)
        s_sq = jnp.sum(y * y, axis=0, keepdims=True)
        s_ref[...] = jnp.concatenate(
            [s_sum, s_sq,
             jnp.zeros((STAT_ROWS - 2, y.shape[1]), jnp.float32)], axis=0)
        y = y + b_ref[...]
        if act == "tanh":
            y = jnp.tanh(y)
        y_ref[...] = y.astype(y_ref.dtype)


def batched_matmul_stats(p, w, bias, *, act="none"):
    """p: (G, M, K), w: (G, K, N); bias: (N,) added in the epilogue.
    Returns y (G, Mp, Np) f32, per-channel (sum, sumsq) over all real rows
    (zero-padded rows contribute exactly 0), and (Mp, Np)."""
    G, M, K = p.shape
    N = w.shape[2]
    Mp, Kp, Np = _round_up(M, TM), _round_up(K, TK), _round_up(N, TN)
    p = _pad_to(_pad_to(p.astype(jnp.bfloat16), 1, Mp), 2, Kp)
    w = _pad_to(_pad_to(w.astype(jnp.bfloat16), 1, Kp), 2, Np)
    b = _pad_to(bias.astype(jnp.float32).reshape(1, N), 1, Np)
    gm, gn, gk = Mp // TM, Np // TN, Kp // TK

    y, stats = pl.pallas_call(
        functools.partial(_mm_stats_kernel, act=act),
        out_shape=(
            jax.ShapeDtypeStruct((G, Mp, Np), jnp.float32),
            jax.ShapeDtypeStruct((G, gm * STAT_ROWS, Np), jnp.float32),
        ),
        grid_spec=pltpu.PrefetchScalarGridSpec(
            num_scalar_prefetch=0,
            grid=(G, gm, gn, gk),
            in_specs=[
                pl.BlockSpec((None, TM, TK), lambda g, m, n, k: (g, m, k)),
                pl.BlockSpec((None, TK, TN), lambda g, m, n, k: (g, k, n)),
                pl.BlockSpec((1, TN), lambda g, m, n, k: (0, n)),
            ],
            out_specs=[
                pl.BlockSpec((None, TM, TN), lambda g, m, n, k: (g, m, n)),
                pl.BlockSpec((None, STAT_ROWS, TN),
                             lambda g, m, n, k: (g, m, n)),
            ],
            scratch_shapes=[pltpu.VMEM((TM, TN), jnp.float32)],
        ),
        compiler_params=pltpu.CompilerParams(
            dimension_semantics=("parallel", "parallel", "parallel",
                                 "arbitrary"),
            vmem_limit_bytes=VMEM_LIMIT,
        ),
    )(p, w, b)

    stats = stats.reshape(G, gm, STAT_ROWS, Np)
    s_sum = jnp.sum(stats[:, :, 0, :], axis=(0, 1))
    s_sq = jnp.sum(stats[:, :, 1, :], axis=(0, 1))
    return y, s_sum, s_sq, (Mp, Np)


# ----------------------------------------------------------------------------
# Kernel 2: elementwise y * scale + shift, then activation (BN apply pass)
# ----------------------------------------------------------------------------
def _scale_shift_act_kernel(y_ref, sc_ref, sh_ref, o_ref, *, act):
    y = y_ref[...] * sc_ref[...] + sh_ref[...]
    if act == "lrelu":
        y = jnp.where(y > 0, y, 0.2 * y)
    elif act == "relu":
        y = jnp.maximum(y, 0.0)
    elif act == "tanh":
        y = jnp.tanh(y)
    o_ref[...] = y.astype(o_ref.dtype)


def scale_shift_act(y2d, scale, shift, *, act):
    Mp, Np = y2d.shape                      # already multiples of TM, TN
    gm, gn = Mp // TM, Np // TN
    return pl.pallas_call(
        functools.partial(_scale_shift_act_kernel, act=act),
        out_shape=jax.ShapeDtypeStruct((Mp, Np), jnp.float32),
        grid_spec=pltpu.PrefetchScalarGridSpec(
            num_scalar_prefetch=0,
            grid=(gm, gn),
            in_specs=[
                pl.BlockSpec((TM, TN), lambda m, n: (m, n)),
                pl.BlockSpec((1, TN), lambda m, n: (0, n)),
                pl.BlockSpec((1, TN), lambda m, n: (0, n)),
            ],
            out_specs=pl.BlockSpec((TM, TN), lambda m, n: (m, n)),
        ),
        compiler_params=pltpu.CompilerParams(
            dimension_semantics=("parallel", "parallel"),
            vmem_limit_bytes=VMEM_LIMIT,
        ),
    )(y2d, scale.reshape(1, Np), shift.reshape(1, Np))


def _bn_scale_shift(s_sum, s_sq, count, gamma, beta, n_pad):
    """Train-mode BatchNorm: fold (mean, var, gamma, beta) into scale/shift."""
    mean = s_sum / count
    var = s_sq / count - mean * mean
    inv = jax.lax.rsqrt(var + BN_EPS)
    gamma_p = _pad_to(gamma.astype(jnp.float32), 0, n_pad)
    beta_p = _pad_to(beta.astype(jnp.float32), 0, n_pad)
    scale = gamma_p * inv
    shift = beta_p - mean * scale
    return scale, shift


# ----------------------------------------------------------------------------
# Conv2d(4x4, stride 2, pad 1, bias=False) + BN + LeakyReLU(0.2)   [encoder]
# ----------------------------------------------------------------------------
def _im2col(x_pad, ksize, stride):
    B, Hp, Wp, C = x_pad.shape
    OH = (Hp - ksize) // stride + 1
    OW = (Wp - ksize) // stride + 1
    cols = []
    for kh in range(ksize):
        for kw in range(ksize):
            cols.append(x_pad[:, kh:kh + stride * OH:stride,
                              kw:kw + stride * OW:stride, :])
    p = jnp.stack(cols, axis=3)                       # (B, OH, OW, k*k, C)
    return p.reshape(B * OH * OW, ksize * ksize * C), (B, OH, OW)


def conv2d_bn_lrelu(x, w_oihw, gamma, beta):
    """x: (B, H, W, Cin) NHWC; w: (Cout, Cin, 4, 4) (PyTorch layout)."""
    Cin = x.shape[-1]
    Cout = w_oihw.shape[0]
    x_pad = jnp.pad(x.astype(jnp.bfloat16), ((0, 0), (1, 1), (1, 1), (0, 0)))
    p, (B, OH, OW) = _im2col(x_pad, ksize=4, stride=2)
    M = B * OH * OW
    w_mat = jnp.transpose(w_oihw, (2, 3, 1, 0)).reshape(16 * Cin, Cout)
    y, s_sum, s_sq, (Mp, Np) = batched_matmul_stats(
        p[None], w_mat[None], jnp.zeros((Cout,), jnp.float32), act="none")
    scale, shift = _bn_scale_shift(s_sum, s_sq, jnp.float32(M),
                                   gamma, beta, Np)
    out = scale_shift_act(y.reshape(Mp, Np), scale, shift, act="lrelu")
    return out[:M, :Cout].reshape(B, OH, OW, Cout)


# ----------------------------------------------------------------------------
# ConvTranspose2d(4x4, stride 2, pad 1) via sub-pixel phase decomposition
# ----------------------------------------------------------------------------
def _subpixel_patches(x, w_iohw):
    """x: (B,H,W,Cin); w: (Cin,Cout,4,4) (PyTorch ConvTranspose layout).
    Phase p = 2*py + px produces output pixels o[2i+py, 2j+px]:
       o[2i+py, 2j+px] = sum_{dh,dw in {0,1}} x_pad[i+py+dh, j+px+dw]
                                              * w[3-py-2dh, 3-px-2dw]
    Returns P: (4, B*H*W, 4*Cin), Wm: (4, 4*Cin, Cout)."""
    B, H, W, Cin = x.shape
    xp = jnp.pad(x, ((0, 0), (1, 1), (1, 1), (0, 0)))
    p_list, w_list = [], []
    for py in range(2):
        for px in range(2):
            cols, rows = [], []
            for dh in range(2):
                for dw in range(2):
                    cols.append(xp[:, py + dh:py + dh + H,
                                   px + dw:px + dw + W, :])
                    kh = 3 - py - 2 * dh
                    kw = 3 - px - 2 * dw
                    rows.append(w_iohw[:, :, kh, kw])        # (Cin, Cout)
            p_list.append(jnp.stack(cols, axis=3).reshape(B * H * W, 4 * Cin))
            w_list.append(jnp.concatenate(rows, axis=0))     # (4*Cin, Cout)
    return jnp.stack(p_list, axis=0), jnp.stack(w_list, axis=0)


def conv_transpose_block(x, w_iohw, *, gamma=None, beta=None, bias=None,
                         act, use_bn):
    B, H, W, Cin = x.shape
    Cout = w_iohw.shape[1]
    P, Wm = _subpixel_patches(x.astype(jnp.bfloat16),
                              w_iohw.astype(jnp.bfloat16))
    M = B * H * W
    if use_bn:
        y, s_sum, s_sq, (Mp, Np) = batched_matmul_stats(
            P, Wm, jnp.zeros((Cout,), jnp.float32), act="none")
        scale, shift = _bn_scale_shift(s_sum, s_sq, jnp.float32(4 * M),
                                       gamma, beta, Np)
        y = scale_shift_act(y.reshape(4 * Mp, Np), scale, shift, act=act)
        y = y.reshape(4, Mp, Np)
    else:
        # final layer: bias + tanh fused in the matmul epilogue (no BN pass)
        y, _, _, (Mp, Np) = batched_matmul_stats(P, Wm, bias, act="tanh")
    # interleave the 4 parity phases into the (2H, 2W) output
    y = y[:, :M, :Cout].reshape(2, 2, B, H, W, Cout)
    y = jnp.transpose(y, (2, 3, 0, 4, 1, 5)).reshape(B, 2 * H, 2 * W, Cout)
    return y


# ----------------------------------------------------------------------------
# AttGAN generator: deterministic parameter init + forward (enc-dec)
# ----------------------------------------------------------------------------
class Config:
    enc_dim = 8
    enc_layers = 3
    dec_dim = 8
    dec_layers = 3
    n_attrs = 4
    shortcut_layers = 1
    inject_layers = 1
    img_size = 16


def init_params(key, cfg):
    params = {"enc": [], "dec": []}
    n_in = 3
    for i in range(cfg.enc_layers):
        n_out = min(cfg.enc_dim * 2 ** i, MAX_DIM)
        key, kw, kg, kb = jax.random.split(key, 4)
        w = jax.random.normal(kw, (n_out, n_in, 4, 4), jnp.float32) * 0.05
        gamma = 1.0 + 0.1 * jax.random.normal(kg, (n_out,), jnp.float32)
        beta = 0.1 * jax.random.normal(kb, (n_out,), jnp.float32)
        params["enc"].append((w, gamma, beta))
        n_in = n_out

    n_in = n_in + cfg.n_attrs
    for i in range(cfg.dec_layers):
        if i < cfg.dec_layers - 1:
            n_out = min(cfg.dec_dim * 2 ** (cfg.dec_layers - i - 1), MAX_DIM)
            key, kw, kg, kb = jax.random.split(key, 4)
            w = jax.random.normal(kw, (n_in, n_out, 4, 4), jnp.float32) * 0.05
            gamma = 1.0 + 0.1 * jax.random.normal(kg, (n_out,), jnp.float32)
            beta = 0.1 * jax.random.normal(kb, (n_out,), jnp.float32)
            params["dec"].append((w, gamma, beta))
            n_in = n_out
            n_in = n_in + n_in // 2 if cfg.shortcut_layers > i else n_in
            n_in = n_in + cfg.n_attrs if cfg.inject_layers > i else n_in
        else:
            # final layer: ConvTranspose2d(n_in, 3) with bias=True, then Tanh
            key, kw, kb = jax.random.split(key, 3)
            w = jax.random.normal(kw, (n_in, 3, 4, 4), jnp.float32) * 0.05
            bias = 0.1 * jax.random.normal(kb, (3,), jnp.float32)
            params["dec"].append((w, jnp.ones((3,), jnp.float32), bias))
    return params


def attgan_forward(params, x_nchw, a, cfg):
    """Matches AttGANGenerator.forward(x, a, mode='enc-dec')."""
    x = jnp.transpose(x_nchw, (0, 2, 3, 1)).astype(jnp.float32)  # -> NHWC
    B = x.shape[0]

    # ---- encode ----
    zs = []
    z = x
    for (w, g, b) in params["enc"]:
        z = conv2d_bn_lrelu(z, w, g, b)
        zs.append(z)

    # ---- decode ----
    f = cfg.img_size // 2 ** cfg.enc_layers
    a_tile = jnp.broadcast_to(a.reshape(B, 1, 1, cfg.n_attrs),
                              (B, f, f, cfg.n_attrs)).astype(jnp.float32)
    z = jnp.concatenate([zs[-1], a_tile], axis=-1)
    nd = cfg.dec_layers
    for i, (w, g, b) in enumerate(params["dec"]):
        if i < nd - 1:
            z = conv_transpose_block(z, w, gamma=g, beta=b,
                                     act="relu", use_bn=True)
        else:
            z = conv_transpose_block(z, w, bias=b, act="tanh", use_bn=False)
        if cfg.shortcut_layers > i:
            z = jnp.concatenate([z, zs[nd - 2 - i]], axis=-1)
        if cfg.inject_layers > i:
            s = f * 2 ** (i + 1)
            at = jnp.broadcast_to(a.reshape(B, 1, 1, cfg.n_attrs),
                                  (B, s, s, cfg.n_attrs)).astype(jnp.float32)
            z = jnp.concatenate([z, at], axis=-1)

    return jnp.transpose(z, (0, 3, 1, 2))  # back to NCHW


if __name__ == "__main__":
    cfg = Config()
    key = jax.random.PRNGKey(0)
    kp, kx, ka = jax.random.split(key, 3)

    params = init_params(kp, cfg)
    x = jax.random.normal(kx, (2, 3, cfg.img_size, cfg.img_size), jnp.float32)
    a = jax.random.normal(ka, (2, cfg.n_attrs), jnp.float32)

    forward = jax.jit(functools.partial(attgan_forward, cfg=cfg))
    out = forward(params, x, a)
    out = jax.block_until_ready(out)

    assert out.shape == (2, 3, cfg.img_size, cfg.img_size), out.shape
    assert bool(jnp.all(jnp.isfinite(out)))
    print("KERNEL_OK")
</pallas_src>

<mosaic_0001>
module attributes {stable_mosaic.version = 11 : i64} {
  func.func @_scale_shift_act_kernel(%arg0: i32, %arg1: i32, %arg2: memref<128x128xf32, #tpu.memory_space<vmem>>, %arg3: memref<1x128xf32, #tpu.memory_space<vmem>>, %arg4: memref<1x128xf32, #tpu.memory_space<vmem>>, %arg5: memref<128x128xf32, #tpu.memory_space<vmem>>) attributes {dimension_semantics = [#tpu.dimension_semantics<parallel>, #tpu.dimension_semantics<parallel>], iteration_bounds = array<i64: 1, 1>, scalar_prefetch = 0 : i64, scratch_operands = 0 : i64, tpu.core_type = #tpu.core_type<tc>, window_params = [{transform_indices = @transform_0, window_bounds = array<i64: 128, 128>}, {transform_indices = @transform_1, window_bounds = array<i64: 1, 128>}, {transform_indices = @transform_2, window_bounds = array<i64: 1, 128>}, {transform_indices = @transform_3, window_bounds = array<i64: 128, 128>}]} {
    %c0 = arith.constant 0 : index
    %c0_0 = arith.constant 0 : index
    %0 = vector.load %arg2[%c0, %c0_0] : memref<128x128xf32, #tpu.memory_space<vmem>>, vector<128x128xf32>
    %c0_1 = arith.constant 0 : index
    %c0_2 = arith.constant 0 : index
    %1 = vector.load %arg3[%c0_1, %c0_2] : memref<1x128xf32, #tpu.memory_space<vmem>>, vector<1x128xf32>
    %2 = vector.broadcast %1 : vector<1x128xf32> to vector<128x128xf32>
    %3 = arith.mulf %0, %2 : vector<128x128xf32>
    %c0_3 = arith.constant 0 : index
    %c0_4 = arith.constant 0 : index
    %4 = vector.load %arg4[%c0_3, %c0_4] : memref<1x128xf32, #tpu.memory_space<vmem>>, vector<1x128xf32>
    %5 = vector.broadcast %4 : vector<1x128xf32> to vector<128x128xf32>
    %6 = arith.addf %3, %5 : vector<128x128xf32>
    %cst = arith.constant 0.000000e+00 : f32
    %7 = vector.broadcast %cst : f32 to vector<128x128xf32>
    %8 = arith.cmpf ogt, %6, %7 : vector<128x128xf32>
    %cst_5 = arith.constant 2.000000e-01 : f32
    %9 = vector.broadcast %cst_5 : f32 to vector<128x128xf32>
    %10 = arith.mulf %9, %6 : vector<128x128xf32>
    %11 = arith.select %8, %6, %10 : vector<128x128xi1>, vector<128x128xf32>
    %c0_6 = arith.constant 0 : index
    %c0_7 = arith.constant 0 : index
    %12 = vector.load %arg5[%c0_6, %c0_7] : memref<128x128xf32, #tpu.memory_space<vmem>>, vector<128x128xf32>
    tpu.vector_store %arg5[%c0_6, %c0_7], %11 {strides = array<i32>} : memref<128x128xf32, #tpu.memory_space<vmem>>, vector<128x128xf32>,
    return
  }
  func.func @transform_0(%arg0: i32, %arg1: i32) -> (i32, i32) {
    %c0_i32 = arith.constant 0 : i32
    return %arg0, %arg1 : i32, i32
  }
  func.func @transform_1(%arg0: i32, %arg1: i32) -> (i32, i32) {
    %c0_i32 = arith.constant 0 : i32
    %c0_i32_0 = arith.constant 0 : i32
    return %c0_i32, %arg1 : i32, i32
  }
  func.func @transform_2(%arg0: i32, %arg1: i32) -> (i32, i32) {
    %c0_i32 = arith.constant 0 : i32
    %c0_i32_0 = arith.constant 0 : i32
    return %c0_i32, %arg1 : i32, i32
  }
  func.func @transform_3(%arg0: i32, %arg1: i32) -> (i32, i32) {
    %c0_i32 = arith.constant 0 : i32
    return %arg0, %arg1 : i32, i32
  }
}

module attributes {stable_mosaic.version = 11 : i64} {
  func.func @_mm_stats_kernel(%arg0: i32, %arg1: i32, %arg2: i32, %arg3: i32, %arg4: memref<1x128x128xbf16, #tpu.memory_space<vmem>>, %arg5: memref<1x128x128xbf16, #tpu.memory_space<vmem>>, %arg6: memref<1x128xf32, #tpu.memory_space<vmem>>, %arg7: memref<1x128x128xf32, #tpu.memory_space<vmem>>, %arg8: memref<1x8x128xf32, #tpu.memory_space<vmem>>, %arg9: memref<128x128xf32, #tpu.memory_space<vmem>>) attributes {dimension_semantics = [#tpu.dimension_semantics<parallel>, #tpu.dimension_semantics<parallel>, #tpu.dimension_semantics<parallel>, #tpu.dimension_semantics<arbitrary>], iteration_bounds = array<i64: 1, 1, 1, 1>, scalar_prefetch = 0 : i64, scratch_operands = 1 : i64, tpu.core_type = #tpu.core_type<tc>, window_params = [{transform_indices = @transform_0, window_bounds = array<i64: 1, 128, 128>}, {transform_indices = @transform_1, window_bounds = array<i64: 1, 128, 128>}, {transform_indices = @transform_2, window_bounds = array<i64: 1, 128>}, {transform_indices = @transform_3, window_bounds = array<i64: 1, 128, 128>}, {transform_indices = @transform_4, window_bounds = array<i64: 1, 8, 128>}]} {
    %c0_i32 = arith.constant 0 : i32
    %0 = arith.cmpi eq, %arg3, %c0_i32 : i32
    %1 = arith.extui %0 : i1 to i32
    %c0_i32_0 = arith.constant 0 : i32
    %2 = arith.cmpi ne, %1, %c0_i32_0 : i32
    scf.if %2 {
      %cst_12 = arith.constant 0.000000e+00 : f32
      %14 = vector.broadcast %cst_12 : f32 to vector<128x128xf32>
      %c0_13 = arith.constant 0 : index
      %c0_14 = arith.constant 0 : index
      %15 = vector.load %arg9[%c0_13, %c0_14] : memref<128x128xf32, #tpu.memory_space<vmem>>, vector<128x128xf32>
      tpu.vector_store %arg9[%c0_13, %c0_14], %14 {strides = array<i32>} : memref<128x128xf32, #tpu.memory_space<vmem>>, vector<128x128xf32>,
    } else {
    }
    %c0 = arith.constant 0 : index
    %c0_1 = arith.constant 0 : index
    %3 = vector.load %arg9[%c0, %c0_1] : memref<128x128xf32, #tpu.memory_space<vmem>>, vector<128x128xf32>
    %c0_2 = arith.constant 0 : index
    %c0_3 = arith.constant 0 : index
    %c0_4 = arith.constant 0 : index
    %4 = vector.load %arg4[%c0_2, %c0_3, %c0_4] : memref<1x128x128xbf16, #tpu.memory_space<vmem>>, vector<1x128x128xbf16>
    %5 = vector.shape_cast %4 : vector<1x128x128xbf16> to vector<128x128xbf16>
    %c0_5 = arith.constant 0 : index
    %c0_6 = arith.constant 0 : index
    %c0_7 = arith.constant 0 : index
    %6 = vector.load %arg5[%c0_5, %c0_6, %c0_7] : memref<1x128x128xbf16, #tpu.memory_space<vmem>>, vector<1x128x128xbf16>
    %7 = vector.shape_cast %6 : vector<1x128x128xbf16> to vector<128x128xbf16>
    %cst = arith.constant dense<0.000000e+00> : vector<128x128xf32>
    %8 = tpu.matmul %5, %7, %cst {dimension_numbers = #tpu.dot_dimension_numbers<[1], [0], [0], [1], [0, 0, 1, 1], [], []>} : vector<128x128xbf16>, vector<128x128xbf16>, vector<128x128xf32> -> vector<128x128xf32>
    %9 = arith.addf %3, %8 : vector<128x128xf32>
    %c0_8 = arith.constant 0 : index
    %c0_9 = arith.constant 0 : index
    %10 = vector.load %arg9[%c0_8, %c0_9] : memref<128x128xf32, #tpu.memory_space<vmem>>, vector<128x128xf32>
    tpu.vector_store %arg9[%c0_8, %c0_9], %9 {strides = array<i32>} : memref<128x128xf32, #tpu.memory_space<vmem>>, vector<128x128xf32>,
    %c0_i32_10 = arith.constant 0 : i32
    %11 = arith.cmpi eq, %arg3, %c0_i32_10 : i32
    %12 = arith.extui %11 : i1 to i32
    %c0_i32_11 = arith.constant 0 : i32
    %13 = arith.cmpi ne, %12, %c0_i32_11 : i32
    scf.if %13 {
      %c0_12 = arith.constant 0 : index
      %c0_13 = arith.constant 0 : index
      %14 = vector.load %arg9[%c0_12, %c0_13] : memref<128x128xf32, #tpu.memory_space<vmem>>, vector<128x128xf32>
      %cst_14 = arith.constant dense<0.000000e+00> : vector<128xf32>
      %15 = vector.multi_reduction <add>, %14, %cst_14 [0] : vector<128x128xf32> to vector<128xf32>
      %16 = vector.shape_cast %15 : vector<128xf32> to vector<1x128xf32>
      %17 = arith.mulf %14, %14 : vector<128x128xf32>
      %cst_15 = arith.constant dense<0.000000e+00> : vector<128xf32>
      %18 = vector.multi_reduction <add>, %17, %cst_15 [0] : vector<128x128xf32> to vector<128xf32>
      %19 = vector.shape_cast %18 : vector<128xf32> to vector<1x128xf32>
      %cst_16 = arith.constant 0.000000e+00 : f32
      %20 = vector.broadcast %cst_16 : f32 to vector<6x128xf32>
      %21 = tpu.concatenate %16, %19, %20 in 0 : vector<1x128xf32>, vector<1x128xf32>, vector<6x128xf32> -> vector<8x128xf32>
      %c0_17 = arith.constant 0 : index
      %c0_18 = arith.constant 0 : index
      %c0_19 = arith.constant 0 : index
      %22 = vector.load %arg8[%c0_17, %c0_18, %c0_19] : memref<1x8x128xf32, #tpu.memory_space<vmem>>, vector<1x8x128xf32>
      %23 = vector.shape_cast %22 : vector<1x8x128xf32> to vector<8x128xf32>
      %24 = vector.shape_cast %21 : vector<8x128xf32> to vector<1x8x128xf32>
      tpu.vector_store %arg8[%c0_17, %c0_18, %c0_19], %24 {strides = array<i32>} : memref<1x8x128xf32, #tpu.memory_space<vmem>>, vector<1x8x128xf32>,
      %c0_20 = arith.constant 0 : index
      %c0_21 = arith.constant 0 : index
      %25 = vector.load %arg6[%c0_20, %c0_21] : memref<1x128xf32, #tpu.memory_space<vmem>>, vector<1x128xf32>
      %26 = vector.broadcast %25 : vector<1x128xf32> to vector<128x128xf32>
      %27 = arith.addf %14, %26 : vector<128x128xf32>
      %c0_22 = arith.constant 0 : index
      %c0_23 = arith.constant 0 : index
      %c0_24 = arith.constant 0 : index
      %28 = vector.load %arg7[%c0_22, %c0_23, %c0_24] : memref<1x128x128xf32, #tpu.memory_space<vmem>>, vector<1x128x128xf32>
      %29 = vector.shape_cast %28 : vector<1x128x128xf32> to vector<128x128xf32>
      %30 = vector.shape_cast %27 : vector<128x128xf32> to vector<1x128x128xf32>
      tpu.vector_store %arg7[%c0_22, %c0_23, %c0_24], %30 {strides = array<i32>} : memref<1x128x128xf32, #tpu.memory_space<vmem>>, vector<1x128x128xf32>,
    } else {
    }
    return
  }
  func.func @transform_0(%arg0: i32, %arg1: i32, %arg2: i32, %arg3: i32) -> (i32, i32, i32) {
    %c0_i32 = arith.constant 0 : i32
    return %arg0, %arg1, %arg3 : i32, i32, i32
  }
  func.func @transform_1(%arg0: i32, %arg1: i32, %arg2: i32, %arg3: i32) -> (i32, i32, i32) {
    %c0_i32 = arith.constant 0 : i32
    return %arg0, %arg3, %arg2 : i32, i32, i32
  }
  func.func @transform_2(%arg0: i32, %arg1: i32, %arg2: i32, %arg3: i32) -> (i32, i32) {
    %c0_i32 = arith.constant 0 : i32
    %c0_i32_0 = arith.constant 0 : i32
    return %c0_i32, %arg2 : i32, i32
  }
  func.func @transform_3(%arg0: i32, %arg1: i32, %arg2: i32, %arg3: i32) -> (i32, i32, i32) {
    %c0_i32 = arith.constant 0 : i32
    return %arg0, %arg1, %arg2 : i32, i32, i32
  }
  func.func @transform_4(%arg0: i32, %arg1: i32, %arg2: i32, %arg3: i32) -> (i32, i32, i32) {
    %c0_i32 = arith.constant 0 : i32
    return %arg0, %arg1, %arg2 : i32, i32, i32
  }
}

module attributes {stable_mosaic.version = 11 : i64} {
  func.func @_mm_stats_kernel(%arg0: i32, %arg1: i32, %arg2: i32, %arg3: i32, %arg4: memref<1x128x128xbf16, #tpu.memory_space<vmem>>, %arg5: memref<1x128x128xbf16, #tpu.memory_space<vmem>>, %arg6: memref<1x128xf32, #tpu.memory_space<vmem>>, %arg7: memref<1x128x128xf32, #tpu.memory_space<vmem>>, %arg8: memref<1x8x128xf32, #tpu.memory_space<vmem>>, %arg9: memref<128x128xf32, #tpu.memory_space<vmem>>) attributes {dimension_semantics = [#tpu.dimension_semantics<parallel>, #tpu.dimension_semantics<parallel>, #tpu.dimension_semantics<parallel>, #tpu.dimension_semantics<arbitrary>], iteration_bounds = array<i64: 1, 1, 1, 2>, scalar_prefetch = 0 : i64, scratch_operands = 1 : i64, tpu.core_type = #tpu.core_type<tc>, window_params = [{transform_indices = @transform_0, window_bounds = array<i64: 1, 128, 128>}, {transform_indices = @transform_1, window_bounds = array<i64: 1, 128, 128>}, {transform_indices = @transform_2, window_bounds = array<i64: 1, 128>}, {transform_indices = @transform_3, window_bounds = array<i64: 1, 128, 128>}, {transform_indices = @transform_4, window_bounds = array<i64: 1, 8, 128>}]} {
    %c0_i32 = arith.constant 0 : i32
    %0 = arith.cmpi eq, %arg3, %c0_i32 : i32
    %1 = arith.extui %0 : i1 to i32
    %c0_i32_0 = arith.constant 0 : i32
    %2 = arith.cmpi ne, %1, %c0_i32_0 : i32
    scf.if %2 {
      %cst_11 = arith.constant 0.000000e+00 : f32
      %14 = vector.broadcast %cst_11 : f32 to vector<128x128xf32>
      %c0_12 = arith.constant 0 : index
      %c0_13 = arith.constant 0 : index
      %15 = vector.load %arg9[%c0_12, %c0_13] : memref<128x128xf32, #tpu.memory_space<vmem>>, vector<128x128xf32>
      tpu.vector_store %arg9[%c0_12, %c0_13], %14 {strides = array<i32>} : memref<128x128xf32, #tpu.memory_space<vmem>>, vector<128x128xf32>,
    } else {
    }
    %c0 = arith.constant 0 : index
    %c0_1 = arith.constant 0 : index
    %3 = vector.load %arg9[%c0, %c0_1] : memref<128x128xf32, #tpu.memory_space<vmem>>, vector<128x128xf32>
    %c0_2 = arith.constant 0 : index
    %c0_3 = arith.constant 0 : index
    %c0_4 = arith.constant 0 : index
    %4 = vector.load %arg4[%c0_2, %c0_3, %c0_4] : memref<1x128x128xbf16, #tpu.memory_space<vmem>>, vector<1x128x128xbf16>
    %5 = vector.shape_cast %4 : vector<1x128x128xbf16> to vector<128x128xbf16>
    %c0_5 = arith.constant 0 : index
    %c0_6 = arith.constant 0 : index
    %c0_7 = arith.constant 0 : index
    %6 = vector.load %arg5[%c0_5, %c0_6, %c0_7] : memref<1x128x128xbf16, #tpu.memory_space<vmem>>, vector<1x128x128xbf16>
    %7 = vector.shape_cast %6 : vector<1x128x128xbf16> to vector<128x128xbf16>
    %cst = arith.constant dense<0.000000e+00> : vector<128x128xf32>
    %8 = tpu.matmul %5, %7, %cst {dimension_numbers = #tpu.dot_dimension_numbers<[1], [0], [0], [1], [0, 0, 1, 1], [], []>} : vector<128x128xbf16>, vector<128x128xbf16>, vector<128x128xf32> -> vector<128x128xf32>
    %9 = arith.addf %3, %8 : vector<128x128xf32>
    %c0_8 = arith.constant 0 : index
    %c0_9 = arith.constant 0 : index
    %10 = vector.load %arg9[%c0_8, %c0_9] : memref<128x128xf32, #tpu.memory_space<vmem>>, vector<128x128xf32>
    tpu.vector_store %arg9[%c0_8, %c0_9], %9 {strides = array<i32>} : memref<128x128xf32, #tpu.memory_space<vmem>>, vector<128x128xf32>,
    %c1_i32 = arith.constant 1 : i32
    %11 = arith.cmpi eq, %arg3, %c1_i32 : i32
    %12 = arith.extui %11 : i1 to i32
    %c0_i32_10 = arith.constant 0 : i32
    %13 = arith.cmpi ne, %12, %c0_i32_10 : i32
    scf.if %13 {
      %c0_11 = arith.constant 0 : index
      %c0_12 = arith.constant 0 : index
      %14 = vector.load %arg9[%c0_11, %c0_12] : memref<128x128xf32, #tpu.memory_space<vmem>>, vector<128x128xf32>
      %cst_13 = arith.constant dense<0.000000e+00> : vector<128xf32>
      %15 = vector.multi_reduction <add>, %14, %cst_13 [0] : vector<128x128xf32> to vector<128xf32>
      %16 = vector.shape_cast %15 : vector<128xf32> to vector<1x128xf32>
      %17 = arith.mulf %14, %14 : vector<128x128xf32>
      %cst_14 = arith.constant dense<0.000000e+00> : vector<128xf32>
      %18 = vector.multi_reduction <add>, %17, %cst_14 [0] : vector<128x128xf32> to vector<128xf32>
      %19 = vector.shape_cast %18 : vector<128xf32> to vector<1x128xf32>
      %cst_15 = arith.constant 0.000000e+00 : f32
      %20 = vector.broadcast %cst_15 : f32 to vector<6x128xf32>
      %21 = tpu.concatenate %16, %19, %20 in 0 : vector<1x128xf32>, vector<1x128xf32>, vector<6x128xf32> -> vector<8x128xf32>
      %c0_16 = arith.constant 0 : index
      %c0_17 = arith.constant 0 : index
      %c0_18 = arith.constant 0 : index
      %22 = vector.load %arg8[%c0_16, %c0_17, %c0_18] : memref<1x8x128xf32, #tpu.memory_space<vmem>>, vector<1x8x128xf32>
      %23 = vector.shape_cast %22 : vector<1x8x128xf32> to vector<8x128xf32>
      %24 = vector.shape_cast %21 : vector<8x128xf32> to vector<1x8x128xf32>
      tpu.vector_store %arg8[%c0_16, %c0_17, %c0_18], %24 {strides = array<i32>} : memref<1x8x128xf32, #tpu.memory_space<vmem>>, vector<1x8x128xf32>,
      %c0_19 = arith.constant 0 : index
      %c0_20 = arith.constant 0 : index
      %25 = vector.load %arg6[%c0_19, %c0_20] : memref<1x128xf32, #tpu.memory_space<vmem>>, vector<1x128xf32>
      %26 = vector.broadcast %25 : vector<1x128xf32> to vector<128x128xf32>
      %27 = arith.addf %14, %26 : vector<128x128xf32>
      %c0_21 = arith.constant 0 : index
      %c0_22 = arith.constant 0 : index
      %c0_23 = arith.constant 0 : index
      %28 = vector.load %arg7[%c0_21, %c0_22, %c0_23] : memref<1x128x128xf32, #tpu.memory_space<vmem>>, vector<1x128x128xf32>
      %29 = vector.shape_cast %28 : vector<1x128x128xf32> to vector<128x128xf32>
      %30 = vector.shape_cast %27 : vector<128x128xf32> to vector<1x128x128xf32>
      tpu.vector_store %arg7[%c0_21, %c0_22, %c0_23], %30 {strides = array<i32>} : memref<1x128x128xf32, #tpu.memory_space<vmem>>, vector<1x128x128xf32>,
    } else {
    }
    return
  }
  func.func @transform_0(%arg0: i32, %arg1: i32, %arg2: i32, %arg3: i32) -> (i32, i32, i32) {
    %c0_i32 = arith.constant 0 : i32
    return %arg0, %arg1, %arg3 : i32, i32, i32
  }
  func.func @transform_1(%arg0: i32, %arg1: i32, %arg2: i32, %arg3: i32) -> (i32, i32, i32) {
    %c0_i32 = arith.constant 0 : i32
    return %arg0, %arg3, %arg2 : i32, i32, i32
  }
  func.func @transform_2(%arg0: i32, %arg1: i32, %arg2: i32, %arg3: i32) -> (i32, i32) {
    %c0_i32 = arith.constant 0 : i32
    %c0_i32_0 = arith.constant 0 : i32
    return %c0_i32, %arg2 : i32, i32
  }
  func.func @transform_3(%arg0: i32, %arg1: i32, %arg2: i32, %arg3: i32) -> (i32, i32, i32) {
    %c0_i32 = arith.constant 0 : i32
    return %arg0, %arg1, %arg2 : i32, i32, i32
  }
  func.func @transform_4(%arg0: i32, %arg1: i32, %arg2: i32, %arg3: i32) -> (i32, i32, i32) {
    %c0_i32 = arith.constant 0 : i32
    return %arg0, %arg1, %arg2 : i32, i32, i32
  }
}

module attributes {stable_mosaic.version = 11 : i64} {
  func.func @_mm_stats_kernel(%arg0: i32, %arg1: i32, %arg2: i32, %arg3: i32, %arg4: memref<1x128x128xbf16, #tpu.memory_space<vmem>>, %arg5: memref<1x128x128xbf16, #tpu.memory_space<vmem>>, %arg6: memref<1x128xf32, #tpu.memory_space<vmem>>, %arg7: memref<1x128x128xf32, #tpu.memory_space<vmem>>, %arg8: memref<1x8x128xf32, #tpu.memory_space<vmem>>, %arg9: memref<128x128xf32, #tpu.memory_space<vmem>>) attributes {dimension_semantics = [#tpu.dimension_semantics<parallel>, #tpu.dimension_semantics<parallel>, #tpu.dimension_semantics<parallel>, #tpu.dimension_semantics<arbitrary>], iteration_bounds = array<i64: 4, 1, 1, 2>, scalar_prefetch = 0 : i64, scratch_operands = 1 : i64, tpu.core_type = #tpu.core_type<tc>, window_params = [{transform_indices = @transform_0, window_bounds = array<i64: 1, 128, 128>}, {transform_indices = @transform_1, window_bounds = array<i64: 1, 128, 128>}, {transform_indices = @transform_2, window_bounds = array<i64: 1, 128>}, {transform_indices = @transform_3, window_bounds = array<i64: 1, 128, 128>}, {transform_indices = @transform_4, window_bounds = array<i64: 1, 8, 128>}]} {
    %c0_i32 = arith.constant 0 : i32
    %0 = arith.cmpi eq, %arg3, %c0_i32 : i32
    %1 = arith.extui %0 : i1 to i32
    %c0_i32_0 = arith.constant 0 : i32
    %2 = arith.cmpi ne, %1, %c0_i32_0 : i32
    scf.if %2 {
      %cst_11 = arith.constant 0.000000e+00 : f32
      %14 = vector.broadcast %cst_11 : f32 to vector<128x128xf32>
      %c0_12 = arith.constant 0 : index
      %c0_13 = arith.constant 0 : index
      %15 = vector.load %arg9[%c0_12, %c0_13] : memref<128x128xf32, #tpu.memory_space<vmem>>, vector<128x128xf32>
      tpu.vector_store %arg9[%c0_12, %c0_13], %14 {strides = array<i32>} : memref<128x128xf32, #tpu.memory_space<vmem>>, vector<128x128xf32>,
    } else {
    }
    %c0 = arith.constant 0 : index
    %c0_1 = arith.constant 0 : index
    %3 = vector.load %arg9[%c0, %c0_1] : memref<128x128xf32, #tpu.memory_space<vmem>>, vector<128x128xf32>
    %c0_2 = arith.constant 0 : index
    %c0_3 = arith.constant 0 : index
    %c0_4 = arith.constant 0 : index
    %4 = vector.load %arg4[%c0_2, %c0_3, %c0_4] : memref<1x128x128xbf16, #tpu.memory_space<vmem>>, vector<1x128x128xbf16>
    %5 = vector.shape_cast %4 : vector<1x128x128xbf16> to vector<128x128xbf16>
    %c0_5 = arith.constant 0 : index
    %c0_6 = arith.constant 0 : index
    %c0_7 = arith.constant 0 : index
    %6 = vector.load %arg5[%c0_5, %c0_6, %c0_7] : memref<1x128x128xbf16, #tpu.memory_space<vmem>>, vector<1x128x128xbf16>
    %7 = vector.shape_cast %6 : vector<1x128x128xbf16> to vector<128x128xbf16>
    %cst = arith.constant dense<0.000000e+00> : vector<128x128xf32>
    %8 = tpu.matmul %5, %7, %cst {dimension_numbers = #tpu.dot_dimension_numbers<[1], [0], [0], [1], [0, 0, 1, 1], [], []>} : vector<128x128xbf16>, vector<128x128xbf16>, vector<128x128xf32> -> vector<128x128xf32>
    %9 = arith.addf %3, %8 : vector<128x128xf32>
    %c0_8 = arith.constant 0 : index
    %c0_9 = arith.constant 0 : index
    %10 = vector.load %arg9[%c0_8, %c0_9] : memref<128x128xf32, #tpu.memory_space<vmem>>, vector<128x128xf32>
    tpu.vector_store %arg9[%c0_8, %c0_9], %9 {strides = array<i32>} : memref<128x128xf32, #tpu.memory_space<vmem>>, vector<128x128xf32>,
    %c1_i32 = arith.constant 1 : i32
    %11 = arith.cmpi eq, %arg3, %c1_i32 : i32
    %12 = arith.extui %11 : i1 to i32
    %c0_i32_10 = arith.constant 0 : i32
    %13 = arith.cmpi ne, %12, %c0_i32_10 : i32
    scf.if %13 {
      %c0_11 = arith.constant 0 : index
      %c0_12 = arith.constant 0 : index
      %14 = vector.load %arg9[%c0_11, %c0_12] : memref<128x128xf32, #tpu.memory_space<vmem>>, vector<128x128xf32>
      %cst_13 = arith.constant dense<0.000000e+00> : vector<128xf32>
      %15 = vector.multi_reduction <add>, %14, %cst_13 [0] : vector<128x128xf32> to vector<128xf32>
      %16 = vector.shape_cast %15 : vector<128xf32> to vector<1x128xf32>
      %17 = arith.mulf %14, %14 : vector<128x128xf32>
      %cst_14 = arith.constant dense<0.000000e+00> : vector<128xf32>
      %18 = vector.multi_reduction <add>, %17, %cst_14 [0] : vector<128x128xf32> to vector<128xf32>
      %19 = vector.shape_cast %18 : vector<128xf32> to vector<1x128xf32>
      %cst_15 = arith.constant 0.000000e+00 : f32
      %20 = vector.broadcast %cst_15 : f32 to vector<6x128xf32>
      %21 = tpu.concatenate %16, %19, %20 in 0 : vector<1x128xf32>, vector<1x128xf32>, vector<6x128xf32> -> vector<8x128xf32>
      %c0_16 = arith.constant 0 : index
      %c0_17 = arith.constant 0 : index
      %c0_18 = arith.constant 0 : index
      %22 = vector.load %arg8[%c0_16, %c0_17, %c0_18] : memref<1x8x128xf32, #tpu.memory_space<vmem>>, vector<1x8x128xf32>
      %23 = vector.shape_cast %22 : vector<1x8x128xf32> to vector<8x128xf32>
      %24 = vector.shape_cast %21 : vector<8x128xf32> to vector<1x8x128xf32>
      tpu.vector_store %arg8[%c0_16, %c0_17, %c0_18], %24 {strides = array<i32>} : memref<1x8x128xf32, #tpu.memory_space<vmem>>, vector<1x8x128xf32>,
      %c0_19 = arith.constant 0 : index
      %c0_20 = arith.constant 0 : index
      %25 = vector.load %arg6[%c0_19, %c0_20] : memref<1x128xf32, #tpu.memory_space<vmem>>, vector<1x128xf32>
      %26 = vector.broadcast %25 : vector<1x128xf32> to vector<128x128xf32>
      %27 = arith.addf %14, %26 : vector<128x128xf32>
      %c0_21 = arith.constant 0 : index
      %c0_22 = arith.constant 0 : index
      %c0_23 = arith.constant 0 : index
      %28 = vector.load %arg7[%c0_21, %c0_22, %c0_23] : memref<1x128x128xf32, #tpu.memory_space<vmem>>, vector<1x128x128xf32>
      %29 = vector.shape_cast %28 : vector<1x128x128xf32> to vector<128x128xf32>
      %30 = vector.shape_cast %27 : vector<128x128xf32> to vector<1x128x128xf32>
      tpu.vector_store %arg7[%c0_21, %c0_22, %c0_23], %30 {strides = array<i32>} : memref<1x128x128xf32, #tpu.memory_space<vmem>>, vector<1x128x128xf32>,
    } else {
    }
    return
  }
  func.func @transform_0(%arg0: i32, %arg1: i32, %arg2: i32, %arg3: i32) -> (i32, i32, i32) {
    %c0_i32 = arith.constant 0 : i32
    return %arg0, %arg1, %arg3 : i32, i32, i32
  }
  func.func @transform_1(%arg0: i32, %arg1: i32, %arg2: i32, %arg3: i32) -> (i32, i32, i32) {
    %c0_i32 = arith.constant 0 : i32
    return %arg0, %arg3, %arg2 : i32, i32, i32
  }
  func.func @transform_2(%arg0: i32, %arg1: i32, %arg2: i32, %arg3: i32) -> (i32, i32) {
    %c0_i32 = arith.constant 0 : i32
    %c0_i32_0 = arith.constant 0 : i32
    return %c0_i32, %arg2 : i32, i32
  }
  func.func @transform_3(%arg0: i32, %arg1: i32, %arg2: i32, %arg3: i32) -> (i32, i32, i32) {
    %c0_i32 = arith.constant 0 : i32
    return %arg0, %arg1, %arg2 : i32, i32, i32
  }
  func.func @transform_4(%arg0: i32, %arg1: i32, %arg2: i32, %arg3: i32) -> (i32, i32, i32) {
    %c0_i32 = arith.constant 0 : i32
    return %arg0, %arg1, %arg2 : i32, i32, i32
  }
}

module attributes {stable_mosaic.version = 11 : i64} {
  func.func @_scale_shift_act_kernel(%arg0: i32, %arg1: i32, %arg2: memref<128x128xf32, #tpu.memory_space<vmem>>, %arg3: memref<1x128xf32, #tpu.memory_space<vmem>>, %arg4: memref<1x128xf32, #tpu.memory_space<vmem>>, %arg5: memref<128x128xf32, #tpu.memory_space<vmem>>) attributes {dimension_semantics = [#tpu.dimension_semantics<parallel>, #tpu.dimension_semantics<parallel>], iteration_bounds = array<i64: 4, 1>, scalar_prefetch = 0 : i64, scratch_operands = 0 : i64, tpu.core_type = #tpu.core_type<tc>, window_params = [{transform_indices = @transform_0, window_bounds = array<i64: 128, 128>}, {transform_indices = @transform_1, window_bounds = array<i64: 1, 128>}, {transform_indices = @transform_2, window_bounds = array<i64: 1, 128>}, {transform_indices = @transform_3, window_bounds = array<i64: 128, 128>}]} {
    %c0 = arith.constant 0 : index
    %c0_0 = arith.constant 0 : index
    %0 = vector.load %arg2[%c0, %c0_0] : memref<128x128xf32, #tpu.memory_space<vmem>>, vector<128x128xf32>
    %c0_1 = arith.constant 0 : index
    %c0_2 = arith.constant 0 : index
    %1 = vector.load %arg3[%c0_1, %c0_2] : memref<1x128xf32, #tpu.memory_space<vmem>>, vector<1x128xf32>
    %2 = vector.broadcast %1 : vector<1x128xf32> to vector<128x128xf32>
    %3 = arith.mulf %0, %2 : vector<128x128xf32>
    %c0_3 = arith.constant 0 : index
    %c0_4 = arith.constant 0 : index
    %4 = vector.load %arg4[%c0_3, %c0_4] : memref<1x128xf32, #tpu.memory_space<vmem>>, vector<1x128xf32>
    %5 = vector.broadcast %4 : vector<1x128xf32> to vector<128x128xf32>
    %6 = arith.addf %3, %5 : vector<128x128xf32>
    %cst = arith.constant 0.000000e+00 : f32
    %7 = vector.broadcast %cst : f32 to vector<128x128xf32>
    %8 = arith.maximumf %6, %7 : vector<128x128xf32>
    %c0_5 = arith.constant 0 : index
    %c0_6 = arith.constant 0 : index
    %9 = vector.load %arg5[%c0_5, %c0_6] : memref<128x128xf32, #tpu.memory_space<vmem>>, vector<128x128xf32>
    tpu.vector_store %arg5[%c0_5, %c0_6], %8 {strides = array<i32>} : memref<128x128xf32, #tpu.memory_space<vmem>>, vector<128x128xf32>,
    return
  }
  func.func @transform_0(%arg0: i32, %arg1: i32) -> (i32, i32) {
    %c0_i32 = arith.constant 0 : i32
    return %arg0, %arg1 : i32, i32
  }
  func.func @transform_1(%arg0: i32, %arg1: i32) -> (i32, i32) {
    %c0_i32 = arith.constant 0 : i32
    %c0_i32_0 = arith.constant 0 : i32
    return %c0_i32, %arg1 : i32, i32
  }
  func.func @transform_2(%arg0: i32, %arg1: i32) -> (i32, i32) {
    %c0_i32 = arith.constant 0 : i32
    %c0_i32_0 = arith.constant 0 : i32
    return %c0_i32, %arg1 : i32, i32
  }
  func.func @transform_3(%arg0: i32, %arg1: i32) -> (i32, i32) {
    %c0_i32 = arith.constant 0 : i32
    return %arg0, %arg1 : i32, i32
  }
}

module attributes {stable_mosaic.version = 11 : i64} {
  func.func @_mm_stats_kernel(%arg0: i32, %arg1: i32, %arg2: i32, %arg3: i32, %arg4: memref<1x128x128xbf16, #tpu.memory_space<vmem>>, %arg5: memref<1x128x128xbf16, #tpu.memory_space<vmem>>, %arg6: memref<1x128xf32, #tpu.memory_space<vmem>>, %arg7: memref<1x128x128xf32, #tpu.memory_space<vmem>>, %arg8: memref<1x8x128xf32, #tpu.memory_space<vmem>>, %arg9: memref<128x128xf32, #tpu.memory_space<vmem>>) attributes {dimension_semantics = [#tpu.dimension_semantics<parallel>, #tpu.dimension_semantics<parallel>, #tpu.dimension_semantics<parallel>, #tpu.dimension_semantics<arbitrary>], iteration_bounds = array<i64: 4, 1, 1, 1>, scalar_prefetch = 0 : i64, scratch_operands = 1 : i64, tpu.core_type = #tpu.core_type<tc>, window_params = [{transform_indices = @transform_0, window_bounds = array<i64: 1, 128, 128>}, {transform_indices = @transform_1, window_bounds = array<i64: 1, 128, 128>}, {transform_indices = @transform_2, window_bounds = array<i64: 1, 128>}, {transform_indices = @transform_3, window_bounds = array<i64: 1, 128, 128>}, {transform_indices = @transform_4, window_bounds = array<i64: 1, 8, 128>}]} {
    %c0_i32 = arith.constant 0 : i32
    %0 = arith.cmpi eq, %arg3, %c0_i32 : i32
    %1 = arith.extui %0 : i1 to i32
    %c0_i32_0 = arith.constant 0 : i32
    %2 = arith.cmpi ne, %1, %c0_i32_0 : i32
    scf.if %2 {
      %cst_12 = arith.constant 0.000000e+00 : f32
      %14 = vector.broadcast %cst_12 : f32 to vector<128x128xf32>
      %c0_13 = arith.constant 0 : index
      %c0_14 = arith.constant 0 : index
      %15 = vector.load %arg9[%c0_13, %c0_14] : memref<128x128xf32, #tpu.memory_space<vmem>>, vector<128x128xf32>
      tpu.vector_store %arg9[%c0_13, %c0_14], %14 {strides = array<i32>} : memref<128x128xf32, #tpu.memory_space<vmem>>, vector<128x128xf32>,
    } else {
    }
    %c0 = arith.constant 0 : index
    %c0_1 = arith.constant 0 : index
    %3 = vector.load %arg9[%c0, %c0_1] : memref<128x128xf32, #tpu.memory_space<vmem>>, vector<128x128xf32>
    %c0_2 = arith.constant 0 : index
    %c0_3 = arith.constant 0 : index
    %c0_4 = arith.constant 0 : index
    %4 = vector.load %arg4[%c0_2, %c0_3, %c0_4] : memref<1x128x128xbf16, #tpu.memory_space<vmem>>, vector<1x128x128xbf16>
    %5 = vector.shape_cast %4 : vector<1x128x128xbf16> to vector<128x128xbf16>
    %c0_5 = arith.constant 0 : index
    %c0_6 = arith.constant 0 : index
    %c0_7 = arith.constant 0 : index
    %6 = vector.load %arg5[%c0_5, %c0_6, %c0_7] : memref<1x128x128xbf16, #tpu.memory_space<vmem>>, vector<1x128x128xbf16>
    %7 = vector.shape_cast %6 : vector<1x128x128xbf16> to vector<128x128xbf16>
    %cst = arith.constant dense<0.000000e+00> : vector<128x128xf32>
    %8 = tpu.matmul %5, %7, %cst {dimension_numbers = #tpu.dot_dimension_numbers<[1], [0], [0], [1], [0, 0, 1, 1], [], []>} : vector<128x128xbf16>, vector<128x128xbf16>, vector<128x128xf32> -> vector<128x128xf32>
    %9 = arith.addf %3, %8 : vector<128x128xf32>
    %c0_8 = arith.constant 0 : index
    %c0_9 = arith.constant 0 : index
    %10 = vector.load %arg9[%c0_8, %c0_9] : memref<128x128xf32, #tpu.memory_space<vmem>>, vector<128x128xf32>
    tpu.vector_store %arg9[%c0_8, %c0_9], %9 {strides = array<i32>} : memref<128x128xf32, #tpu.memory_space<vmem>>, vector<128x128xf32>,
    %c0_i32_10 = arith.constant 0 : i32
    %11 = arith.cmpi eq, %arg3, %c0_i32_10 : i32
    %12 = arith.extui %11 : i1 to i32
    %c0_i32_11 = arith.constant 0 : i32
    %13 = arith.cmpi ne, %12, %c0_i32_11 : i32
    scf.if %13 {
      %c0_12 = arith.constant 0 : index
      %c0_13 = arith.constant 0 : index
      %14 = vector.load %arg9[%c0_12, %c0_13] : memref<128x128xf32, #tpu.memory_space<vmem>>, vector<128x128xf32>
      %cst_14 = arith.constant dense<0.000000e+00> : vector<128xf32>
      %15 = vector.multi_reduction <add>, %14, %cst_14 [0] : vector<128x128xf32> to vector<128xf32>
      %16 = vector.shape_cast %15 : vector<128xf32> to vector<1x128xf32>
      %17 = arith.mulf %14, %14 : vector<128x128xf32>
      %cst_15 = arith.constant dense<0.000000e+00> : vector<128xf32>
      %18 = vector.multi_reduction <add>, %17, %cst_15 [0] : vector<128x128xf32> to vector<128xf32>
      %19 = vector.shape_cast %18 : vector<128xf32> to vector<1x128xf32>
      %cst_16 = arith.constant 0.000000e+00 : f32
      %20 = vector.broadcast %cst_16 : f32 to vector<6x128xf32>
      %21 = tpu.concatenate %16, %19, %20 in 0 : vector<1x128xf32>, vector<1x128xf32>, vector<6x128xf32> -> vector<8x128xf32>
      %c0_17 = arith.constant 0 : index
      %c0_18 = arith.constant 0 : index
      %c0_19 = arith.constant 0 : index
      %22 = vector.load %arg8[%c0_17, %c0_18, %c0_19] : memref<1x8x128xf32, #tpu.memory_space<vmem>>, vector<1x8x128xf32>
      %23 = vector.shape_cast %22 : vector<1x8x128xf32> to vector<8x128xf32>
      %24 = vector.shape_cast %21 : vector<8x128xf32> to vector<1x8x128xf32>
      tpu.vector_store %arg8[%c0_17, %c0_18, %c0_19], %24 {strides = array<i32>} : memref<1x8x128xf32, #tpu.memory_space<vmem>>, vector<1x8x128xf32>,
      %c0_20 = arith.constant 0 : index
      %c0_21 = arith.constant 0 : index
      %25 = vector.load %arg6[%c0_20, %c0_21] : memref<1x128xf32, #tpu.memory_space<vmem>>, vector<1x128xf32>
      %26 = vector.broadcast %25 : vector<1x128xf32> to vector<128x128xf32>
      %27 = arith.addf %14, %26 : vector<128x128xf32>
      %28 = math.tanh %27 : vector<128x128xf32>
      %c0_22 = arith.constant 0 : index
      %c0_23 = arith.constant 0 : index
      %c0_24 = arith.constant 0 : index
      %29 = vector.load %arg7[%c0_22, %c0_23, %c0_24] : memref<1x128x128xf32, #tpu.memory_space<vmem>>, vector<1x128x128xf32>
      %30 = vector.shape_cast %29 : vector<1x128x128xf32> to vector<128x128xf32>
      %31 = vector.shape_cast %28 : vector<128x128xf32> to vector<1x128x128xf32>
      tpu.vector_store %arg7[%c0_22, %c0_23, %c0_24], %31 {strides = array<i32>} : memref<1x128x128xf32, #tpu.memory_space<vmem>>, vector<1x128x128xf32>,
    } else {
    }
    return
  }
  func.func @transform_0(%arg0: i32, %arg1: i32, %arg2: i32, %arg3: i32) -> (i32, i32, i32) {
    %c0_i32 = arith.constant 0 : i32
    return %arg0, %arg1, %arg3 : i32, i32, i32
  }
  func.func @transform_1(%arg0: i32, %arg1: i32, %arg2: i32, %arg3: i32) -> (i32, i32, i32) {
    %c0_i32 = arith.constant 0 : i32
    return %arg0, %arg3, %arg2 : i32, i32, i32
  }
  func.func @transform_2(%arg0: i32, %arg1: i32, %arg2: i32, %arg3: i32) -> (i32, i32) {
    %c0_i32 = arith.constant 0 : i32
    %c0_i32_0 = arith.constant 0 : i32
    return %c0_i32, %arg2 : i32, i32
  }
  func.func @transform_3(%arg0: i32, %arg1: i32, %arg2: i32, %arg3: i32) -> (i32, i32, i32) {
    %c0_i32 = arith.constant 0 : i32
    return %arg0, %arg1, %arg2 : i32, i32, i32
  }
  func.func @transform_4(%arg0: i32, %arg1: i32, %arg2: i32, %arg3: i32) -> (i32, i32, i32) {
    %c0_i32 = arith.constant 0 : i32
    return %arg0, %arg1, %arg2 : i32, i32, i32
  }
}

</mosaic_0001>

<llo_original>
// kernel: attgan_forward.12
$region0: #{attgan_forward.12}
  #allocation0 [shape = 'u32[]', space=smem, size = 0x4, offset = 0x4, fixed_abs, tag = 'smem constant byte address 0x4 - core index']
  #allocation1 [shape = 'u32[144,128]{1,0:T(1,128)}', space=vmem, size = 0x12000, scoped, tag = 'internal scratch']
  %s0 = inlined_call_operand.vmem [shape: f32[128,128], index: 0, kind: input, shape index: {}]
  %s1 = inlined_call_operand.vmem [shape: f32[1,128], index: 1, kind: input, shape index: {}]
  %s2 = inlined_call_operand.vmem [shape: f32[1,128], index: 2, kind: input, shape index: {}]
  %s3 = inlined_call_operand.vmem [shape: f32[128,128], index: 3, kind: output, shape index: {}]
  %s4 = sld [smem:[#allocation0]]
  $region22: #{attgan_forward.12} parent=0
    _
  %s6 = ssub.s32 1, %s4
  %s7 = scalar_select 0, %s6, %s4
  // Predicated region
  $region2: #{attgan_forward.12} parent=0 // pred_check
    _
  $region3: #{attgan_forward.12} parent=0 // pred_check_branch
    %9 = sbr.rel (0) target = $region5
  $region4: #{attgan_forward.12} parent=0 // pred_region
    _
  $region5: #{attgan_forward.12} parent=0 // pred_fallthru
    _
  // Predicated region
  $region6: #{attgan_forward.12} parent=0 // pred_check
    _
  $region7: #{attgan_forward.12} parent=0 // pred_check_branch
    %11 = sbr.rel (0) target = $region9
  $region8: #{attgan_forward.12} parent=0 // pred_region
    _
  $region9: #{attgan_forward.12} parent=0 // pred_fallthru
    _
  // Predicated region
  $region10: #{attgan_forward.12} parent=0 // pred_check
    _
  $region11: #{attgan_forward.12} parent=0 // pred_check_branch
    %13 = sbr.rel (0) target = $region13
  $region12: #{attgan_forward.12} parent=0 // pred_region
    _
  $region13: #{attgan_forward.12} parent=0 // pred_fallthru
    _
  %v14 = vld [vmem:[%s0] sm:$0xff]
  %v15 = vld [vmem:[%s0 + $0x8] sm:$0xff]
  %v16 = vld [vmem:[%s0 + $0x10] sm:$0xff]
  %v17 = vld [vmem:[%s0 + $0x18] sm:$0xff]
  %v18 = vld [vmem:[%s0 + $0x20] sm:$0xff]
  %v19 = vld [vmem:[%s0 + $0x28] sm:$0xff]
  %v20 = vld [vmem:[%s0 + $0x30] sm:$0xff]
  %v21 = vld [vmem:[%s0 + $0x38] sm:$0xff]
  %v22 = vld [vmem:[%s0 + $0x40] sm:$0xff]
  %v23 = vld [vmem:[%s0 + $0x48] sm:$0xff]
  %v24 = vld [vmem:[%s0 + $0x50] sm:$0xff]
  %v25 = vld [vmem:[%s0 + $0x58] sm:$0xff]
  %v26 = vld [vmem:[%s0 + $0x60] sm:$0xff]
  %v27 = vld [vmem:[%s0 + $0x68] sm:$0xff]
  %v28 = vld [vmem:[%s0 + $0x70] sm:$0xff]
  %v29 = vld [vmem:[%s0 + $0x78] sm:$0xff]
  %v30 = vld [vmem:[%s1] sm:$0x1]
  %v32 = vlaneseq
  %v33 = vshrl.u32 %v32, 7
  %v34 = vsub.s32 0, %v33
  %v35 = vrot.slane %v30, %v34
  %v37 = vmul.f32 %v14, %v35
  %v38 = vmul.f32 %v15, %v35
  %v39 = vmul.f32 %v16, %v35
  %v40 = vmul.f32 %v17, %v35
  %v41 = vmul.f32 %v18, %v35
  %v42 = vmul.f32 %v19, %v35
  %v43 = vmul.f32 %v20, %v35
  %v44 = vmul.f32 %v21, %v35
  %v45 = vmul.f32 %v22, %v35
  %v46 = vmul.f32 %v23, %v35
  %v47 = vmul.f32 %v24, %v35
  %v48 = vmul.f32 %v25, %v35
  %v49 = vmul.f32 %v26, %v35
  %v50 = vmul.f32 %v27, %v35
  %v51 = vmul.f32 %v28, %v35
  %v52 = vmul.f32 %v29, %v35
  %v53 = vld [vmem:[%s2] sm:$0x1]
  %v55 = vlaneseq
  %v56 = vshrl.u32 %v55, 7
  %v57 = vsub.s32 0, %v56
  %v58 = vrot.slane %v53, %v57
  %v60 = vadd.f32 %v37, %v58
  %v61 = vadd.f32 %v38, %v58
  %v62 = vadd.f32 %v39, %v58
  %v63 = vadd.f32 %v40, %v58
  %v64 = vadd.f32 %v41, %v58
  %v65 = vadd.f32 %v42, %v58
  %v66 = vadd.f32 %v43, %v58
  %v67 = vadd.f32 %v44, %v58
  %v68 = vadd.f32 %v45, %v58
  %v69 = vadd.f32 %v46, %v58
  %v70 = vadd.f32 %v47, %v58
  %v71 = vadd.f32 %v48, %v58
  %v72 = vadd.f32 %v49, %v58
  %v73 = vadd.f32 %v50, %v58
  %v74 = vadd.f32 %v51, %v58
  %v75 = vadd.f32 %v52, %v58
  %vm76 = vcmp.gt.f32.partialorder %v60, 0.0
  %vm77 = vcmp.gt.f32.partialorder %v61, 0.0
  %vm78 = vcmp.gt.f32.partialorder %v62, 0.0
  %vm79 = vcmp.gt.f32.partialorder %v63, 0.0
  %vm80 = vcmp.gt.f32.partialorder %v64, 0.0
  %vm81 = vcmp.gt.f32.partialorder %v65, 0.0
  %vm82 = vcmp.gt.f32.partialorder %v66, 0.0
  %vm83 = vcmp.gt.f32.partialorder %v67, 0.0
  %vm84 = vcmp.gt.f32.partialorder %v68, 0.0
  %vm85 = vcmp.gt.f32.partialorder %v69, 0.0
  %vm86 = vcmp.gt.f32.partialorder %v70, 0.0
  %vm87 = vcmp.gt.f32.partialorder %v71, 0.0
  %vm88 = vcmp.gt.f32.partialorder %v72, 0.0
  %vm89 = vcmp.gt.f32.partialorder %v73, 0.0
  %vm90 = vcmp.gt.f32.partialorder %v74, 0.0
  %vm91 = vcmp.gt.f32.partialorder %v75, 0.0
  %v92 = vmul.f32 %v60, 0.2
  %v93 = vmul.f32 %v61, 0.2
  %v94 = vmul.f32 %v62, 0.2
  %v95 = vmul.f32 %v63, 0.2
  %v96 = vmul.f32 %v64, 0.2
  %v97 = vmul.f32 %v65, 0.2
  %v98 = vmul.f32 %v66, 0.2
  %v99 = vmul.f32 %v67, 0.2
  %v100 = vmul.f32 %v68, 0.2
  %v101 = vmul.f32 %v69, 0.2
  %v102 = vmul.f32 %v70, 0.2
  %v103 = vmul.f32 %v71, 0.2
  %v104 = vmul.f32 %v72, 0.2
  %v105 = vmul.f32 %v73, 0.2
  %v106 = vmul.f32 %v74, 0.2
  %v107 = vmul.f32 %v75, 0.2
  %v108 = vsel %vm76, %v60, %v92
  %v109 = vsel %vm77, %v61, %v93
  %v110 = vsel %vm78, %v62, %v94
  %v111 = vsel %vm79, %v63, %v95
  %v112 = vsel %vm80, %v64, %v96
  %v113 = vsel %vm81, %v65, %v97
  %v114 = vsel %vm82, %v66, %v98
  %v115 = vsel %vm83, %v67, %v99
  %v116 = vsel %vm84, %v68, %v100
  %v117 = vsel %vm85, %v69, %v101
  %v118 = vsel %vm86, %v70, %v102
  %v119 = vsel %vm87, %v71, %v103
  %v120 = vsel %vm88, %v72, %v104
  %v121 = vsel %vm89, %v73, %v105
  %v122 = vsel %vm90, %v74, %v106
  %v123 = vsel %vm91, %v75, %v107
  %124 = vst [vmem:[%s3] sm:$0xff] %v108
  %125 = vst [vmem:[%s3 + $0x8] sm:$0xff] %v109
  %126 = vst [vmem:[%s3 + $0x10] sm:$0xff] %v110
  %127 = vst [vmem:[%s3 + $0x18] sm:$0xff] %v111
  %128 = vst [vmem:[%s3 + $0x20] sm:$0xff] %v112
  %129 = vst [vmem:[%s3 + $0x28] sm:$0xff] %v113
  %130 = vst [vmem:[%s3 + $0x30] sm:$0xff] %v114
  %131 = vst [vmem:[%s3 + $0x38] sm:$0xff] %v115
  %132 = vst [vmem:[%s3 + $0x40] sm:$0xff] %v116
  %133 = vst [vmem:[%s3 + $0x48] sm:$0xff] %v117
  %134 = vst [vmem:[%s3 + $0x50] sm:$0xff] %v118
  %135 = vst [vmem:[%s3 + $0x58] sm:$0xff] %v119
  %136 = vst [vmem:[%s3 + $0x60] sm:$0xff] %v120
  %137 = vst [vmem:[%s3 + $0x68] sm:$0xff] %v121
  %138 = vst [vmem:[%s3 + $0x70] sm:$0xff] %v122
  %139 = vst [vmem:[%s3 + $0x78] sm:$0xff] %v123
  // Predicated region
  $region14: #{attgan_forward.12} parent=0 // pred_check
    _
  $region15: #{attgan_forward.12} parent=0 // pred_check_branch
    %141 = sbr.rel (0) target = $region17
  $region16: #{attgan_forward.12} parent=0 // pred_region
    _
  $region17: #{attgan_forward.12} parent=0 // pred_fallthru
    _
  // Predicated region
  $region18: #{attgan_forward.12} parent=0 // pred_check
    _
  $region19: #{attgan_forward.12} parent=0 // pred_check_branch
    %143 = sbr.rel (0) target = $region21
  $region20: #{attgan_forward.12} parent=0 // pred_region
    _
  $region21: #{attgan_forward.12} parent=0 // pred_fallthru
    _

// kernel: attgan_forward.11
$region0: #{attgan_forward.11}
  #allocation0 [shape = 'u32[]', space=smem, size = 0x4, offset = 0x4, fixed_abs, tag = 'smem constant byte address 0x4 - core index']
  #allocation1 [shape = 'u32[144,128]{1,0:T(1,128)}', space=vmem, size = 0x12000, scoped, tag = 'internal scratch']
  #allocation2 [shape = 'f32[128,128]{1,0:T(8,128)}', space=vmem, size = 0x10000, scoped, tag = 'scratch operand']
  %s0 = inlined_call_operand.vmem [shape: bf16[1,128,128], index: 0, kind: input, shape index: {}]
  %s1 = inlined_call_operand.vmem [shape: bf16[1,128,128], index: 1, kind: input, shape index: {}]
  %s2 = inlined_call_operand.vmem [shape: f32[1,128], index: 2, kind: input, shape index: {}]
  %s3 = inlined_call_operand.vmem [shape: f32[1,128,128], index: 3, kind: output, shape index: {0}]
  %s4 = inlined_call_operand.vmem [shape: f32[1,8,128], index: 4, kind: output, shape index: {1}]
  %5 = xla_tuple %s3, %s4
  %s6 = sld [smem:[#allocation0]]
  $region38: #{attgan_forward.11} parent=0
    _
  %s8 = ssub.s32 1, %s6
  %s9 = scalar_select 0, %s8, %s6
  // Predicated region
  $region2: #{attgan_forward.11} parent=0 // pred_check
    _
  $region3: #{attgan_forward.11} parent=0 // pred_check_branch
    %11 = sbr.rel (0) target = $region5
  $region4: #{attgan_forward.11} parent=0 // pred_region
    _
  $region5: #{attgan_forward.11} parent=0 // pred_fallthru
    _
  // Predicated region
  $region6: #{attgan_forward.11} parent=0 // pred_check
    _
  $region7: #{attgan_forward.11} parent=0 // pred_check_branch
    %13 = sbr.rel (0) target = $region9
  $region8: #{attgan_forward.11} parent=0 // pred_region
    _
  $region9: #{attgan_forward.11} parent=0 // pred_fallthru
    _
  // Predicated region
  $region10: #{attgan_forward.11} parent=0 // pred_check
    _
  $region11: #{attgan_forward.11} parent=0 // pred_check_branch
    %15 = sbr.rel (0) target = $region13
  $region12: #{attgan_forward.11} parent=0 // pred_region
    _
  $region13: #{attgan_forward.11} parent=0 // pred_fallthru
    _
  %p17 = scmp.eq.s32.totalorder 0, 0
  // Predicated region
  $region14: #{attgan_forward.11} parent=0 // pred_check
    %p18 = pneg %p17
  $region15: #{attgan_forward.11} parent=0 // pred_check_branch
    %20 = sbr.rel (%p18) target = $region17
  $region16: #{attgan_forward.11} parent=0 // pred_region
    %21 = vst [vmem:[#allocation2] sm:$0xff] 0.0
    %22 = vst [vmem:[#allocation2 + $0x8] sm:$0xff] 0.0
    %23 = vst [vmem:[#allocation2 + $0x10] sm:$0xff] 0.0
    %24 = vst [vmem:[#allocation2 + $0x18] sm:$0xff] 0.0
    %25 = vst [vmem:[#allocation2 + $0x20] sm:$0xff] 0.0
    %26 = vst [vmem:[#allocation2 + $0x28] sm:$0xff] 0.0
    %27 = vst [vmem:[#allocation2 + $0x30] sm:$0xff] 0.0
    %28 = vst [vmem:[#allocation2 + $0x38] sm:$0xff] 0.0
    %29 = vst [vmem:[#allocation2 + $0x40] sm:$0xff] 0.0
    %30 = vst [vmem:[#allocation2 + $0x48] sm:$0xff] 0.0
    %31 = vst [vmem:[#allocation2 + $0x50] sm:$0xff] 0.0
    %32 = vst [vmem:[#allocation2 + $0x58] sm:$0xff] 0.0
    %33 = vst [vmem:[#allocation2 + $0x60] sm:$0xff] 0.0
    %34 = vst [vmem:[#allocation2 + $0x68] sm:$0xff] 0.0
    %35 = vst [vmem:[#allocation2 + $0x70] sm:$0xff] 0.0
    %36 = vst [vmem:[#allocation2 + $0x78] sm:$0xff] 0.0
  $region17: #{attgan_forward.11} parent=0 // pred_fallthru
    _
  %v37 = vld [vmem:[#allocation2] sm:$0xff]
  %v38 = vld [vmem:[#allocation2 + $0x8] sm:$0xff]
  %v39 = vld [vmem:[#allocation2 + $0x10] sm:$0xff]
  %v40 = vld [vmem:[#allocation2 + $0x18] sm:$0xff]
  %v41 = vld [vmem:[#allocation2 + $0x20] sm:$0xff]
  %v42 = vld [vmem:[#allocation2 + $0x28] sm:$0xff]
  %v43 = vld [vmem:[#allocation2 + $0x30] sm:$0xff]
  %v44 = vld [vmem:[#allocation2 + $0x38] sm:$0xff]
  %v45 = vld [vmem:[#allocation2 + $0x40] sm:$0xff]
  %v46 = vld [vmem:[#allocation2 + $0x48] sm:$0xff]
  %v47 = vld [vmem:[#allocation2 + $0x50] sm:$0xff]
  %v48 = vld [vmem:[#allocation2 + $0x58] sm:$0xff]
  %v49 = vld [vmem:[#allocation2 + $0x60] sm:$0xff]
  %v50 = vld [vmem:[#allocation2 + $0x68] sm:$0xff]
  %v51 = vld [vmem:[#allocation2 + $0x70] sm:$0xff]
  %v52 = vld [vmem:[#allocation2 + $0x78] sm:$0xff]
  %v53 = vld [vmem:[%s0] sm:$0xf]
  %v54 = vld [vmem:[%s0 + $0x4] sm:$0xf]
  %v55 = vld [vmem:[%s0 + $0x8] sm:$0xf]
  %v56 = vld [vmem:[%s0 + $0xc] sm:$0xf]
  %v57 = vld [vmem:[%s0 + $0x10] sm:$0xf]
  %v58 = vld [vmem:[%s0 + $0x14] sm:$0xf]
  %v59 = vld [vmem:[%s0 + $0x18] sm:$0xf]
  %v60 = vld [vmem:[%s0 + $0x1c] sm:$0xf]
  %v61 = vld [vmem:[%s0 + $0x20] sm:$0xf]
  %v62 = vld [vmem:[%s0 + $0x24] sm:$0xf]
  %v63 = vld [vmem:[%s0 + $0x28] sm:$0xf]
  %v64 = vld [vmem:[%s0 + $0x2c] sm:$0xf]
  %v65 = vld [vmem:[%s0 + $0x30] sm:$0xf]
  %v66 = vld [vmem:[%s0 + $0x34] sm:$0xf]
  %v67 = vld [vmem:[%s0 + $0x38] sm:$0xf]
  %v68 = vld [vmem:[%s0 + $0x3c] sm:$0xf]
  %v69 = vld [vmem:[%s1] sm:$0xf]
  %v70 = vld [vmem:[%s1 + $0x4] sm:$0xf]
  %v71 = vld [vmem:[%s1 + $0x8] sm:$0xf]
  %v72 = vld [vmem:[%s1 + $0xc] sm:$0xf]
  %v73 = vld [vmem:[%s1 + $0x10] sm:$0xf]
  %v74 = vld [vmem:[%s1 + $0x14] sm:$0xf]
  %v75 = vld [vmem:[%s1 + $0x18] sm:$0xf]
  %v76 = vld [vmem:[%s1 + $0x1c] sm:$0xf]
  %v77 = vld [vmem:[%s1 + $0x20] sm:$0xf]
  %v78 = vld [vmem:[%s1 + $0x24] sm:$0xf]
  %v79 = vld [vmem:[%s1 + $0x28] sm:$0xf]
  %v80 = vld [vmem:[%s1 + $0x2c] sm:$0xf]
  %v81 = vld [vmem:[%s1 + $0x30] sm:$0xf]
  %v82 = vld [vmem:[%s1 + $0x34] sm:$0xf]
  %v83 = vld [vmem:[%s1 + $0x38] sm:$0xf]
  %v84 = vld [vmem:[%s1 + $0x3c] sm:$0xf]
  %v101 = vunpack.c.l.b16 %v53
  %v102 = vunpack.c.l.b16 %v54
  %v103 = vunpack.c.l.b16 %v55
  %v104 = vunpack.c.l.b16 %v56
  %v105 = vunpack.c.l.b16 %v57
  %v106 = vunpack.c.l.b16 %v58
  %v107 = vunpack.c.l.b16 %v59
  %v108 = vunpack.c.l.b16 %v60
  %v109 = vunpack.c.l.b16 %v61
  %v110 = vunpack.c.l.b16 %v62
  %v111 = vunpack.c.l.b16 %v63
  %v112 = vunpack.c.l.b16 %v64
  %v113 = vunpack.c.l.b16 %v65
  %v114 = vunpack.c.l.b16 %v66
  %v115 = vunpack.c.l.b16 %v67
  %v116 = vunpack.c.l.b16 %v68
  %v117 = vpack.c.b16 %v102, %v101
  %v118 = vpack.c.b16 %v104, %v103
  %v119 = vpack.c.b16 %v106, %v105
  %v120 = vpack.c.b16 %v108, %v107
  %v121 = vpack.c.b16 %v110, %v109
  %v122 = vpack.c.b16 %v112, %v111
  %v123 = vpack.c.b16 %v114, %v113
  %v124 = vpack.c.b16 %v116, %v115
  %v149 = vunpack.c.l.b16 %v69
  %v150 = vunpack.c.l.b16 %v70
  %v151 = vunpack.c.l.b16 %v71
  %v152 = vunpack.c.l.b16 %v72
  %v153 = vunpack.c.l.b16 %v73
  %v154 = vunpack.c.l.b16 %v74
  %v155 = vunpack.c.l.b16 %v75
  %v156 = vunpack.c.l.b16 %v76
  %v157 = vunpack.c.l.b16 %v77
  %v158 = vunpack.c.l.b16 %v78
  %v159 = vunpack.c.l.b16 %v79
  %v160 = vunpack.c.l.b16 %v80
  %v161 = vunpack.c.l.b16 %v81
  %v162 = vunpack.c.l.b16 %v82
  %v163 = vunpack.c.l.b16 %v83
  %v164 = vunpack.c.l.b16 %v84
  %v165 = vpack.c.b16 %v150, %v149
  %v166 = vpack.c.b16 %v152, %v151
  %v167 = vpack.c.b16 %v154, %v153
  %v168 = vpack.c.b16 %v156, %v155
  %v169 = vpack.c.b16 %v158, %v157
  %v170 = vpack.c.b16 %v160, %v159
  %v171 = vpack.c.b16 %v162, %v161
  %v172 = vpack.c.b16 %v164, %v163
  %181 = vmatprep.subr.bf16.mxu0 0
  %182 = vmatpush1.bf16.msra.mxu0 %v172
  %183 = vmatprep.subr.bf16.mxu0 0
  %184 = vmatpush1.bf16.msra.mxu0 %v171
  %185 = vmatprep.subr.bf16.mxu0 0
  %186 = vmatpush1.bf16.msra.mxu0 %v170
  %187 = vmatprep.subr.bf16.mxu0 0
  %188 = vmatpush1.bf16.msra.mxu0 %v169
  %189 = vmatprep.subr.bf16.mxu0 0
  %190 = vmatpush1.bf16.msra.mxu0 %v168
  %191 = vmatprep.subr.bf16.mxu0 0
  %192 = vmatpush1.bf16.msra.mxu0 %v167
  %193 = vmatprep.subr.bf16.mxu0 0
  %194 = vmatpush1.bf16.msra.mxu0 %v166
  %195 = vmatprep.subr.bf16.mxu0 0
  %196 = vmatpush1.bf16.msra.mxu0 %v165
  %197 = vmatprep.subr.bf16.mxu0 0
  %198 = vmatpush2.bf16.msra.mxu0 0
  %199 = vmatprep.subr.bf16.mxu0 0
  %200 = vmatpush2.bf16.msra.mxu0 0
  %201 = vmatprep.subr.bf16.mxu0 0
  %202 = vmatpush2.bf16.msra.mxu0 0
  %203 = vmatprep.subr.bf16.mxu0 0
  %204 = vmatpush2.bf16.msra.mxu0 0
  %205 = vmatprep.subr.bf16.mxu0 0
  %206 = vmatpush2.bf16.msra.mxu0 0
  %207 = vmatprep.subr.bf16.mxu0 0
  %208 = vmatpush2.bf16.msra.mxu0 0
  %209 = vmatprep.subr.bf16.mxu0 0
  %210 = vmatpush2.bf16.msra.mxu0 0
  %211 = vmatprep.subr.bf16.mxu0 0
  %212 = vmatpush2.bf16.msra.mxu0 0
  %213 = vmatprep.mubr.bf16.mxu0 0
  %214 = vmatmul.mubr.bf16.gmra.mxu0 %v117
  %v215 = vpop.f32.mrf.mxu0
  %v216 = vadd.f32 0.0, %v215
  %v217 = vpop.f32.mrf.mxu0
  %v218 = vpop.f32.mrf.mxu0
  %v219 = vadd.f32 0.0, %v218
  %v220 = vpop.f32.mrf.mxu0
  %221 = vmatprep.mubr.bf16.mxu0 0
  %222 = vmatmul.mubr.bf16.gmra.mxu0 %v118
  %v223 = vpop.f32.mrf.mxu0
  %v224 = vadd.f32 0.0, %v223
  %v225 = vpop.f32.mrf.mxu0
  %v226 = vpop.f32.mrf.mxu0
  %v227 = vadd.f32 0.0, %v226
  %v228 = vpop.f32.mrf.mxu0
  %229 = vmatprep.mubr.bf16.mxu0 0
  %230 = vmatmul.mubr.bf16.gmra.mxu0 %v119
  %v231 = vpop.f32.mrf.mxu0
  %v232 = vadd.f32 0.0, %v231
  %v233 = vpop.f32.mrf.mxu0
  %v234 = vpop.f32.mrf.mxu0
  %v235 = vadd.f32 0.0, %v234
  %v236 = vpop.f32.mrf.mxu0
  %237 = vmatprep.mubr.bf16.mxu0 0
  %238 = vmatmul.mubr.bf16.gmra.mxu0 %v120
  %v239 = vpop.f32.mrf.mxu0
  %v240 = vadd.f32 0.0, %v239
  %v241 = vpop.f32.mrf.mxu0
  %v242 = vpop.f32.mrf.mxu0
  %v243 = vadd.f32 0.0, %v242
  %v244 = vpop.f32.mrf.mxu0
  %245 = vmatprep.mubr.bf16.mxu0 0
  %246 = vmatmul.mubr.bf16.gmra.mxu0 %v121
  %v247 = vpop.f32.mrf.mxu0
  %v248 = vadd.f32 0.0, %v247
  %v249 = vpop.f32.mrf.mxu0
  %v250 = vpop.f32.mrf.mxu0
  %v251 = vadd.f32 0.0, %v250
  %v252 = vpop.f32.mrf.mxu0
  %253 = vmatprep.mubr.bf16.mxu0 0
  %254 = vmatmul.mubr.bf16.gmra.mxu0 %v122
  %v255 = vpop.f32.mrf.mxu0
  %v256 = vadd.f32 0.0, %v255
  %v257 = vpop.f32.mrf.mxu0
  %v258 = vpop.f32.mrf.mxu0
  %v259 = vadd.f32 0.0, %v258
  %v260 = vpop.f32.mrf.mxu0
  %261 = vmatprep.mubr.bf16.mxu0 0
  %262 = vmatmul.mubr.bf16.gmra.mxu0 %v123
  %v263 = vpop.f32.mrf.mxu0
  %v264 = vadd.f32 0.0, %v263
  %v265 = vpop.f32.mrf.mxu0
  %v266 = vpop.f32.mrf.mxu0
  %v267 = vadd.f32 0.0, %v266
  %v268 = vpop.f32.mrf.mxu0
  %269 = vmatprep.mubr.bf16.mxu0 0
  %270 = vmatmul.mubr.bf16.gmra.mxu0 %v124
  %v271 = vpop.f32.mrf.mxu0
  %v272 = vadd.f32 0.0, %v271
  %v273 = vpop.f32.mrf.mxu0
  %v274 = vpop.f32.mrf.mxu0
  %v275 = vadd.f32 0.0, %v274
  %v276 = vpop.f32.mrf.mxu0
  %277 = vdwg.mxu0
  %v278 = vadd.f32 %v37, %v216
  %v279 = vadd.f32 %v38, %v219
  %v280 = vadd.f32 %v39, %v224
  %v281 = vadd.f32 %v40, %v227
  %v282 = vadd.f32 %v41, %v232
  %v283 = vadd.f32 %v42, %v235
  %v284 = vadd.f32 %v43, %v240
  %v285 = vadd.f32 %v44, %v243
  %v286 = vadd.f32 %v45, %v248
  %v287 = vadd.f32 %v46, %v251
  %v288 = vadd.f32 %v47, %v256
  %v289 = vadd.f32 %v48, %v259
  %v290 = vadd.f32 %v49, %v264
  %v291 = vadd.f32 %v50, %v267
  %v292 = vadd.f32 %v51, %v272
  %v293 = vadd.f32 %v52, %v275
  %294 = vst [vmem:[#allocation2] sm:$0xff] %v278
  %295 = vst [vmem:[#allocation2 + $0x8] sm:$0xff] %v279
  %296 = vst [vmem:[#allocation2 + $0x10] sm:$0xff] %v280
  %297 = vst [vmem:[#allocation2 + $0x18] sm:$0xff] %v281
  %298 = vst [vmem:[#allocation2 + $0x20] sm:$0xff] %v282
  %299 = vst [vmem:[#allocation2 + $0x28] sm:$0xff] %v283
  %300 = vst [vmem:[#allocation2 + $0x30] sm:$0xff] %v284
  %301 = vst [vmem:[#allocation2 + $0x38] sm:$0xff] %v285
  %302 = vst [vmem:[#allocation2 + $0x40] sm:$0xff] %v286
  %303 = vst [vmem:[#allocation2 + $0x48] sm:$0xff] %v287
  %304 = vst [vmem:[#allocation2 + $0x50] sm:$0xff] %v288
  %305 = vst [vmem:[#allocation2 + $0x58] sm:$0xff] %v289
  %306 = vst [vmem:[#allocation2 + $0x60] sm:$0xff] %v290
  %307 = vst [vmem:[#allocation2 + $0x68] sm:$0xff] %v291
  %308 = vst [vmem:[#allocation2 + $0x70] sm:$0xff] %v292
  %309 = vst [vmem:[#allocation2 + $0x78] sm:$0xff] %v293
  // Predicated region
  $region18: #{attgan_forward.11} parent=0 // pred_check
    %p310 = pneg %p17
  $region19: #{attgan_forward.11} parent=0 // pred_check_branch
    %312 = sbr.rel (%p310) target = $region21
  $region20: #{attgan_forward.11} parent=0 // pred_region
    %v313 = vld [vmem:[#allocation2] sm:$0xff]
    %v314 = vld [vmem:[#allocation2 + $0x8] sm:$0xff]
    %v315 = vld [vmem:[#allocation2 + $0x10] sm:$0xff]
    %v316 = vld [vmem:[#allocation2 + $0x18] sm:$0xff]
    %v317 = vld [vmem:[#allocation2 + $0x20] sm:$0xff]
    %v318 = vld [vmem:[#allocation2 + $0x28] sm:$0xff]
    %v319 = vld [vmem:[#allocation2 + $0x30] sm:$0xff]
    %v320 = vld [vmem:[#allocation2 + $0x38] sm:$0xff]
    %v321 = vld [vmem:[#allocation2 + $0x40] sm:$0xff]
    %v322 = vld [vmem:[#allocation2 + $0x48] sm:$0xff]
    %v323 = vld [vmem:[#allocation2 + $0x50] sm:$0xff]
    %v324 = vld [vmem:[#allocation2 + $0x58] sm:$0xff]
    %v325 = vld [vmem:[#allocation2 + $0x60] sm:$0xff]
    %v326 = vld [vmem:[#allocation2 + $0x68] sm:$0xff]
    %v327 = vld [vmem:[#allocation2 + $0x70] sm:$0xff]
    %v328 = vld [vmem:[#allocation2 + $0x78] sm:$0xff]
    %v329 = vadd.f32 %v313, %v314
    %v330 = vadd.f32 %v329, %v315
    %v331 = vadd.f32 %v330, %v316
    %v332 = vadd.f32 %v331, %v317
    %v333 = vadd.f32 %v332, %v318
    %v334 = vadd.f32 %v333, %v319
    %v335 = vadd.f32 %v334, %v320
    %v336 = vadd.f32 %v335, %v321
    %v337 = vadd.f32 %v336, %v322
    %v338 = vadd.f32 %v337, %v323
    %v339 = vadd.f32 %v338, %v324
    %v340 = vadd.f32 %v339, %v325
    %v341 = vadd.f32 %v340, %v326
    %v342 = vadd.f32 %v341, %v327
    %v343 = vadd.f32 %v342, %v328
    %v344 = vrot.slane %v343, 4
    %v345 = vadd.f32 %v343, %v344
    %v346 = vrot.slane %v345, 2
    %v347 = vadd.f32 %v345, %v346
    %v348 = vrot.slane %v347, 1
    %v349 = vadd.f32 %v347, %v348
    %v350 = vmul.f32 %v313, %v313
    %v351 = vmul.f32 %v314, %v314
    %v352 = vmul.f32 %v315, %v315
    %v353 = vmul.f32 %v316, %v316
    %v354 = vmul.f32 %v317, %v317
    %v355 = vmul.f32 %v318, %v318
    %v356 = vmul.f32 %v319, %v319
    %v357 = vmul.f32 %v320, %v320
    %v358 = vmul.f32 %v321, %v321
    %v359 = vmul.f32 %v322, %v322
    %v360 = vmul.f32 %v323, %v323
    %v361 = vmul.f32 %v324, %v324
    %v362 = vmul.f32 %v325, %v325
    %v363 = vmul.f32 %v326, %v326
    %v364 = vmul.f32 %v327, %v327
    %v365 = vmul.f32 %v328, %v328
    %v366 = vadd.f32 %v350, %v351
    %v367 = vadd.f32 %v366, %v352
    %v368 = vadd.f32 %v367, %v353
    %v369 = vadd.f32 %v368, %v354
    %v370 = vadd.f32 %v369, %v355
    %v371 = vadd.f32 %v370, %v356
    %v372 = vadd.f32 %v371, %v357
    %v373 = vadd.f32 %v372, %v358
    %v374 = vadd.f32 %v373, %v359
    %v375 = vadd.f32 %v374, %v360
    %v376 = vadd.f32 %v375, %v361
    %v377 = vadd.f32 %v376, %v362
    %v378 = vadd.f32 %v377, %v363
    %v379 = vadd.f32 %v378, %v364
    %v380 = vadd.f32 %v379, %v365
    %v381 = vrot.slane %v380, 4
    %v382 = vadd.f32 %v380, %v381
    %v383 = vrot.slane %v382, 2
    %v384 = vadd.f32 %v382, %v383
    %v385 = vrot.slane %v384, 1
    %v386 = vadd.f32 %v384, %v385
    %vm387 = vcmask 1040384
    %v388 = vsel %vm387, %v349, %v386
    %vm389 = vcmask 1041408
    %v390 = vsel %vm389, %v388, 0.0
    %391 = vst [vmem:[%s4] sm:$0xff] %v390
    %v392 = vld [vmem:[%s2] sm:$0x1]
    %v394 = vlaneseq
    %v395 = vshrl.u32 %v394, 7
    %v396 = vsub.s32 0, %v395
    %v397 = vrot.slane %v392, %v396
    %v399 = vadd.f32 %v313, %v397
    %v400 = vadd.f32 %v314, %v397
    %v401 = vadd.f32 %v315, %v397
    %v402 = vadd.f32 %v316, %v397
    %v403 = vadd.f32 %v317, %v397
    %v404 = vadd.f32 %v318, %v397
    %v405 = vadd.f32 %v319, %v397
    %v406 = vadd.f32 %v320, %v397
    %v407 = vadd.f32 %v321, %v397
    %v408 = vadd.f32 %v322, %v397
    %v409 = vadd.f32 %v323, %v397
    %v410 = vadd.f32 %v324, %v397
    %v411 = vadd.f32 %v325, %v397
    %v412 = vadd.f32 %v326, %v397
    %v413 = vadd.f32 %v327, %v397
    %v414 = vadd.f32 %v328, %v397
    %415 = vst [vmem:[%s3] sm:$0xff] %v399
    %416 = vst [vmem:[%s3 + $0x8] sm:$0xff] %v400
    %417 = vst [vmem:[%s3 + $0x10] sm:$0xff] %v401
    %418 = vst [vmem:[%s3 + $0x18] sm:$0xff] %v402
    %419 = vst [vmem:[%s3 + $0x20] sm:$0xff] %v403
    %420 = vst [vmem:[%s3 + $0x28] sm:$0xff] %v404
    %421 = vst [vmem:[%s3 + $0x30] sm:$0xff] %v405
    %422 = vst [vmem:[%s3 + $0x38] sm:$0xff] %v406
    %423 = vst [vmem:[%s3 + $0x40] sm:$0xff] %v407
    %424 = vst [vmem:[%s3 + $0x48] sm:$0xff] %v408
    %425 = vst [vmem:[%s3 + $0x50] sm:$0xff] %v409
    %426 = vst [vmem:[%s3 + $0x58] sm:$0xff] %v410
    %427 = vst [vmem:[%s3 + $0x60] sm:$0xff] %v411
    %428 = vst [vmem:[%s3 + $0x68] sm:$0xff] %v412
    %429 = vst [vmem:[%s3 + $0x70] sm:$0xff] %v413
    %430 = vst [vmem:[%s3 + $0x78] sm:$0xff] %v414
  $region21: #{attgan_forward.11} parent=0 // pred_fallthru
    _
  // Predicated region
  $region22: #{attgan_forward.11} parent=0 // pred_check
    _
  $region23: #{attgan_forward.11} parent=0 // pred_check_branch
    %432 = sbr.rel (0) target = $region25
  $region24: #{attgan_forward.11} parent=0 // pred_region
    _
  $region25: #{attgan_forward.11} parent=0 // pred_fallthru
    _
  // Predicated region
  $region26: #{attgan_forward.11} parent=0 // pred_check
    _
  $region27: #{attgan_forward.11} parent=0 // pred_check_branch
    %434 = sbr.rel (0) target = $region29
  $region28: #{attgan_forward.11} parent=0 // pred_region
    _
  $region29: #{attgan_forward.11} parent=0 // pred_fallthru
    _
  // Predicated region
  $region30: #{attgan_forward.11} parent=0 // pred_check
    _
  $region31: #{attgan_forward.11} parent=0 // pred_check_branch
    %436 = sbr.rel (0) target = $region33
  $region32: #{attgan_forward.11} parent=0 // pred_region
    _
  $region33: #{attgan_forward.11} parent=0 // pred_fallthru
    _
  // Predicated region
  $region34: #{attgan_forward.11} parent=0 // pred_check
    _
  $region35: #{attgan_forward.11} parent=0 // pred_check_branch
    %438 = sbr.rel (0) target = $region37
  $region36: #{attgan_forward.11} parent=0 // pred_region
    _
  $region37: #{attgan_forward.11} parent=0 // pred_fallthru
    _

// kernel: attgan_forward.15
$region0: #{attgan_forward.15}
  #allocation0 [shape = 'u32[]', space=smem, size = 0x4, offset = 0x4, fixed_abs, tag = 'smem constant byte address 0x4 - core index']
  #allocation1 [shape = 'u32[144,128]{1,0:T(1,128)}', space=vmem, size = 0x12000, scoped, tag = 'internal scratch']
  #allocation2 [shape = 'f32[128,128]{1,0:T(8,128)}', space=vmem, size = 0x10000, scoped, tag = 'scratch operand']
  %s0 = inlined_call_operand.vmem [shape: bf16[1,128,256], index: 0, kind: input, shape index: {}]
  %s1 = inlined_call_operand.vmem [shape: bf16[1,256,128], index: 1, kind: input, shape index: {}]
  %s2 = inlined_call_operand.vmem [shape: f32[1,128], index: 2, kind: input, shape index: {}]
  %s3 = inlined_call_operand.vmem [shape: f32[1,128,128], index: 3, kind: output, shape index: {0}]
  %s4 = inlined_call_operand.vmem [shape: f32[1,8,128], index: 4, kind: output, shape index: {1}]
  %5 = xla_tuple %s3, %s4
  %s6 = sld [smem:[#allocation0]]
  $region102: #{attgan_forward.15} parent=0
    _
  %s8 = ssub.s32 1, %s6
  %s9 = scalar_select 0, %s8, %s6
  $region1: #{attgan_forward.15} parent=0
    #allocation3 [shape = 'u8[65536]{0}', space=vmem, size = 0x10000, scoped, tag = 'input window, operand 0']
    loop: start=0, step=1, limit=4
    $region2: #{attgan_forward.15} parent=1 // loop_pre_header
      _
    $region3: #{attgan_forward.15} parent=1 // loop_header
      %s11 = sphi 0, %s15
      %p12 = scmp.ge.s32.totalorder %s11, 4
      %s18 = sphi 0, %s44
      %s19 = sphi 0, %s40
      %s20 = sphi 0, %s36
      %s21 = sphi 0, %s32
      %s22 = sphi 0, %s18
      %s23 = sphi 0, %s19
      %s24 = sphi 0, %s20
      %s25 = sphi 0, %s21
      %s26 = sphi 0, %s22
      %s27 = sphi 0, %s23
      %s28 = sphi 0, %s24
      %s29 = sphi 0, %s25
      %s51 = sphi 0, %s53
      %s54 = sphi 0, %s51
      %s55 = sphi 0, %s54
      %s71 = sphi 0, %s55
      %s81 = sphi 0, %s83
      %s84 = sphi 0, %s81
      %s85 = sphi 0, %s84
      %s101 = sphi 0, %s85
      %s107 = sphi 0, %s109
      %s110 = sphi 0, %s107
      %s111 = sphi 0, %s110
      %s127 = sphi 0, %s111
      %s137 = sphi 0, %s139
      %s140 = sphi 0, %s137
      %s141 = sphi 0, %s140
      %s157 = sphi 0, %s141
      %s167 = sphi 0, %s169
      %s170 = sphi 0, %s167
      %s171 = sphi 0, %s170
      %s187 = sphi 0, %s171
    $region4: #{attgan_forward.15} parent=1 // loop_header_branch
      %14 = sbr.rel (%p12) target = $region8
    $region5: #{attgan_forward.15} parent=1 // loop_body
      %s16 = ssub.s32 %s11, 1
      %s17 = ssub.s32 %s11, 2
      %s30 = sadd.s32 1, %s21
      %p31 = scmp.ge.s32.totalorder %s30, 2
      %s32 = scalar_select %p31, 0, %s30
      %s33 = sadd.s32 1, %s20
      %s34 = scalar_select %p31, %s33, %s20
      %p35 = scmp.ge.s32.totalorder %s34, 1
      %s36 = scalar_select %p35, 0, %s34
      %s37 = sadd.s32 1, %s19
      %s38 = scalar_select %p35, %s37, %s19
      %p39 = scmp.ge.s32.totalorder %s38, 1
      %s40 = scalar_select %p39, 0, %s38
      %s41 = sadd.s32 1, %s18
      %s42 = scalar_select %p39, %s41, %s18
      %p43 = scmp.ge.s32.totalorder %s42, 1
      %s44 = scalar_select %p43, 0, %s42
      %s45 = ssub.s32 %s18, %s44
      %s46 = ssub.s32 %s19, %s40
      %s47 = sor.u32 %s45, %s46
      %s48 = ssub.s32 %s21, %s32
      %s49 = sor.u32 %s47, %s48
      %p50 = scmp.eq.s32.totalorder %s49, 0
      %s52 = sadd.s32 %s51, 1
      %s53 = scalar_select %p50, %s51, %s52
      %p56 = pneg %p50
      %p57 = scmp.eq.s32.totalorder %s11, 1
      %p58 = por %p56, %p57
      %p59 = scmp.ne.s32.totalorder %s51, %s54
      %p60 = scmp.eq.s32.totalorder %s11, 0
      %p61 = por %p59, %p60
      %p62 = scmp.ne.s32.totalorder %s51, %s54
      %p63 = scmp.eq.s32.totalorder %s16, 1
      %p64 = por %p62, %p63
      %p65 = scmp.ne.s32.totalorder %s54, %s55
      %p66 = scmp.eq.s32.totalorder %s16, 0
      %p67 = por %p65, %p66
      %p68 = scmp.ne.s32.totalorder %s54, %s55
      %p69 = scmp.eq.s32.totalorder %s17, 1
      %p70 = por %p68, %p69
      %p72 = scmp.ne.s32.totalorder %s55, %s71
      %p73 = scmp.eq.s32.totalorder %s17, 0
      %p74 = por %p72, %p73
      %s75 = ssub.s32 %s18, %s44
      %s76 = ssub.s32 %s21, %s32
      %s77 = sor.u32 %s75, %s76
      %s78 = ssub.s32 %s20, %s36
      %s79 = sor.u32 %s77, %s78
      %p80 = scmp.eq.s32.totalorder %s79, 0
      %s82 = sadd.s32 %s81, 1
      %s83 = scalar_select %p80, %s81, %s82
      %p86 = pneg %p80
      %p87 = scmp.eq.s32.totalorder %s11, 1
      %p88 = por %p86, %p87
      %p89 = scmp.ne.s32.totalorder %s81, %s84
      %p90 = scmp.eq.s32.totalorder %s11, 0
      %p91 = por %p89, %p90
      %p92 = scmp.ne.s32.totalorder %s81, %s84
      %p93 = scmp.eq.s32.totalorder %s16, 1
      %p94 = por %p92, %p93
      %p95 = scmp.ne.s32.totalorder %s84, %s85
      %p96 = scmp.eq.s32.totalorder %s16, 0
      %p97 = por %p95, %p96
      %p98 = scmp.ne.s32.totalorder %s84, %s85
      %p99 = scmp.eq.s32.totalorder %s17, 1
      %p100 = por %p98, %p99
      %p102 = scmp.ne.s32.totalorder %s85, %s101
      %p103 = scmp.eq.s32.totalorder %s17, 0
      %p104 = por %p102, %p103
      %s105 = ssub.s32 %s20, %s36
      %p106 = scmp.eq.s32.totalorder %s105, 0
      %s108 = sadd.s32 %s107, 1
      %s109 = scalar_select %p106, %s107, %s108
      %p112 = pneg %p106
      %p113 = scmp.eq.s32.totalorder %s11, 1
      %p114 = por %p112, %p113
      %p115 = scmp.ne.s32.totalorder %s107, %s110
      %p116 = scmp.eq.s32.totalorder %s11, 0
      %p117 = por %p115, %p116
      %p118 = scmp.ne.s32.totalorder %s107, %s110
      %p119 = scmp.eq.s32.totalorder %s16, 1
      %p120 = por %p118, %p119
      %p121 = scmp.ne.s32.totalorder %s110, %s111
      %p122 = scmp.eq.s32.totalorder %s16, 0
      %p123 = por %p121, %p122
      %p124 = scmp.ne.s32.totalorder %s110, %s111
      %p125 = scmp.eq.s32.totalorder %s17, 1
      %p126 = por %p124, %p125
      %p128 = scmp.ne.s32.totalorder %s111, %s127
      %p129 = scmp.eq.s32.totalorder %s17, 0
      %p130 = por %p128, %p129
      %s131 = ssub.s32 %s18, %s44
      %s132 = ssub.s32 %s19, %s40
      %s133 = sor.u32 %s131, %s132
      %s134 = ssub.s32 %s20, %s36
      %s135 = sor.u32 %s133, %s134
      %p136 = scmp.eq.s32.totalorder %s135, 0
      %s138 = sadd.s32 %s137, 1
      %s139 = scalar_select %p136, %s137, %s138
      %p142 = pneg %p136
      %p143 = scmp.eq.s32.totalorder %s11, 1
      %p144 = por %p142, %p143
      %p145 = scmp.ne.s32.totalorder %s137, %s140
      %p146 = scmp.eq.s32.totalorder %s11, 0
      %p147 = por %p145, %p146
      %p148 = scmp.ne.s32.totalorder %s137, %s140
      %p149 = scmp.eq.s32.totalorder %s16, 1
      %p150 = por %p148, %p149
      %p151 = scmp.ne.s32.totalorder %s140, %s141
      %p152 = scmp.eq.s32.totalorder %s16, 0
      %p153 = por %p151, %p152
      %p154 = scmp.ne.s32.totalorder %s140, %s141
      %p155 = scmp.eq.s32.totalorder %s17, 1
      %p156 = por %p154, %p155
      %p158 = scmp.ne.s32.totalorder %s141, %s157
      %p159 = scmp.eq.s32.totalorder %s17, 0
      %p160 = por %p158, %p159
      %s161 = ssub.s32 %s18, %s44
      %s162 = ssub.s32 %s19, %s40
      %s163 = sor.u32 %s161, %s162
      %s164 = ssub.s32 %s20, %s36
      %s165 = sor.u32 %s163, %s164
      %p166 = scmp.eq.s32.totalorder %s165, 0
      %s168 = sadd.s32 %s167, 1
      %s169 = scalar_select %p166, %s167, %s168
      %p172 = pneg %p166
      %p173 = scmp.eq.s32.totalorder %s11, 1
      %p174 = por %p172, %p173
      %p175 = scmp.ne.s32.totalorder %s167, %s170
      %p176 = scmp.eq.s32.totalorder %s11, 0
      %p177 = por %p175, %p176
      %p178 = scmp.ne.s32.totalorder %s167, %s170
      %p179 = scmp.eq.s32.totalorder %s16, 1
      %p180 = por %p178, %p179
      %p181 = scmp.ne.s32.totalorder %s170, %s171
      %p182 = scmp.eq.s32.totalorder %s16, 0
      %p183 = por %p181, %p182
      %p184 = scmp.ne.s32.totalorder %s170, %s171
      %p185 = scmp.eq.s32.totalorder %s17, 1
      %p186 = por %p184, %p185
      %p188 = scmp.ne.s32.totalorder %s171, %s187
      %p189 = scmp.eq.s32.totalorder %s17, 0
      %p190 = por %p188, %p189
      %p191 = scmp.le.s32.totalorder 1, %s11
      %p192 = scmp.lt.s32.totalorder %s11, 3
      %p193 = pnand %p191, %p192
      %p194 = pneg %p193
      // Predicated region
      $region9: #{attgan_forward.15} parent=5 // pred_check
        _
      $region10: #{attgan_forward.15} parent=5 // pred_check_branch
        %196 = sbr.rel (%p193) target = $region12
      $region11: #{attgan_forward.15} parent=5 // pred_region
        %s197 = ssub.s32 %s11, 1
        // Predicated region
        $region13: #{attgan_forward.15} parent=11 // pred_check
          %p198 = pneg %p123
        $region14: #{attgan_forward.15} parent=11 // pred_check_branch
          %200 = sbr.rel (%p198) target = $region16
        $region15: #{attgan_forward.15} parent=11 // pred_region
          %p201 = scmp.lt.s32.totalorder %s24, 0
          %s202 = scalar_select %p201, %s24, 0
          %s203 = scalar_lea.vmem %s2, %s202
        $region16: #{attgan_forward.15} parent=11 // pred_fallthru
          _
      $region12: #{attgan_forward.15} parent=5 // pred_fallthru
        _
      %p204 = scmp.lt.s32.totalorder %s11, 2
      // Predicated region
      $region17: #{attgan_forward.15} parent=5 // pred_check
        %p205 = pneg %p204
      $region18: #{attgan_forward.15} parent=5 // pred_check_branch
        %207 = sbr.rel (%p205) target = $region20
      $region19: #{attgan_forward.15} parent=5 // pred_region
        // Predicated region
        $region21: #{attgan_forward.15} parent=19 // pred_check
          %p208 = pneg %p61
        $region22: #{attgan_forward.15} parent=19 // pred_check_branch
          %210 = sbr.rel (%p208) target = $region24
        $region23: #{attgan_forward.15} parent=19 // pred_region
          %s211 = sand.u32 %s51, 1
          %s212 = sand.u32 %s51, 1
          %s213 = smul.addr %s212, 64
          %s214 = scalar_lea.vmem [#allocation3], %s213
          %s215 = smul.u32 16, %s19
          %s216 = smul.addr %s215, 2
          %s217 = sadd.s32 %s21, %s216
          %s218 = smul.addr %s18, 32
          %s219 = sadd.s32 %s217, %s218
          %s220 = smul.addr %s219, 4
          %s221 = scalar_lea.vmem %s0, %s220
          // Predicated region
          $region25: #{attgan_forward.15} parent=23 // pred_check
            _
          $region26: #{attgan_forward.15} parent=23 // pred_check_branch
            %223 = sbr.rel (0) target = $region28
          $region27: #{attgan_forward.15} parent=23 // pred_region
            // Predicated region
            $region29: #{attgan_forward.15} parent=27 // pred_check
              _
            $region30: #{attgan_forward.15} parent=27 // pred_check_branch
              %225 = sbr.rel target = $region32
            $region31: #{attgan_forward.15} parent=27 // pred_region
              // Predicated region
              $region44: #{attgan_forward.15} parent=31 // pred_check
                _
              $region45: #{attgan_forward.15} parent=31 // pred_check_branch
                %271 = sbr.rel (0) target = $region47
              $region46: #{attgan_forward.15} parent=31 // pred_region
                loop: start=0, step=1, limit=1
                $region48: #{attgan_forward.15} parent=46 // loop_pre_header
                  _
                $region49: #{attgan_forward.15} parent=46 // loop_header
                  %s273 = sphi 0, %s277
                  %p274 = scmp.ge.s32.totalorder %s273, 1
                  %s278 = sphi %s221, %s221
                  %s279 = sphi %s214, %s214
                $region50: #{attgan_forward.15} parent=46 // loop_header_branch
                  %276 = sbr.rel (%p274) target = $region54
                $region51: #{attgan_forward.15} parent=46 // loop_body
                  _
                $region52: #{attgan_forward.15} parent=46 // loop_footer
                  %s277 = sadd.s32 1, %s273
                $region53: #{attgan_forward.15} parent=46 // loop_footer_branch
                  %272 = sbr.rel target = $region49
                $region54: #{attgan_forward.15} parent=46 // loop_exit
                  _
                %s281 = ssub.s32 16, 1
                loop: start=0, step=1, limit=1
                $region55: #{attgan_forward.15} parent=46 // loop_pre_header
                  _
                $region56: #{attgan_forward.15} parent=46 // loop_header
                  %s283 = sphi 0, %s287
                  %p284 = scmp.ge.s32.totalorder %s283, 1
                  %s288 = sphi %s221, %s221
                  %s289 = sphi %s214, %s214
                $region57: #{attgan_forward.15} parent=46 // loop_header_branch
                  %286 = sbr.rel (%p284) target = $region61
                $region58: #{attgan_forward.15} parent=46 // loop_body
                  %v290 = vld [vmem:[%s288] sm:%s281]
                  %291 = vst [vmem:[%s289] sm:%s281] %v290
                  %v292 = vld [vmem:[%s288 + $0x8] sm:%s281]
                  %293 = vst [vmem:[%s289 + $0x4] sm:%s281] %v292
                  %v294 = vld [vmem:[%s288 + $0x10] sm:%s281]
                  %295 = vst [vmem:[%s289 + $0x8] sm:%s281] %v294
                  %v296 = vld [vmem:[%s288 + $0x18] sm:%s281]
                  %297 = vst [vmem:[%s289 + $0xc] sm:%s281] %v296
                  %v298 = vld [vmem:[%s288 + $0x20] sm:%s281]
                  %299 = vst [vmem:[%s289 + $0x10] sm:%s281] %v298
                  %v300 = vld [vmem:[%s288 + $0x28] sm:%s281]
                  %301 = vst [vmem:[%s289 + $0x14] sm:%s281] %v300
                  %v302 = vld [vmem:[%s288 + $0x30] sm:%s281]
                  %303 = vst [vmem:[%s289 + $0x18] sm:%s281] %v302
                  %v304 = vld [vmem:[%s288 + $0x38] sm:%s281]
                  %305 = vst [vmem:[%s289 + $0x1c] sm:%s281] %v304
                  %v306 = vld [vmem:[%s288 + $0x40] sm:%s281]
                  %307 = vst [vmem:[%s289 + $0x20] sm:%s281] %v306
                  %v308 = vld [vmem:[%s288 + $0x48] sm:%s281]
                  %309 = vst [vmem:[%s289 + $0x24] sm:%s281] %v308
                  %v310 = vld [vmem:[%s288 + $0x50] sm:%s281]
                  %311 = vst [vmem:[%s289 + $0x28] sm:%s281] %v310
                  %v312 = vld [vmem:[%s288 + $0x58] sm:%s281]
                  %313 = vst [vmem:[%s289 + $0x2c] sm:%s281] %v312
                  %v314 = vld [vmem:[%s288 + $0x60] sm:%s281]
                  %315 = vst [vmem:[%s289 + $0x30] sm:%s281] %v314
                  %v316 = vld [vmem:[%s288 + $0x68] sm:%s281]
                  %317 = vst [vmem:[%s289 + $0x34] sm:%s281] %v316
                  %v318 = vld [vmem:[%s288 + $0x70] sm:%s281]
                  %319 = vst [vmem:[%s289 + $0x38] sm:%s281] %v318
                  %v320 = vld [vmem:[%s288 + $0x78] sm:%s281]
                  %321 = vst [vmem:[%s289 + $0x3c] sm:%s281] %v320
                $region59: #{attgan_forward.15} parent=46 // loop_footer
                  %s287 = sadd.s32 1, %s283
                $region60: #{attgan_forward.15} parent=46 // loop_footer_branch
                  %282 = sbr.rel target = $region56
                $region61: #{attgan_forward.15} parent=46 // loop_exit
                  _
              $region47: #{attgan_forward.15} parent=31 // pred_fallthru
                _
            $region32: #{attgan_forward.15} parent=27 // pred_fallthru
              _
            // Predicated region
            $region33: #{attgan_forward.15} parent=27 // pred_check
              _
            $region34: #{attgan_forward.15} parent=27 // pred_check_branch
              %227 = sbr.rel (0) target = $region36
            $region35: #{attgan_forward.15} parent=27 // pred_region
              %s229 = ssub.s32 16, 1
              loop: start=0, step=1, limit=1
              $region37: #{attgan_forward.15} parent=35 // loop_pre_header
                _
              $region38: #{attgan_forward.15} parent=35 // loop_header
                %s231 = sphi 0, %s235
                %p232 = scmp.ge.s32.totalorder %s231, 1
                %s236 = sphi %s221, %s221
                %s237 = sphi %s214, %s214
              $region39: #{attgan_forward.15} parent=35 // loop_header_branch
                %234 = sbr.rel (%p232) target = $region43
              $region40: #{attgan_forward.15} parent=35 // loop_body
                %v238 = vld [vmem:[%s236] sm:%s229]
                %239 = vst [vmem:[%s237] sm:%s229] %v238
                %v240 = vld [vmem:[%s236 + $0x8] sm:%s229]
                %241 = vst [vmem:[%s237 + $0x4] sm:%s229] %v240
                %v242 = vld [vmem:[%s236 + $0x10] sm:%s229]
                %243 = vst [vmem:[%s237 + $0x8] sm:%s229] %v242
                %v244 = vld [vmem:[%s236 + $0x18] sm:%s229]
                %245 = vst [vmem:[%s237 + $0xc] sm:%s229] %v244
                %v246 = vld [vmem:[%s236 + $0x20] sm:%s229]
                %247 = vst [vmem:[%s237 + $0x10] sm:%s229] %v246
                %v248 = vld [vmem:[%s236 + $0x28] sm:%s229]
                %249 = vst [vmem:[%s237 + $0x14] sm:%s229] %v248
                %v250 = vld [vmem:[%s236 + $0x30] sm:%s229]
                %251 = vst [vmem:[%s237 + $0x18] sm:%s229] %v250
                %v252 = vld [vmem:[%s236 + $0x38] sm:%s229]
                %253 = vst [vmem:[%s237 + $0x1c] sm:%s229] %v252
                %v254 = vld [vmem:[%s236 + $0x40] sm:%s229]
                %255 = vst [vmem:[%s237 + $0x20] sm:%s229] %v254
                %v256 = vld [vmem:[%s236 + $0x48] sm:%s229]
                %257 = vst [vmem:[%s237 + $0x24] sm:%s229] %v256
                %v258 = vld [vmem:[%s236 + $0x50] sm:%s229]
                %259 = vst [vmem:[%s237 + $0x28] sm:%s229] %v258
                %v260 = vld [vmem:[%s236 + $0x58] sm:%s229]
                %261 = vst [vmem:[%s237 + $0x2c] sm:%s229] %v260
                %v262 = vld [vmem:[%s236 + $0x60] sm:%s229]
                %263 = vst [vmem:[%s237 + $0x30] sm:%s229] %v262
                %v264 = vld [vmem:[%s236 + $0x68] sm:%s229]
                %265 = vst [vmem:[%s237 + $0x34] sm:%s229] %v264
                %v266 = vld [vmem:[%s236 + $0x70] sm:%s229]
                %267 = vst [vmem:[%s237 + $0x38] sm:%s229] %v266
                %v268 = vld [vmem:[%s236 + $0x78] sm:%s229]
                %269 = vst [vmem:[%s237 + $0x3c] sm:%s229] %v268
              $region41: #{attgan_forward.15} parent=35 // loop_footer
                %s235 = sadd.s32 1, %s231
              $region42: #{attgan_forward.15} parent=35 // loop_footer_branch
                %230 = sbr.rel target = $region38
              $region43: #{attgan_forward.15} parent=35 // loop_exit
                _
            $region36: #{attgan_forward.15} parent=27 // pred_fallthru
              _
          $region28: #{attgan_forward.15} parent=23 // pred_fallthru
            _
          %322 = vnop
        $region24: #{attgan_forward.15} parent=19 // pred_fallthru
          _
        // Predicated region
        $region62: #{attgan_forward.15} parent=19 // pred_check
          %p323 = pneg %p91
        $region63: #{attgan_forward.15} parent=19 // pred_check_branch
          %325 = sbr.rel (%p323) target = $region65
        $region64: #{attgan_forward.15} parent=19 // pred_region
          %s326 = smul.u32 16, %s21
          %p327 = scmp.lt.s32.totalorder %s18, 0
          %s328 = scalar_select %p327, %s18, 0
          %p329 = scmp.lt.s32.totalorder %s326, 31
          %s330 = scalar_select %p329, %s326, 31
          %p331 = scmp.lt.s32.totalorder %s20, 0
          %s332 = scalar_select %p331, %s20, 0
          %s333 = sadd.s32 %s332, %s330
          %s334 = smul.addr %s328, 32
          %s335 = sadd.s32 %s333, %s334
          %s336 = smul.addr %s335, 4
          %s337 = scalar_lea.vmem %s1, %s336
          %s338 = smul.u32 16, %s21
        $region65: #{attgan_forward.15} parent=19 // pred_fallthru
          _
      $region20: #{attgan_forward.15} parent=5 // pred_fallthru
        _
      %p339 = scmp.le.s32.totalorder 1, %s11
      %p340 = scmp.lt.s32.totalorder %s11, 3
      %p341 = pnand %p339, %p340
      %p342 = pneg %p341
      // Predicated region
      $region66: #{attgan_forward.15} parent=5 // pred_check
        _
      $region67: #{attgan_forward.15} parent=5 // pred_check_branch
        %344 = sbr.rel (%p341) target = $region69
      $region68: #{attgan_forward.15} parent=5 // pred_region
        %s345 = ssub.s32 %s11, 1
        %s346 = sand.u32 %s54, 1
        %s347 = sand.u32 %s54, 1
        %s348 = smul.addr %s347, 64
        %s349 = scalar_lea.vmem [#allocation3], %s348
        // Predicated region
        $region70: #{attgan_forward.15} parent=68 // pred_check
          %p350 = pneg %p67
        $region71: #{attgan_forward.15} parent=68 // pred_check_branch
          %352 = sbr.rel (%p350) target = $region73
        $region72: #{attgan_forward.15} parent=68 // pred_region
          _
        $region73: #{attgan_forward.15} parent=68 // pred_fallthru
          _
        %s353 = sand.u32 %s54, 1
        %s354 = sand.u32 %s54, 1
        %s355 = smul.addr %s354, 64
        %s356 = scalar_lea.vmem [#allocation3], %s355
        %p357 = pneg %p67
        %p358 = pneg %p64
        %s359 = smul.u32 16, %s25
        %p360 = scmp.lt.s32.totalorder %s22, 0
        %s361 = scalar_select %p360, %s22, 0
        %p362 = scmp.lt.s32.totalorder %s359, 31
        %s363 = scalar_select %p362, %s359, 31
        %p364 = scmp.lt.s32.totalorder %s24, 0
        %s365 = scalar_select %p364, %s24, 0
        %s366 = sadd.s32 %s365, %s363
        %s367 = smul.addr %s361, 32
        %s368 = sadd.s32 %s366, %s367
        %s369 = smul.addr %s368, 4
        %s370 = scalar_lea.vmem %s1, %s369
        %p371 = pneg %p97
        %p372 = pneg %p94
        %p373 = scmp.lt.s32.totalorder %s24, 0
        %s374 = scalar_select %p373, %s24, 0
        %s375 = scalar_lea.vmem %s2, %s374
        %p376 = pneg %p123
        %p377 = pneg %p120
        %p378 = pneg %p153
        %p379 = pneg %p150
        %s380 = smul.u32 16, %s23
        %p381 = scmp.lt.s32.totalorder %s22, 0
        %s382 = scalar_select %p381, %s22, 0
        %p383 = scmp.lt.s32.totalorder %s380, 15
        %s384 = scalar_select %p383, %s380, 15
        %p385 = scmp.lt.s32.totalorder %s24, 0
        %s386 = scalar_select %p385, %s24, 0
        %s387 = sadd.s32 %s386, %s384
        %s388 = smul.addr %s382, 16
        %s389 = sadd.s32 %s387, %s388
        %s390 = smul.addr %s389, 8
        %s391 = scalar_lea.vmem %s3, %s390
        %p392 = pneg %p183
        %p393 = pneg %p180
        %p394 = scmp.lt.s32.totalorder %s22, 0
        %s395 = scalar_select %p394, %s22, 0
        %p396 = scmp.lt.s32.totalorder %s23, 0
        %s397 = scalar_select %p396, %s23, 0
        %p398 = scmp.lt.s32.totalorder %s24, 0
        %s399 = scalar_select %p398, %s24, 0
        %s400 = sadd.s32 %s399, %s397
        %s401 = sadd.s32 %s400, %s395
        %s402 = smul.addr %s401, 8
        %s403 = scalar_lea.vmem %s4, %s402
        %s404 = smul.u32 16, %s23
        %s405 = smul.u32 16, %s25
        %p406 = scmp.lt.s32.totalorder %s22, 0
        %s407 = scalar_select %p406, %s22, 0
        %p408 = scmp.lt.s32.totalorder %s405, 31
        %s409 = scalar_select %p408, %s405, 31
        %p410 = scmp.lt.s32.totalorder %s24, 0
        %s411 = scalar_select %p410, %s24, 0
        %s412 = sadd.s32 %s411, %s409
        %s413 = smul.addr %s407, 32
        %s414 = sadd.s32 %s412, %s413
        %s415 = smul.addr %s414, 4
        %s416 = scalar_lea.vmem %s1, %s415
        %s417 = smul.u32 16, %s25
        %p418 = scmp.lt.s32.totalorder %s24, 0
        %s419 = scalar_select %p418, %s24, 0
        %s420 = scalar_lea.vmem %s2, %s419
        %s421 = smul.u32 16, %s23
        %p422 = scmp.lt.s32.totalorder %s22, 0
        %s423 = scalar_select %p422, %s22, 0
        %p424 = scmp.lt.s32.totalorder %s421, 15
        %s425 = scalar_select %p424, %s421, 15
        %p426 = scmp.lt.s32.totalorder %s24, 0
        %s427 = scalar_select %p426, %s24, 0
        %s428 = sadd.s32 %s427, %s425
        %s429 = smul.addr %s423, 16
        %s430 = sadd.s32 %s428, %s429
        %s431 = smul.addr %s430, 8
        %s432 = scalar_lea.vmem %s3, %s431
        %s433 = smul.u32 16, %s23
        %p434 = scmp.lt.s32.totalorder %s22, 0
        %s435 = scalar_select %p434, %s22, 0
        %p436 = scmp.lt.s32.totalorder %s23, 0
        %s437 = scalar_select %p436, %s23, 0
        %p438 = scmp.lt.s32.totalorder %s24, 0
        %s439 = scalar_select %p438, %s24, 0
        %s440 = sadd.s32 %s439, %s437
        %s441 = sadd.s32 %s440, %s435
        %s442 = smul.addr %s441, 8
        %s443 = scalar_lea.vmem %s4, %s442
        %p445 = scmp.eq.s32.totalorder %s25, 0
        // Predicated region
        $region74: #{attgan_forward.15} parent=68 // pred_check
          %p446 = pneg %p445
        $region75: #{attgan_forward.15} parent=68 // pred_check_branch
          %448 = sbr.rel (%p446) target = $region77
        $region76: #{attgan_forward.15} parent=68 // pred_region
          %449 = vst [vmem:[#allocation2] sm:$0xff] 0.0
          %450 = vst [vmem:[#allocation2 + $0x8] sm:$0xff] 0.0
          %451 = vst [vmem:[#allocation2 + $0x10] sm:$0xff] 0.0
          %452 = vst [vmem:[#allocation2 + $0x18] sm:$0xff] 0.0
          %453 = vst [vmem:[#allocation2 + $0x20] sm:$0xff] 0.0
          %454 = vst [vmem:[#allocation2 + $0x28] sm:$0xff] 0.0
          %455 = vst [vmem:[#allocation2 + $0x30] sm:$0xff] 0.0
          %456 = vst [vmem:[#allocation2 + $0x38] sm:$0xff] 0.0
          %457 = vst [vmem:[#allocation2 + $0x40] sm:$0xff] 0.0
          %458 = vst [vmem:[#allocation2 + $0x48] sm:$0xff] 0.0
          %459 = vst [vmem:[#allocation2 + $0x50] sm:$0xff] 0.0
          %460 = vst [vmem:[#allocation2 + $0x58] sm:$0xff] 0.0
          %461 = vst [vmem:[#allocation2 + $0x60] sm:$0xff] 0.0
          %462 = vst [vmem:[#allocation2 + $0x68] sm:$0xff] 0.0
          %463 = vst [vmem:[#allocation2 + $0x70] sm:$0xff] 0.0
          %464 = vst [vmem:[#allocation2 + $0x78] sm:$0xff] 0.0
        $region77: #{attgan_forward.15} parent=68 // pred_fallthru
          _
        %v465 = vld [vmem:[#allocation2] sm:$0xff]
        %v466 = vld [vmem:[#allocation2 + $0x8] sm:$0xff]
        %v467 = vld [vmem:[#allocation2 + $0x10] sm:$0xff]
        %v468 = vld [vmem:[#allocation2 + $0x18] sm:$0xff]
        %v469 = vld [vmem:[#allocation2 + $0x20] sm:$0xff]
        %v470 = vld [vmem:[#allocation2 + $0x28] sm:$0xff]
        %v471 = vld [vmem:[#allocation2 + $0x30] sm:$0xff]
        %v472 = vld [vmem:[#allocation2 + $0x38] sm:$0xff]
        %v473 = vld [vmem:[#allocation2 + $0x40] sm:$0xff]
        %v474 = vld [vmem:[#allocation2 + $0x48] sm:$0xff]
        %v475 = vld [vmem:[#allocation2 + $0x50] sm:$0xff]
        %v476 = vld [vmem:[#allocation2 + $0x58] sm:$0xff]
        %v477 = vld [vmem:[#allocation2 + $0x60] sm:$0xff]
        %v478 = vld [vmem:[#allocation2 + $0x68] sm:$0xff]
        %v479 = vld [vmem:[#allocation2 + $0x70] sm:$0xff]
        %v480 = vld [vmem:[#allocation2 + $0x78] sm:$0xff]
        %v481 = vld [vmem:[%s349] sm:$0xf]
        %v482 = vld [vmem:[%s349 + $0x4] sm:$0xf]
        %v483 = vld [vmem:[%s349 + $0x8] sm:$0xf]
        %v484 = vld [vmem:[%s349 + $0xc] sm:$0xf]
        %v485 = vld [vmem:[%s349 + $0x10] sm:$0xf]
        %v486 = vld [vmem:[%s349 + $0x14] sm:$0xf]
        %v487 = vld [vmem:[%s349 + $0x18] sm:$0xf]
        %v488 = vld [vmem:[%s349 + $0x1c] sm:$0xf]
        %v489 = vld [vmem:[%s349 + $0x20] sm:$0xf]
        %v490 = vld [vmem:[%s349 + $0x24] sm:$0xf]
        %v491 = vld [vmem:[%s349 + $0x28] sm:$0xf]
        %v492 = vld [vmem:[%s349 + $0x2c] sm:$0xf]
        %v493 = vld [vmem:[%s349 + $0x30] sm:$0xf]
        %v494 = vld [vmem:[%s349 + $0x34] sm:$0xf]
        %v495 = vld [vmem:[%s349 + $0x38] sm:$0xf]
        %v496 = vld [vmem:[%s349 + $0x3c] sm:$0xf]
        %v497 = vld [vmem:[%s416] sm:$0xf]
        %v498 = vld [vmem:[%s416 + $0x4] sm:$0xf]
        %v499 = vld [vmem:[%s416 + $0x8] sm:$0xf]
        %v500 = vld [vmem:[%s416 + $0xc] sm:$0xf]
        %v501 = vld [vmem:[%s416 + $0x10] sm:$0xf]
        %v502 = vld [vmem:[%s416 + $0x14] sm:$0xf]
        %v503 = vld [vmem:[%s416 + $0x18] sm:$0xf]
        %v504 = vld [vmem:[%s416 + $0x1c] sm:$0xf]
        %v505 = vld [vmem:[%s416 + $0x20] sm:$0xf]
        %v506 = vld [vmem:[%s416 + $0x24] sm:$0xf]
        %v507 = vld [vmem:[%s416 + $0x28] sm:$0xf]
        %v508 = vld [vmem:[%s416 + $0x2c] sm:$0xf]
        %v509 = vld [vmem:[%s416 + $0x30] sm:$0xf]
        %v510 = vld [vmem:[%s416 + $0x34] sm:$0xf]
        %v511 = vld [vmem:[%s416 + $0x38] sm:$0xf]
        %v512 = vld [vmem:[%s416 + $0x3c] sm:$0xf]
        %v529 = vunpack.c.l.b16 %v481
        %v530 = vunpack.c.l.b16 %v482
        %v531 = vunpack.c.l.b16 %v483
        %v532 = vunpack.c.l.b16 %v484
        %v533 = vunpack.c.l.b16 %v485
        %v534 = vunpack.c.l.b16 %v486
        %v535 = vunpack.c.l.b16 %v487
        %v536 = vunpack.c.l.b16 %v488
        %v537 = vunpack.c.l.b16 %v489
        %v538 = vunpack.c.l.b16 %v490
        %v539 = vunpack.c.l.b16 %v491
        %v540 = vunpack.c.l.b16 %v492
        %v541 = vunpack.c.l.b16 %v493
        %v542 = vunpack.c.l.b16 %v494
        %v543 = vunpack.c.l.b16 %v495
        %v544 = vunpack.c.l.b16 %v496
        %v545 = vpack.c.b16 %v530, %v529
        %v546 = vpack.c.b16 %v532, %v531
        %v547 = vpack.c.b16 %v534, %v533
        %v548 = vpack.c.b16 %v536, %v535
        %v549 = vpack.c.b16 %v538, %v537
        %v550 = vpack.c.b16 %v540, %v539
        %v551 = vpack.c.b16 %v542, %v541
        %v552 = vpack.c.b16 %v544, %v543
        %v577 = vunpack.c.l.b16 %v497
        %v578 = vunpack.c.l.b16 %v498
        %v579 = vunpack.c.l.b16 %v499
        %v580 = vunpack.c.l.b16 %v500
        %v581 = vunpack.c.l.b16 %v501
        %v582 = vunpack.c.l.b16 %v502
        %v583 = vunpack.c.l.b16 %v503
        %v584 = vunpack.c.l.b16 %v504
        %v585 = vunpack.c.l.b16 %v505
        %v586 = vunpack.c.l.b16 %v506
        %v587 = vunpack.c.l.b16 %v507
        %v588 = vunpack.c.l.b16 %v508
        %v589 = vunpack.c.l.b16 %v509
        %v590 = vunpack.c.l.b16 %v510
        %v591 = vunpack.c.l.b16 %v511
        %v592 = vunpack.c.l.b16 %v512
        %v593 = vpack.c.b16 %v578, %v577
        %v594 = vpack.c.b16 %v580, %v579
        %v595 = vpack.c.b16 %v582, %v581
        %v596 = vpack.c.b16 %v584, %v583
        %v597 = vpack.c.b16 %v586, %v585
        %v598 = vpack.c.b16 %v588, %v587
        %v599 = vpack.c.b16 %v590, %v589
        %v600 = vpack.c.b16 %v592, %v591
        %609 = vmatprep.subr.bf16.mxu0 0
        %610 = vmatpush1.bf16.msra.mxu0 %v600
        %611 = vmatprep.subr.bf16.mxu0 0
        %612 = vmatpush1.bf16.msra.mxu0 %v599
        %613 = vmatprep.subr.bf16.mxu0 0
        %614 = vmatpush1.bf16.msra.mxu0 %v598
        %615 = vmatprep.subr.bf16.mxu0 0
        %616 = vmatpush1.bf16.msra.mxu0 %v597
        %617 = vmatprep.subr.bf16.mxu0 0
        %618 = vmatpush1.bf16.msra.mxu0 %v596
        %619 = vmatprep.subr.bf16.mxu0 0
        %620 = vmatpush1.bf16.msra.mxu0 %v595
        %621 = vmatprep.subr.bf16.mxu0 0
        %622 = vmatpush1.bf16.msra.mxu0 %v594
        %623 = vmatprep.subr.bf16.mxu0 0
        %624 = vmatpush1.bf16.msra.mxu0 %v593
        %625 = vmatprep.subr.bf16.mxu0 0
        %626 = vmatpush2.bf16.msra.mxu0 0
        %627 = vmatprep.subr.bf16.mxu0 0
        %628 = vmatpush2.bf16.msra.mxu0 0
        %629 = vmatprep.subr.bf16.mxu0 0
        %630 = vmatpush2.bf16.msra.mxu0 0
        %631 = vmatprep.subr.bf16.mxu0 0
        %632 = vmatpush2.bf16.msra.mxu0 0
        %633 = vmatprep.subr.bf16.mxu0 0
        %634 = vmatpush2.bf16.msra.mxu0 0
        %635 = vmatprep.subr.bf16.mxu0 0
        %636 = vmatpush2.bf16.msra.mxu0 0
        %637 = vmatprep.subr.bf16.mxu0 0
        %638 = vmatpush2.bf16.msra.mxu0 0
        %639 = vmatprep.subr.bf16.mxu0 0
        %640 = vmatpush2.bf16.msra.mxu0 0
        %641 = vmatprep.mubr.bf16.mxu0 0
        %642 = vmatmul.mubr.bf16.gmra.mxu0 %v545
        %v643 = vpop.f32.mrf.mxu0
        %v644 = vadd.f32 0.0, %v643
        %v645 = vpop.f32.mrf.mxu0
        %v646 = vpop.f32.mrf.mxu0
        %v647 = vadd.f32 0.0, %v646
        %v648 = vpop.f32.mrf.mxu0
        %649 = vmatprep.mubr.bf16.mxu0 0
        %650 = vmatmul.mubr.bf16.gmra.mxu0 %v546
        %v651 = vpop.f32.mrf.mxu0
        %v652 = vadd.f32 0.0, %v651
        %v653 = vpop.f32.mrf.mxu0
        %v654 = vpop.f32.mrf.mxu0
        %v655 = vadd.f32 0.0, %v654
        %v656 = vpop.f32.mrf.mxu0
        %657 = vmatprep.mubr.bf16.mxu0 0
        %658 = vmatmul.mubr.bf16.gmra.mxu0 %v547
        %v659 = vpop.f32.mrf.mxu0
        %v660 = vadd.f32 0.0, %v659
        %v661 = vpop.f32.mrf.mxu0
        %v662 = vpop.f32.mrf.mxu0
        %v663 = vadd.f32 0.0, %v662
        %v664 = vpop.f32.mrf.mxu0
        %665 = vmatprep.mubr.bf16.mxu0 0
        %666 = vmatmul.mubr.bf16.gmra.mxu0 %v548
        %v667 = vpop.f32.mrf.mxu0
        %v668 = vadd.f32 0.0, %v667
        %v669 = vpop.f32.mrf.mxu0
        %v670 = vpop.f32.mrf.mxu0
        %v671 = vadd.f32 0.0, %v670
        %v672 = vpop.f32.mrf.mxu0
        %673 = vmatprep.mubr.bf16.mxu0 0
        %674 = vmatmul.mubr.bf16.gmra.mxu0 %v549
        %v675 = vpop.f32.mrf.mxu0
        %v676 = vadd.f32 0.0, %v675
        %v677 = vpop.f32.mrf.mxu0
        %v678 = vpop.f32.mrf.mxu0
        %v679 = vadd.f32 0.0, %v678
        %v680 = vpop.f32.mrf.mxu0
        %681 = vmatprep.mubr.bf16.mxu0 0
        %682 = vmatmul.mubr.bf16.gmra.mxu0 %v550
        %v683 = vpop.f32.mrf.mxu0
        %v684 = vadd.f32 0.0, %v683
        %v685 = vpop.f32.mrf.mxu0
        %v686 = vpop.f32.mrf.mxu0
        %v687 = vadd.f32 0.0, %v686
        %v688 = vpop.f32.mrf.mxu0
        %689 = vmatprep.mubr.bf16.mxu0 0
        %690 = vmatmul.mubr.bf16.gmra.mxu0 %v551
        %v691 = vpop.f32.mrf.mxu0
        %v692 = vadd.f32 0.0, %v691
        %v693 = vpop.f32.mrf.mxu0
        %v694 = vpop.f32.mrf.mxu0
        %v695 = vadd.f32 0.0, %v694
        %v696 = vpop.f32.mrf.mxu0
        %697 = vmatprep.mubr.bf16.mxu0 0
        %698 = vmatmul.mubr.bf16.gmra.mxu0 %v552
        %v699 = vpop.f32.mrf.mxu0
        %v700 = vadd.f32 0.0, %v699
        %v701 = vpop.f32.mrf.mxu0
        %v702 = vpop.f32.mrf.mxu0
        %v703 = vadd.f32 0.0, %v702
        %v704 = vpop.f32.mrf.mxu0
        %705 = vdwg.mxu0
        %v706 = vadd.f32 %v465, %v644
        %v707 = vadd.f32 %v466, %v647
        %v708 = vadd.f32 %v467, %v652
        %v709 = vadd.f32 %v468, %v655
        %v710 = vadd.f32 %v469, %v660
        %v711 = vadd.f32 %v470, %v663
        %v712 = vadd.f32 %v471, %v668
        %v713 = vadd.f32 %v472, %v671
        %v714 = vadd.f32 %v473, %v676
        %v715 = vadd.f32 %v474, %v679
        %v716 = vadd.f32 %v475, %v684
        %v717 = vadd.f32 %v476, %v687
        %v718 = vadd.f32 %v477, %v692
        %v719 = vadd.f32 %v478, %v695
        %v720 = vadd.f32 %v479, %v700
        %v721 = vadd.f32 %v480, %v703
        %722 = vst [vmem:[#allocation2] sm:$0xff] %v706
        %723 = vst [vmem:[#allocation2 + $0x8] sm:$0xff] %v707
        %724 = vst [vmem:[#allocation2 + $0x10] sm:$0xff] %v708
        %725 = vst [vmem:[#allocation2 + $0x18] sm:$0xff] %v709
        %726 = vst [vmem:[#allocation2 + $0x20] sm:$0xff] %v710
        %727 = vst [vmem:[#allocation2 + $0x28] sm:$0xff] %v711
        %728 = vst [vmem:[#allocation2 + $0x30] sm:$0xff] %v712
        %729 = vst [vmem:[#allocation2 + $0x38] sm:$0xff] %v713
        %730 = vst [vmem:[#allocation2 + $0x40] sm:$0xff] %v714
        %731 = vst [vmem:[#allocation2 + $0x48] sm:$0xff] %v715
        %732 = vst [vmem:[#allocation2 + $0x50] sm:$0xff] %v716
        %733 = vst [vmem:[#allocation2 + $0x58] sm:$0xff] %v717
        %734 = vst [vmem:[#allocation2 + $0x60] sm:$0xff] %v718
        %735 = vst [vmem:[#allocation2 + $0x68] sm:$0xff] %v719
        %736 = vst [vmem:[#allocation2 + $0x70] sm:$0xff] %v720
        %737 = vst [vmem:[#allocation2 + $0x78] sm:$0xff] %v721
        %p738 = scmp.eq.s32.totalorder %s25, 1
        // Predicated region
        $region78: #{attgan_forward.15} parent=68 // pred_check
          %p739 = pneg %p738
        $region79: #{attgan_forward.15} parent=68 // pred_check_branch
          %741 = sbr.rel (%p739) target = $region81
        $region80: #{attgan_forward.15} parent=68 // pred_region
          %v742 = vld [vmem:[#allocation2] sm:$0xff]
          %v743 = vld [vmem:[#allocation2 + $0x8] sm:$0xff]
          %v744 = vld [vmem:[#allocation2 + $0x10] sm:$0xff]
          %v745 = vld [vmem:[#allocation2 + $0x18] sm:$0xff]
          %v746 = vld [vmem:[#allocation2 + $0x20] sm:$0xff]
          %v747 = vld [vmem:[#allocation2 + $0x28] sm:$0xff]
          %v748 = vld [vmem:[#allocation2 + $0x30] sm:$0xff]
          %v749 = vld [vmem:[#allocation2 + $0x38] sm:$0xff]
          %v750 = vld [vmem:[#allocation2 + $0x40] sm:$0xff]
          %v751 = vld [vmem:[#allocation2 + $0x48] sm:$0xff]
          %v752 = vld [vmem:[#allocation2 + $0x50] sm:$0xff]
          %v753 = vld [vmem:[#allocation2 + $0x58] sm:$0xff]
          %v754 = vld [vmem:[#allocation2 + $0x60] sm:$0xff]
          %v755 = vld [vmem:[#allocation2 + $0x68] sm:$0xff]
          %v756 = vld [vmem:[#allocation2 + $0x70] sm:$0xff]
          %v757 = vld [vmem:[#allocation2 + $0x78] sm:$0xff]
          %v758 = vadd.f32 %v742, %v743
          %v759 = vadd.f32 %v758, %v744
          %v760 = vadd.f32 %v759, %v745
          %v761 = vadd.f32 %v760, %v746
          %v762 = vadd.f32 %v761, %v747
          %v763 = vadd.f32 %v762, %v748
          %v764 = vadd.f32 %v763, %v749
          %v765 = vadd.f32 %v764, %v750
          %v766 = vadd.f32 %v765, %v751
          %v767 = vadd.f32 %v766, %v752
          %v768 = vadd.f32 %v767, %v753
          %v769 = vadd.f32 %v768, %v754
          %v770 = vadd.f32 %v769, %v755
          %v771 = vadd.f32 %v770, %v756
          %v772 = vadd.f32 %v771, %v757
          %v773 = vrot.slane %v772, 4
          %v774 = vadd.f32 %v772, %v773
          %v775 = vrot.slane %v774, 2
          %v776 = vadd.f32 %v774, %v775
          %v777 = vrot.slane %v776, 1
          %v778 = vadd.f32 %v776, %v777
          %v779 = vmul.f32 %v742, %v742
          %v780 = vmul.f32 %v743, %v743
          %v781 = vmul.f32 %v744, %v744
          %v782 = vmul.f32 %v745, %v745
          %v783 = vmul.f32 %v746, %v746
          %v784 = vmul.f32 %v747, %v747
          %v785 = vmul.f32 %v748, %v748
          %v786 = vmul.f32 %v749, %v749
          %v787 = vmul.f32 %v750, %v750
          %v788 = vmul.f32 %v751, %v751
          %v789 = vmul.f32 %v752, %v752
          %v790 = vmul.f32 %v753, %v753
          %v791 = vmul.f32 %v754, %v754
          %v792 = vmul.f32 %v755, %v755
          %v793 = vmul.f32 %v756, %v756
          %v794 = vmul.f32 %v757, %v757
          %v795 = vadd.f32 %v779, %v780
          %v796 = vadd.f32 %v795, %v781
          %v797 = vadd.f32 %v796, %v782
          %v798 = vadd.f32 %v797, %v783
          %v799 = vadd.f32 %v798, %v784
          %v800 = vadd.f32 %v799, %v785
          %v801 = vadd.f32 %v800, %v786
          %v802 = vadd.f32 %v801, %v787
          %v803 = vadd.f32 %v802, %v788
          %v804 = vadd.f32 %v803, %v789
          %v805 = vadd.f32 %v804, %v790
          %v806 = vadd.f32 %v805, %v791
          %v807 = vadd.f32 %v806, %v792
          %v808 = vadd.f32 %v807, %v793
          %v809 = vadd.f32 %v808, %v794
          %v810 = vrot.slane %v809, 4
          %v811 = vadd.f32 %v809, %v810
          %v812 = vrot.slane %v811, 2
          %v813 = vadd.f32 %v811, %v812
          %v814 = vrot.slane %v813, 1
          %v815 = vadd.f32 %v813, %v814
          %vm816 = vcmask 1040384
          %v817 = vsel %vm816, %v778, %v815
          %vm818 = vcmask 1041408
          %v819 = vsel %vm818, %v817, 0.0
          %820 = vst [vmem:[%s443] sm:$0xff] %v819
          %v821 = vld [vmem:[%s420] sm:$0x1]
          %v823 = vlaneseq
          %v824 = vshrl.u32 %v823, 7
          %v825 = vsub.s32 0, %v824
          %v826 = vrot.slane %v821, %v825
          %v828 = vadd.f32 %v742, %v826
          %v829 = vadd.f32 %v743, %v826
          %v830 = vadd.f32 %v744, %v826
          %v831 = vadd.f32 %v745, %v826
          %v832 = vadd.f32 %v746, %v826
          %v833 = vadd.f32 %v747, %v826
          %v834 = vadd.f32 %v748, %v826
          %v835 = vadd.f32 %v749, %v826
          %v836 = vadd.f32 %v750, %v826
          %v837 = vadd.f32 %v751, %v826
          %v838 = vadd.f32 %v752, %v826
          %v839 = vadd.f32 %v753, %v826
          %v840 = vadd.f32 %v754, %v826
          %v841 = vadd.f32 %v755, %v826
          %v842 = vadd.f32 %v756, %v826
          %v843 = vadd.f32 %v757, %v826
          %844 = vst [vmem:[%s432] sm:$0xff] %v828
          %845 = vst [vmem:[%s432 + $0x8] sm:$0xff] %v829
          %846 = vst [vmem:[%s432 + $0x10] sm:$0xff] %v830
          %847 = vst [vmem:[%s432 + $0x18] sm:$0xff] %v831
          %848 = vst [vmem:[%s432 + $0x20] sm:$0xff] %v832
          %849 = vst [vmem:[%s432 + $0x28] sm:$0xff] %v833
          %850 = vst [vmem:[%s432 + $0x30] sm:$0xff] %v834
          %851 = vst [vmem:[%s432 + $0x38] sm:$0xff] %v835
          %852 = vst [vmem:[%s432 + $0x40] sm:$0xff] %v836
          %853 = vst [vmem:[%s432 + $0x48] sm:$0xff] %v837
          %854 = vst [vmem:[%s432 + $0x50] sm:$0xff] %v838
          %855 = vst [vmem:[%s432 + $0x58] sm:$0xff] %v839
          %856 = vst [vmem:[%s432 + $0x60] sm:$0xff] %v840
          %857 = vst [vmem:[%s432 + $0x68] sm:$0xff] %v841
          %858 = vst [vmem:[%s432 + $0x70] sm:$0xff] %v842
          %859 = vst [vmem:[%s432 + $0x78] sm:$0xff] %v843
        $region81: #{attgan_forward.15} parent=68 // pred_fallthru
          _
        %s860 = smul.u32 16, %s23
        %p861 = scmp.lt.s32.totalorder %s22, 0
        %s862 = scalar_select %p861, %s22, 0
        %p863 = scmp.lt.s32.totalorder %s860, 15
        %s864 = scalar_select %p863, %s860, 15
        %p865 = scmp.lt.s32.totalorder %s24, 0
        %s866 = scalar_select %p865, %s24, 0
        %s867 = sadd.s32 %s866, %s864
        %s868 = smul.addr %s862, 16
        %s869 = sadd.s32 %s867, %s868
        %s870 = smul.addr %s869, 8
        %s871 = scalar_lea.vmem %s3, %s870
        %p872 = scmp.lt.s32.totalorder %s22, 0
        %s873 = scalar_select %p872, %s22, 0
        %p874 = scmp.lt.s32.totalorder %s23, 0
        %s875 = scalar_select %p874, %s23, 0
        %p876 = scmp.lt.s32.totalorder %s24, 0
        %s877 = scalar_select %p876, %s24, 0
        %s878 = sadd.s32 %s877, %s875
        %s879 = sadd.s32 %s878, %s873
        %s880 = smul.addr %s879, 8
        %s881 = scalar_lea.vmem %s4, %s880
        // Predicated region
        $region82: #{attgan_forward.15} parent=68 // pred_check
          %p882 = pneg %p150
        $region83: #{attgan_forward.15} parent=68 // pred_check_branch
          %884 = sbr.rel (%p882) target = $region85
        $region84: #{attgan_forward.15} parent=68 // pred_region
          %s885 = smul.u32 16, %s23
        $region85: #{attgan_forward.15} parent=68 // pred_fallthru
          _
        // Predicated region
        $region86: #{attgan_forward.15} parent=68 // pred_check
          %p886 = pneg %p180
        $region87: #{attgan_forward.15} parent=68 // pred_check_branch
          %888 = sbr.rel (%p886) target = $region89
        $region88: #{attgan_forward.15} parent=68 // pred_region
          _
        $region89: #{attgan_forward.15} parent=68 // pred_fallthru
          _
        // Predicated region
        $region90: #{attgan_forward.15} parent=68 // pred_check
          %p889 = pneg %p150
        $region91: #{attgan_forward.15} parent=68 // pred_check_branch
          %891 = sbr.rel (%p889) target = $region93
        $region92: #{attgan_forward.15} parent=68 // pred_region
          %s892 = smul.u32 16, %s23
          %p893 = scmp.lt.s32.totalorder %s22, 0
          %s894 = scalar_select %p893, %s22, 0
          %p895 = scmp.lt.s32.totalorder %s892, 15
          %s896 = scalar_select %p895, %s892, 15
          %p897 = scmp.lt.s32.totalorder %s24, 0
          %s898 = scalar_select %p897, %s24, 0
          %s899 = sadd.s32 %s898, %s896
          %s900 = smul.addr %s894, 16
          %s901 = sadd.s32 %s899, %s900
          %s902 = smul.addr %s901, 8
          %s903 = scalar_lea.vmem %s3, %s902
        $region93: #{attgan_forward.15} parent=68 // pred_fallthru
          _
        // Predicated region
        $region94: #{attgan_forward.15} parent=68 // pred_check
          %p904 = pneg %p180
        $region95: #{attgan_forward.15} parent=68 // pred_check_branch
          %906 = sbr.rel (%p904) target = $region97
        $region96: #{attgan_forward.15} parent=68 // pred_region
          %p907 = scmp.lt.s32.totalorder %s22, 0
          %s908 = scalar_select %p907, %s22, 0
          %p909 = scmp.lt.s32.totalorder %s23, 0
          %s910 = scalar_select %p909, %s23, 0
          %p911 = scmp.lt.s32.totalorder %s24, 0
          %s912 = scalar_select %p911, %s24, 0
          %s913 = sadd.s32 %s912, %s910
          %s914 = sadd.s32 %s913, %s908
          %s915 = smul.addr %s914, 8
          %s916 = scalar_lea.vmem %s4, %s915
        $region97: #{attgan_forward.15} parent=68 // pred_fallthru
          _
      $region69: #{attgan_forward.15} parent=5 // pred_fallthru
        _
      %p917 = scmp.le.s32.totalorder 2, %s11
      // Predicated region
      $region98: #{attgan_forward.15} parent=5 // pred_check
        %p918 = pneg %p917
      $region99: #{attgan_forward.15} parent=5 // pred_check_branch
        %920 = sbr.rel (%p918) target = $region101
      $region100: #{attgan_forward.15} parent=5 // pred_region
        %s921 = ssub.s32 %s11, 2
      $region101: #{attgan_forward.15} parent=5 // pred_fallthru
        _
    $region6: #{attgan_forward.15} parent=1 // loop_footer
      %s15 = sadd.s32 1, %s11
    $region7: #{attgan_forward.15} parent=1 // loop_footer_branch
      %10 = sbr.rel target = $region3
    $region8: #{attgan_forward.15} parent=1 // loop_exit
      _

// kernel: attgan_forward.18
$region0: #{attgan_forward.18}
  #allocation0 [shape = 'u32[]', space=smem, size = 0x4, offset = 0x4, fixed_abs, tag = 'smem constant byte address 0x4 - core index']
  #allocation1 [shape = 'u32[144,128]{1,0:T(1,128)}', space=vmem, size = 0x12000, scoped, tag = 'internal scratch']
  %s0 = inlined_call_operand.vmem [shape: f32[512,128], index: 0, kind: input, shape index: {}]
  %s1 = inlined_call_operand.vmem [shape: f32[1,128], index: 1, kind: input, shape index: {}]
  %s2 = inlined_call_operand.vmem [shape: f32[1,128], index: 2, kind: input, shape index: {}]
  %s3 = inlined_call_operand.vmem [shape: f32[512,128], index: 3, kind: output, shape index: {}]
  %s4 = sld [smem:[#allocation0]]
  $region45: #{attgan_forward.18} parent=0
    _
  %s6 = ssub.s32 1, %s4
  %s7 = scalar_select 0, %s6, %s4
  loop: start=0, step=1, limit=6
  $region2: #{attgan_forward.18} parent=0 // loop_pre_header
    _
  $region3: #{attgan_forward.18} parent=0 // loop_header
    %s9 = sphi 0, %s13
    %p10 = scmp.ge.s32.totalorder %s9, 6
    %s16 = sphi 0, %s28
    %s17 = sphi 0, %s24
    %s18 = sphi 0, %s16
    %s19 = sphi 0, %s17
    %s20 = sphi 0, %s18
    %s21 = sphi 0, %s19
    %s33 = sphi 0, %s35
    %s36 = sphi 0, %s33
    %s37 = sphi 0, %s36
    %s53 = sphi 0, %s37
    %s59 = sphi 0, %s61
    %s62 = sphi 0, %s59
    %s63 = sphi 0, %s62
    %s79 = sphi 0, %s63
    %s85 = sphi 0, %s87
    %s88 = sphi 0, %s85
    %s89 = sphi 0, %s88
    %s105 = sphi 0, %s89
    %s113 = sphi 0, %s115
    %s116 = sphi 0, %s113
    %s117 = sphi 0, %s116
    %s133 = sphi 0, %s117
  $region4: #{attgan_forward.18} parent=0 // loop_header_branch
    %12 = sbr.rel (%p10) target = $region8
  $region5: #{attgan_forward.18} parent=0 // loop_body
    %s14 = ssub.s32 %s9, 1
    %s15 = ssub.s32 %s9, 2
    %s22 = sadd.s32 1, %s17
    %p23 = scmp.ge.s32.totalorder %s22, 1
    %s24 = scalar_select %p23, 0, %s22
    %s25 = sadd.s32 1, %s16
    %s26 = scalar_select %p23, %s25, %s16
    %p27 = scmp.ge.s32.totalorder %s26, 4
    %s28 = scalar_select %p27, 0, %s26
    %s29 = ssub.s32 %s16, %s28
    %s30 = ssub.s32 %s17, %s24
    %s31 = sor.u32 %s29, %s30
    %p32 = scmp.eq.s32.totalorder %s31, 0
    %s34 = sadd.s32 %s33, 1
    %s35 = scalar_select %p32, %s33, %s34
    %p38 = pneg %p32
    %p39 = scmp.eq.s32.totalorder %s9, 3
    %p40 = por %p38, %p39
    %p41 = scmp.ne.s32.totalorder %s33, %s36
    %p42 = scmp.eq.s32.totalorder %s9, 0
    %p43 = por %p41, %p42
    %p44 = scmp.ne.s32.totalorder %s33, %s36
    %p45 = scmp.eq.s32.totalorder %s14, 3
    %p46 = por %p44, %p45
    %p47 = scmp.ne.s32.totalorder %s36, %s37
    %p48 = scmp.eq.s32.totalorder %s14, 0
    %p49 = por %p47, %p48
    %p50 = scmp.ne.s32.totalorder %s36, %s37
    %p51 = scmp.eq.s32.totalorder %s15, 3
    %p52 = por %p50, %p51
    %p54 = scmp.ne.s32.totalorder %s37, %s53
    %p55 = scmp.eq.s32.totalorder %s15, 0
    %p56 = por %p54, %p55
    %s57 = ssub.s32 %s17, %s24
    %p58 = scmp.eq.s32.totalorder %s57, 0
    %s60 = sadd.s32 %s59, 1
    %s61 = scalar_select %p58, %s59, %s60
    %p64 = pneg %p58
    %p65 = scmp.eq.s32.totalorder %s9, 3
    %p66 = por %p64, %p65
    %p67 = scmp.ne.s32.totalorder %s59, %s62
    %p68 = scmp.eq.s32.totalorder %s9, 0
    %p69 = por %p67, %p68
    %p70 = scmp.ne.s32.totalorder %s59, %s62
    %p71 = scmp.eq.s32.totalorder %s14, 3
    %p72 = por %p70, %p71
    %p73 = scmp.ne.s32.totalorder %s62, %s63
    %p74 = scmp.eq.s32.totalorder %s14, 0
    %p75 = por %p73, %p74
    %p76 = scmp.ne.s32.totalorder %s62, %s63
    %p77 = scmp.eq.s32.totalorder %s15, 3
    %p78 = por %p76, %p77
    %p80 = scmp.ne.s32.totalorder %s63, %s79
    %p81 = scmp.eq.s32.totalorder %s15, 0
    %p82 = por %p80, %p81
    %s83 = ssub.s32 %s17, %s24
    %p84 = scmp.eq.s32.totalorder %s83, 0
    %s86 = sadd.s32 %s85, 1
    %s87 = scalar_select %p84, %s85, %s86
    %p90 = pneg %p84
    %p91 = scmp.eq.s32.totalorder %s9, 3
    %p92 = por %p90, %p91
    %p93 = scmp.ne.s32.totalorder %s85, %s88
    %p94 = scmp.eq.s32.totalorder %s9, 0
    %p95 = por %p93, %p94
    %p96 = scmp.ne.s32.totalorder %s85, %s88
    %p97 = scmp.eq.s32.totalorder %s14, 3
    %p98 = por %p96, %p97
    %p99 = scmp.ne.s32.totalorder %s88, %s89
    %p100 = scmp.eq.s32.totalorder %s14, 0
    %p101 = por %p99, %p100
    %p102 = scmp.ne.s32.totalorder %s88, %s89
    %p103 = scmp.eq.s32.totalorder %s15, 3
    %p104 = por %p102, %p103
    %p106 = scmp.ne.s32.totalorder %s89, %s105
    %p107 = scmp.eq.s32.totalorder %s15, 0
    %p108 = por %p106, %p107
    %s109 = ssub.s32 %s16, %s28
    %s110 = ssub.s32 %s17, %s24
    %s111 = sor.u32 %s109, %s110
    %p112 = scmp.eq.s32.totalorder %s111, 0
    %s114 = sadd.s32 %s113, 1
    %s115 = scalar_select %p112, %s113, %s114
    %p118 = pneg %p112
    %p119 = scmp.eq.s32.totalorder %s9, 3
    %p120 = por %p118, %p119
    %p121 = scmp.ne.s32.totalorder %s113, %s116
    %p122 = scmp.eq.s32.totalorder %s9, 0
    %p123 = por %p121, %p122
    %p124 = scmp.ne.s32.totalorder %s113, %s116
    %p125 = scmp.eq.s32.totalorder %s14, 3
    %p126 = por %p124, %p125
    %p127 = scmp.ne.s32.totalorder %s116, %s117
    %p128 = scmp.eq.s32.totalorder %s14, 0
    %p129 = por %p127, %p128
    %p130 = scmp.ne.s32.totalorder %s116, %s117
    %p131 = scmp.eq.s32.totalorder %s15, 3
    %p132 = por %p130, %p131
    %p134 = scmp.ne.s32.totalorder %s117, %s133
    %p135 = scmp.eq.s32.totalorder %s15, 0
    %p136 = por %p134, %p135
    %p137 = scmp.le.s32.totalorder 1, %s9
    %p138 = scmp.lt.s32.totalorder %s9, 5
    %p139 = pnand %p137, %p138
    %p140 = pneg %p139
    // Predicated region
    $region9: #{attgan_forward.18} parent=5 // pred_check
      _
    $region10: #{attgan_forward.18} parent=5 // pred_check_branch
      %142 = sbr.rel (%p139) target = $region12
    $region11: #{attgan_forward.18} parent=5 // pred_region
      %s143 = ssub.s32 %s9, 1
      // Predicated region
      $region13: #{attgan_forward.18} parent=11 // pred_check
        %p144 = pneg %p75
      $region14: #{attgan_forward.18} parent=11 // pred_check_branch
        %146 = sbr.rel (%p144) target = $region16
      $region15: #{attgan_forward.18} parent=11 // pred_region
        %p147 = scmp.lt.s32.totalorder %s19, 0
        %s148 = scalar_select %p147, %s19, 0
        %s149 = scalar_lea.vmem %s1, %s148
      $region16: #{attgan_forward.18} parent=11 // pred_fallthru
        _
      // Predicated region
      $region17: #{attgan_forward.18} parent=11 // pred_check
        %p150 = pneg %p101
      $region18: #{attgan_forward.18} parent=11 // pred_check_branch
        %152 = sbr.rel (%p150) target = $region20
      $region19: #{attgan_forward.18} parent=11 // pred_region
        %p153 = scmp.lt.s32.totalorder %s19, 0
        %s154 = scalar_select %p153, %s19, 0
        %s155 = scalar_lea.vmem %s2, %s154
      $region20: #{attgan_forward.18} parent=11 // pred_fallthru
        _
    $region12: #{attgan_forward.18} parent=5 // pred_fallthru
      _
    %p156 = scmp.lt.s32.totalorder %s9, 4
    // Predicated region
    $region21: #{attgan_forward.18} parent=5 // pred_check
      %p157 = pneg %p156
    $region22: #{attgan_forward.18} parent=5 // pred_check_branch
      %159 = sbr.rel (%p157) target = $region24
    $region23: #{attgan_forward.18} parent=5 // pred_region
      // Predicated region
      $region25: #{attgan_forward.18} parent=23 // pred_check
        %p160 = pneg %p43
      $region26: #{attgan_forward.18} parent=23 // pred_check_branch
        %162 = sbr.rel (%p160) target = $region28
      $region27: #{attgan_forward.18} parent=23 // pred_region
        %s163 = smul.u32 16, %s16
        %p164 = scmp.lt.s32.totalorder %s163, 63
        %s165 = scalar_select %p164, %s163, 63
        %p166 = scmp.lt.s32.totalorder %s17, 0
        %s167 = scalar_select %p166, %s17, 0
        %s168 = sadd.s32 %s167, %s165
        %s169 = smul.addr %s168, 8
        %s170 = scalar_lea.vmem %s0, %s169
        %s171 = smul.u32 16, %s16
      $region28: #{attgan_forward.18} parent=23 // pred_fallthru
        _
    $region24: #{attgan_forward.18} parent=5 // pred_fallthru
      _
    %p172 = scmp.le.s32.totalorder 1, %s9
    %p173 = scmp.lt.s32.totalorder %s9, 5
    %p174 = pnand %p172, %p173
    %p175 = pneg %p174
    // Predicated region
    $region29: #{attgan_forward.18} parent=5 // pred_check
      _
    $region30: #{attgan_forward.18} parent=5 // pred_check_branch
      %177 = sbr.rel (%p174) target = $region32
    $region31: #{attgan_forward.18} parent=5 // pred_region
      %s178 = ssub.s32 %s9, 1
      %s179 = smul.u32 16, %s18
      %p180 = scmp.lt.s32.totalorder %s179, 63
      %s181 = scalar_select %p180, %s179, 63
      %p182 = scmp.lt.s32.totalorder %s19, 0
      %s183 = scalar_select %p182, %s19, 0
      %s184 = sadd.s32 %s183, %s181
      %s185 = smul.addr %s184, 8
      %s186 = scalar_lea.vmem %s0, %s185
      %p187 = pneg %p49
      %p188 = pneg %p46
      %p189 = scmp.lt.s32.totalorder %s19, 0
      %s190 = scalar_select %p189, %s19, 0
      %s191 = scalar_lea.vmem %s1, %s190
      %p192 = pneg %p75
      %p193 = pneg %p72
      %p194 = scmp.lt.s32.totalorder %s19, 0
      %s195 = scalar_select %p194, %s19, 0
      %s196 = scalar_lea.vmem %s2, %s195
      %p197 = pneg %p101
      %p198 = pneg %p98
      %p199 = pneg %p129
      %p200 = pneg %p126
      %s201 = smul.u32 16, %s18
      %p202 = scmp.lt.s32.totalorder %s201, 63
      %s203 = scalar_select %p202, %s201, 63
      %p204 = scmp.lt.s32.totalorder %s19, 0
      %s205 = scalar_select %p204, %s19, 0
      %s206 = sadd.s32 %s205, %s203
      %s207 = smul.addr %s206, 8
      %s208 = scalar_lea.vmem %s3, %s207
      %s209 = smul.u32 16, %s18
      %p210 = scmp.lt.s32.totalorder %s209, 63
      %s211 = scalar_select %p210, %s209, 63
      %p212 = scmp.lt.s32.totalorder %s19, 0
      %s213 = scalar_select %p212, %s19, 0
      %s214 = sadd.s32 %s213, %s211
      %s215 = smul.addr %s214, 8
      %s216 = scalar_lea.vmem %s0, %s215
      %s217 = smul.u32 16, %s18
      %p218 = scmp.lt.s32.totalorder %s19, 0
      %s219 = scalar_select %p218, %s19, 0
      %s220 = scalar_lea.vmem %s1, %s219
      %p221 = scmp.lt.s32.totalorder %s19, 0
      %s222 = scalar_select %p221, %s19, 0
      %s223 = scalar_lea.vmem %s2, %s222
      %s224 = smul.u32 16, %s18
      %p225 = scmp.lt.s32.totalorder %s224, 63
      %s226 = scalar_select %p225, %s224, 63
      %p227 = scmp.lt.s32.totalorder %s19, 0
      %s228 = scalar_select %p227, %s19, 0
      %s229 = sadd.s32 %s228, %s226
      %s230 = smul.addr %s229, 8
      %s231 = scalar_lea.vmem %s3, %s230
      %s232 = smul.u32 16, %s18
      %v233 = vld [vmem:[%s216] sm:$0xff]
      %v234 = vld [vmem:[%s216 + $0x8] sm:$0xff]
      %v235 = vld [vmem:[%s216 + $0x10] sm:$0xff]
      %v236 = vld [vmem:[%s216 + $0x18] sm:$0xff]
      %v237 = vld [vmem:[%s216 + $0x20] sm:$0xff]
      %v238 = vld [vmem:[%s216 + $0x28] sm:$0xff]
      %v239 = vld [vmem:[%s216 + $0x30] sm:$0xff]
      %v240 = vld [vmem:[%s216 + $0x38] sm:$0xff]
      %v241 = vld [vmem:[%s216 + $0x40] sm:$0xff]
      %v242 = vld [vmem:[%s216 + $0x48] sm:$0xff]
      %v243 = vld [vmem:[%s216 + $0x50] sm:$0xff]
      %v244 = vld [vmem:[%s216 + $0x58] sm:$0xff]
      %v245 = vld [vmem:[%s216 + $0x60] sm:$0xff]
      %v246 = vld [vmem:[%s216 + $0x68] sm:$0xff]
      %v247 = vld [vmem:[%s216 + $0x70] sm:$0xff]
      %v248 = vld [vmem:[%s216 + $0x78] sm:$0xff]
      %v249 = vld [vmem:[%s220] sm:$0x1]
      %v251 = vlaneseq
      %v252 = vshrl.u32 %v251, 7
      %v253 = vsub.s32 0, %v252
      %v254 = vrot.slane %v249, %v253
      %v256 = vmul.f32 %v233, %v254
      %v257 = vmul.f32 %v234, %v254
      %v258 = vmul.f32 %v235, %v254
      %v259 = vmul.f32 %v236, %v254
      %v260 = vmul.f32 %v237, %v254
      %v261 = vmul.f32 %v238, %v254
      %v262 = vmul.f32 %v239, %v254
      %v263 = vmul.f32 %v240, %v254
      %v264 = vmul.f32 %v241, %v254
      %v265 = vmul.f32 %v242, %v254
      %v266 = vmul.f32 %v243, %v254
      %v267 = vmul.f32 %v244, %v254
      %v268 = vmul.f32 %v245, %v254
      %v269 = vmul.f32 %v246, %v254
      %v270 = vmul.f32 %v247, %v254
      %v271 = vmul.f32 %v248, %v254
      %v272 = vld [vmem:[%s223] sm:$0x1]
      %v274 = vlaneseq
      %v275 = vshrl.u32 %v274, 7
      %v276 = vsub.s32 0, %v275
      %v277 = vrot.slane %v272, %v276
      %v279 = vadd.f32 %v256, %v277
      %v280 = vadd.f32 %v257, %v277
      %v281 = vadd.f32 %v258, %v277
      %v282 = vadd.f32 %v259, %v277
      %v283 = vadd.f32 %v260, %v277
      %v284 = vadd.f32 %v261, %v277
      %v285 = vadd.f32 %v262, %v277
      %v286 = vadd.f32 %v263, %v277
      %v287 = vadd.f32 %v264, %v277
      %v288 = vadd.f32 %v265, %v277
      %v289 = vadd.f32 %v266, %v277
      %v290 = vadd.f32 %v267, %v277
      %v291 = vadd.f32 %v268, %v277
      %v292 = vadd.f32 %v269, %v277
      %v293 = vadd.f32 %v270, %v277
      %v294 = vadd.f32 %v271, %v277
      %v295 = vmax.f32 %v279, 0.0
      %v296 = vmax.f32 %v280, 0.0
      %v297 = vmax.f32 %v281, 0.0
      %v298 = vmax.f32 %v282, 0.0
      %v299 = vmax.f32 %v283, 0.0
      %v300 = vmax.f32 %v284, 0.0
      %v301 = vmax.f32 %v285, 0.0
      %v302 = vmax.f32 %v286, 0.0
      %v303 = vmax.f32 %v287, 0.0
      %v304 = vmax.f32 %v288, 0.0
      %v305 = vmax.f32 %v289, 0.0
      %v306 = vmax.f32 %v290, 0.0
      %v307 = vmax.f32 %v291, 0.0
      %v308 = vmax.f32 %v292, 0.0
      %v309 = vmax.f32 %v293, 0.0
      %v310 = vmax.f32 %v294, 0.0
      %311 = vst [vmem:[%s231] sm:$0xff] %v295
      %312 = vst [vmem:[%s231 + $0x8] sm:$0xff] %v296
      %313 = vst [vmem:[%s231 + $0x10] sm:$0xff] %v297
      %314 = vst [vmem:[%s231 + $0x18] sm:$0xff] %v298
      %315 = vst [vmem:[%s231 + $0x20] sm:$0xff] %v299
      %316 = vst [vmem:[%s231 + $0x28] sm:$0xff] %v300
      %317 = vst [vmem:[%s231 + $0x30] sm:$0xff] %v301
      %318 = vst [vmem:[%s231 + $0x38] sm:$0xff] %v302
      %319 = vst [vmem:[%s231 + $0x40] sm:$0xff] %v303
      %320 = vst [vmem:[%s231 + $0x48] sm:$0xff] %v304
      %321 = vst [vmem:[%s231 + $0x50] sm:$0xff] %v305
      %322 = vst [vmem:[%s231 + $0x58] sm:$0xff] %v306
      %323 = vst [vmem:[%s231 + $0x60] sm:$0xff] %v307
      %324 = vst [vmem:[%s231 + $0x68] sm:$0xff] %v308
      %325 = vst [vmem:[%s231 + $0x70] sm:$0xff] %v309
      %326 = vst [vmem:[%s231 + $0x78] sm:$0xff] %v310
      %s327 = smul.u32 16, %s18
      %p328 = scmp.lt.s32.totalorder %s327, 63
      %s329 = scalar_select %p328, %s327, 63
      %p330 = scmp.lt.s32.totalorder %s19, 0
      %s331 = scalar_select %p330, %s19, 0
      %s332 = sadd.s32 %s331, %s329
      %s333 = smul.addr %s332, 8
      %s334 = scalar_lea.vmem %s3, %s333
      // Predicated region
      $region33: #{attgan_forward.18} parent=31 // pred_check
        %p335 = pneg %p126
      $region34: #{attgan_forward.18} parent=31 // pred_check_branch
        %337 = sbr.rel (%p335) target = $region36
      $region35: #{attgan_forward.18} parent=31 // pred_region
        %s338 = smul.u32 16, %s18
      $region36: #{attgan_forward.18} parent=31 // pred_fallthru
        _
    $region32: #{attgan_forward.18} parent=5 // pred_fallthru
      _
    %p339 = scmp.le.s32.totalorder 2, %s9
    // Predicated region
    $region37: #{attgan_forward.18} parent=5 // pred_check
      %p340 = pneg %p339
    $region38: #{attgan_forward.18} parent=5 // pred_check_branch
      %342 = sbr.rel (%p340) target = $region40
    $region39: #{attgan_forward.18} parent=5 // pred_region
      %s343 = ssub.s32 %s9, 2
      // Predicated region
      $region41: #{attgan_forward.18} parent=39 // pred_check
        %p344 = pneg %p132
      $region42: #{attgan_forward.18} parent=39 // pred_check_branch
        %346 = sbr.rel (%p344) target = $region44
      $region43: #{attgan_forward.18} parent=39 // pred_region
        %s347 = smul.u32 16, %s20
        %p348 = scmp.lt.s32.totalorder %s347, 63
        %s349 = scalar_select %p348, %s347, 63
        %p350 = scmp.lt.s32.totalorder %s21, 0
        %s351 = scalar_select %p350, %s21, 0
        %s352 = sadd.s32 %s351, %s349
        %s353 = smul.addr %s352, 8
        %s354 = scalar_lea.vmem %s3, %s353
      $region44: #{attgan_forward.18} parent=39 // pred_fallthru
        _
    $region40: #{attgan_forward.18} parent=5 // pred_fallthru
      _
  $region6: #{attgan_forward.18} parent=0 // loop_footer
    %s13 = sadd.s32 1, %s9
  $region7: #{attgan_forward.18} parent=0 // loop_footer_branch
    %8 = sbr.rel target = $region3
  $region8: #{attgan_forward.18} parent=0 // loop_exit
    _

// kernel: attgan_forward.17
$region0: #{attgan_forward.17}
  #allocation0 [shape = 'u32[]', space=smem, size = 0x4, offset = 0x4, fixed_abs, tag = 'smem constant byte address 0x4 - core index']
  #allocation1 [shape = 'u32[144,128]{1,0:T(1,128)}', space=vmem, size = 0x12000, scoped, tag = 'internal scratch']
  #allocation2 [shape = 'f32[128,128]{1,0:T(8,128)}', space=vmem, size = 0x10000, scoped, tag = 'scratch operand']
  %s0 = inlined_call_operand.vmem [shape: bf16[4,128,256], index: 0, kind: input, shape index: {}]
  %s1 = inlined_call_operand.vmem [shape: bf16[4,256,128], index: 1, kind: input, shape index: {}]
  %s2 = inlined_call_operand.vmem [shape: f32[1,128], index: 2, kind: input, shape index: {}]
  %s3 = inlined_call_operand.vmem [shape: f32[4,128,128], index: 3, kind: output, shape index: {0}]
  %s4 = inlined_call_operand.vmem [shape: f32[4,8,128], index: 4, kind: output, shape index: {1}]
  %5 = xla_tuple %s3, %s4
  %s6 = sld [smem:[#allocation0]]
  $region102: #{attgan_forward.17} parent=0
    _
  %s8 = ssub.s32 1, %s6
  %s9 = scalar_select 0, %s8, %s6
  $region1: #{attgan_forward.17} parent=0
    #allocation3 [shape = 'u8[65536]{0}', space=vmem, size = 0x10000, scoped, tag = 'input window, operand 0']
    loop: start=0, step=1, limit=10
    $region2: #{attgan_forward.17} parent=1 // loop_pre_header
      _
    $region3: #{attgan_forward.17} parent=1 // loop_header
      %s11 = sphi 0, %s15
      %p12 = scmp.ge.s32.totalorder %s11, 10
      %s18 = sphi 0, %s44
      %s19 = sphi 0, %s40
      %s20 = sphi 0, %s36
      %s21 = sphi 0, %s32
      %s22 = sphi 0, %s18
      %s23 = sphi 0, %s19
      %s24 = sphi 0, %s20
      %s25 = sphi 0, %s21
      %s26 = sphi 0, %s22
      %s27 = sphi 0, %s23
      %s28 = sphi 0, %s24
      %s29 = sphi 0, %s25
      %s51 = sphi 0, %s53
      %s54 = sphi 0, %s51
      %s55 = sphi 0, %s54
      %s71 = sphi 0, %s55
      %s81 = sphi 0, %s83
      %s84 = sphi 0, %s81
      %s85 = sphi 0, %s84
      %s101 = sphi 0, %s85
      %s107 = sphi 0, %s109
      %s110 = sphi 0, %s107
      %s111 = sphi 0, %s110
      %s127 = sphi 0, %s111
      %s137 = sphi 0, %s139
      %s140 = sphi 0, %s137
      %s141 = sphi 0, %s140
      %s157 = sphi 0, %s141
      %s167 = sphi 0, %s169
      %s170 = sphi 0, %s167
      %s171 = sphi 0, %s170
      %s187 = sphi 0, %s171
    $region4: #{attgan_forward.17} parent=1 // loop_header_branch
      %14 = sbr.rel (%p12) target = $region8
    $region5: #{attgan_forward.17} parent=1 // loop_body
      %s16 = ssub.s32 %s11, 1
      %s17 = ssub.s32 %s11, 2
      %s30 = sadd.s32 1, %s21
      %p31 = scmp.ge.s32.totalorder %s30, 2
      %s32 = scalar_select %p31, 0, %s30
      %s33 = sadd.s32 1, %s20
      %s34 = scalar_select %p31, %s33, %s20
      %p35 = scmp.ge.s32.totalorder %s34, 1
      %s36 = scalar_select %p35, 0, %s34
      %s37 = sadd.s32 1, %s19
      %s38 = scalar_select %p35, %s37, %s19
      %p39 = scmp.ge.s32.totalorder %s38, 1
      %s40 = scalar_select %p39, 0, %s38
      %s41 = sadd.s32 1, %s18
      %s42 = scalar_select %p39, %s41, %s18
      %p43 = scmp.ge.s32.totalorder %s42, 4
      %s44 = scalar_select %p43, 0, %s42
      %s45 = ssub.s32 %s18, %s44
      %s46 = ssub.s32 %s19, %s40
      %s47 = sor.u32 %s45, %s46
      %s48 = ssub.s32 %s21, %s32
      %s49 = sor.u32 %s47, %s48
      %p50 = scmp.eq.s32.totalorder %s49, 0
      %s52 = sadd.s32 %s51, 1
      %s53 = scalar_select %p50, %s51, %s52
      %p56 = pneg %p50
      %p57 = scmp.eq.s32.totalorder %s11, 7
      %p58 = por %p56, %p57
      %p59 = scmp.ne.s32.totalorder %s51, %s54
      %p60 = scmp.eq.s32.totalorder %s11, 0
      %p61 = por %p59, %p60
      %p62 = scmp.ne.s32.totalorder %s51, %s54
      %p63 = scmp.eq.s32.totalorder %s16, 7
      %p64 = por %p62, %p63
      %p65 = scmp.ne.s32.totalorder %s54, %s55
      %p66 = scmp.eq.s32.totalorder %s16, 0
      %p67 = por %p65, %p66
      %p68 = scmp.ne.s32.totalorder %s54, %s55
      %p69 = scmp.eq.s32.totalorder %s17, 7
      %p70 = por %p68, %p69
      %p72 = scmp.ne.s32.totalorder %s55, %s71
      %p73 = scmp.eq.s32.totalorder %s17, 0
      %p74 = por %p72, %p73
      %s75 = ssub.s32 %s18, %s44
      %s76 = ssub.s32 %s21, %s32
      %s77 = sor.u32 %s75, %s76
      %s78 = ssub.s32 %s20, %s36
      %s79 = sor.u32 %s77, %s78
      %p80 = scmp.eq.s32.totalorder %s79, 0
      %s82 = sadd.s32 %s81, 1
      %s83 = scalar_select %p80, %s81, %s82
      %p86 = pneg %p80
      %p87 = scmp.eq.s32.totalorder %s11, 7
      %p88 = por %p86, %p87
      %p89 = scmp.ne.s32.totalorder %s81, %s84
      %p90 = scmp.eq.s32.totalorder %s11, 0
      %p91 = por %p89, %p90
      %p92 = scmp.ne.s32.totalorder %s81, %s84
      %p93 = scmp.eq.s32.totalorder %s16, 7
      %p94 = por %p92, %p93
      %p95 = scmp.ne.s32.totalorder %s84, %s85
      %p96 = scmp.eq.s32.totalorder %s16, 0
      %p97 = por %p95, %p96
      %p98 = scmp.ne.s32.totalorder %s84, %s85
      %p99 = scmp.eq.s32.totalorder %s17, 7
      %p100 = por %p98, %p99
      %p102 = scmp.ne.s32.totalorder %s85, %s101
      %p103 = scmp.eq.s32.totalorder %s17, 0
      %p104 = por %p102, %p103
      %s105 = ssub.s32 %s20, %s36
      %p106 = scmp.eq.s32.totalorder %s105, 0
      %s108 = sadd.s32 %s107, 1
      %s109 = scalar_select %p106, %s107, %s108
      %p112 = pneg %p106
      %p113 = scmp.eq.s32.totalorder %s11, 7
      %p114 = por %p112, %p113
      %p115 = scmp.ne.s32.totalorder %s107, %s110
      %p116 = scmp.eq.s32.totalorder %s11, 0
      %p117 = por %p115, %p116
      %p118 = scmp.ne.s32.totalorder %s107, %s110
      %p119 = scmp.eq.s32.totalorder %s16, 7
      %p120 = por %p118, %p119
      %p121 = scmp.ne.s32.totalorder %s110, %s111
      %p122 = scmp.eq.s32.totalorder %s16, 0
      %p123 = por %p121, %p122
      %p124 = scmp.ne.s32.totalorder %s110, %s111
      %p125 = scmp.eq.s32.totalorder %s17, 7
      %p126 = por %p124, %p125
      %p128 = scmp.ne.s32.totalorder %s111, %s127
      %p129 = scmp.eq.s32.totalorder %s17, 0
      %p130 = por %p128, %p129
      %s131 = ssub.s32 %s18, %s44
      %s132 = ssub.s32 %s19, %s40
      %s133 = sor.u32 %s131, %s132
      %s134 = ssub.s32 %s20, %s36
      %s135 = sor.u32 %s133, %s134
      %p136 = scmp.eq.s32.totalorder %s135, 0
      %s138 = sadd.s32 %s137, 1
      %s139 = scalar_select %p136, %s137, %s138
      %p142 = pneg %p136
      %p143 = scmp.eq.s32.totalorder %s11, 7
      %p144 = por %p142, %p143
      %p145 = scmp.ne.s32.totalorder %s137, %s140
      %p146 = scmp.eq.s32.totalorder %s11, 0
      %p147 = por %p145, %p146
      %p148 = scmp.ne.s32.totalorder %s137, %s140
      %p149 = scmp.eq.s32.totalorder %s16, 7
      %p150 = por %p148, %p149
      %p151 = scmp.ne.s32.totalorder %s140, %s141
      %p152 = scmp.eq.s32.totalorder %s16, 0
      %p153 = por %p151, %p152
      %p154 = scmp.ne.s32.totalorder %s140, %s141
      %p155 = scmp.eq.s32.totalorder %s17, 7
      %p156 = por %p154, %p155
      %p158 = scmp.ne.s32.totalorder %s141, %s157
      %p159 = scmp.eq.s32.totalorder %s17, 0
      %p160 = por %p158, %p159
      %s161 = ssub.s32 %s18, %s44
      %s162 = ssub.s32 %s19, %s40
      %s163 = sor.u32 %s161, %s162
      %s164 = ssub.s32 %s20, %s36
      %s165 = sor.u32 %s163, %s164
      %p166 = scmp.eq.s32.totalorder %s165, 0
      %s168 = sadd.s32 %s167, 1
      %s169 = scalar_select %p166, %s167, %s168
      %p172 = pneg %p166
      %p173 = scmp.eq.s32.totalorder %s11, 7
      %p174 = por %p172, %p173
      %p175 = scmp.ne.s32.totalorder %s167, %s170
      %p176 = scmp.eq.s32.totalorder %s11, 0
      %p177 = por %p175, %p176
      %p178 = scmp.ne.s32.totalorder %s167, %s170
      %p179 = scmp.eq.s32.totalorder %s16, 7
      %p180 = por %p178, %p179
      %p181 = scmp.ne.s32.totalorder %s170, %s171
      %p182 = scmp.eq.s32.totalorder %s16, 0
      %p183 = por %p181, %p182
      %p184 = scmp.ne.s32.totalorder %s170, %s171
      %p185 = scmp.eq.s32.totalorder %s17, 7
      %p186 = por %p184, %p185
      %p188 = scmp.ne.s32.totalorder %s171, %s187
      %p189 = scmp.eq.s32.totalorder %s17, 0
      %p190 = por %p188, %p189
      %p191 = scmp.le.s32.totalorder 1, %s11
      %p192 = scmp.lt.s32.totalorder %s11, 9
      %p193 = pnand %p191, %p192
      %p194 = pneg %p193
      // Predicated region
      $region9: #{attgan_forward.17} parent=5 // pred_check
        _
      $region10: #{attgan_forward.17} parent=5 // pred_check_branch
        %196 = sbr.rel (%p193) target = $region12
      $region11: #{attgan_forward.17} parent=5 // pred_region
        %s197 = ssub.s32 %s11, 1
        // Predicated region
        $region13: #{attgan_forward.17} parent=11 // pred_check
          %p198 = pneg %p123
        $region14: #{attgan_forward.17} parent=11 // pred_check_branch
          %200 = sbr.rel (%p198) target = $region16
        $region15: #{attgan_forward.17} parent=11 // pred_region
          %p201 = scmp.lt.s32.totalorder %s24, 0
          %s202 = scalar_select %p201, %s24, 0
          %s203 = scalar_lea.vmem %s2, %s202
        $region16: #{attgan_forward.17} parent=11 // pred_fallthru
          _
      $region12: #{attgan_forward.17} parent=5 // pred_fallthru
        _
      %p204 = scmp.lt.s32.totalorder %s11, 8
      // Predicated region
      $region17: #{attgan_forward.17} parent=5 // pred_check
        %p205 = pneg %p204
      $region18: #{attgan_forward.17} parent=5 // pred_check_branch
        %207 = sbr.rel (%p205) target = $region20
      $region19: #{attgan_forward.17} parent=5 // pred_region
        // Predicated region
        $region21: #{attgan_forward.17} parent=19 // pred_check
          %p208 = pneg %p61
        $region22: #{attgan_forward.17} parent=19 // pred_check_branch
          %210 = sbr.rel (%p208) target = $region24
        $region23: #{attgan_forward.17} parent=19 // pred_region
          %s211 = sand.u32 %s51, 1
          %s212 = sand.u32 %s51, 1
          %s213 = smul.addr %s212, 64
          %s214 = scalar_lea.vmem [#allocation3], %s213
          %s215 = smul.u32 16, %s19
          %s216 = smul.addr %s215, 2
          %s217 = sadd.s32 %s21, %s216
          %s218 = smul.addr %s18, 32
          %s219 = sadd.s32 %s217, %s218
          %s220 = smul.addr %s219, 4
          %s221 = scalar_lea.vmem %s0, %s220
          // Predicated region
          $region25: #{attgan_forward.17} parent=23 // pred_check
            _
          $region26: #{attgan_forward.17} parent=23 // pred_check_branch
            %223 = sbr.rel (0) target = $region28
          $region27: #{attgan_forward.17} parent=23 // pred_region
            // Predicated region
            $region29: #{attgan_forward.17} parent=27 // pred_check
              _
            $region30: #{attgan_forward.17} parent=27 // pred_check_branch
              %225 = sbr.rel target = $region32
            $region31: #{attgan_forward.17} parent=27 // pred_region
              // Predicated region
              $region44: #{attgan_forward.17} parent=31 // pred_check
                _
              $region45: #{attgan_forward.17} parent=31 // pred_check_branch
                %271 = sbr.rel (0) target = $region47
              $region46: #{attgan_forward.17} parent=31 // pred_region
                loop: start=0, step=1, limit=1
                $region48: #{attgan_forward.17} parent=46 // loop_pre_header
                  _
                $region49: #{attgan_forward.17} parent=46 // loop_header
                  %s273 = sphi 0, %s277
                  %p274 = scmp.ge.s32.totalorder %s273, 1
                  %s278 = sphi %s221, %s221
                  %s279 = sphi %s214, %s214
                $region50: #{attgan_forward.17} parent=46 // loop_header_branch
                  %276 = sbr.rel (%p274) target = $region54
                $region51: #{attgan_forward.17} parent=46 // loop_body
                  _
                $region52: #{attgan_forward.17} parent=46 // loop_footer
                  %s277 = sadd.s32 1, %s273
                $region53: #{attgan_forward.17} parent=46 // loop_footer_branch
                  %272 = sbr.rel target = $region49
                $region54: #{attgan_forward.17} parent=46 // loop_exit
                  _
                %s281 = ssub.s32 16, 1
                loop: start=0, step=1, limit=1
                $region55: #{attgan_forward.17} parent=46 // loop_pre_header
                  _
                $region56: #{attgan_forward.17} parent=46 // loop_header
                  %s283 = sphi 0, %s287
                  %p284 = scmp.ge.s32.totalorder %s283, 1
                  %s288 = sphi %s221, %s221
                  %s289 = sphi %s214, %s214
                $region57: #{attgan_forward.17} parent=46 // loop_header_branch
                  %286 = sbr.rel (%p284) target = $region61
                $region58: #{attgan_forward.17} parent=46 // loop_body
                  %v290 = vld [vmem:[%s288] sm:%s281]
                  %291 = vst [vmem:[%s289] sm:%s281] %v290
                  %v292 = vld [vmem:[%s288 + $0x8] sm:%s281]
                  %293 = vst [vmem:[%s289 + $0x4] sm:%s281] %v292
                  %v294 = vld [vmem:[%s288 + $0x10] sm:%s281]
                  %295 = vst [vmem:[%s289 + $0x8] sm:%s281] %v294
                  %v296 = vld [vmem:[%s288 + $0x18] sm:%s281]
                  %297 = vst [vmem:[%s289 + $0xc] sm:%s281] %v296
                  %v298 = vld [vmem:[%s288 + $0x20] sm:%s281]
                  %299 = vst [vmem:[%s289 + $0x10] sm:%s281] %v298
                  %v300 = vld [vmem:[%s288 + $0x28] sm:%s281]
                  %301 = vst [vmem:[%s289 + $0x14] sm:%s281] %v300
                  %v302 = vld [vmem:[%s288 + $0x30] sm:%s281]
                  %303 = vst [vmem:[%s289 + $0x18] sm:%s281] %v302
                  %v304 = vld [vmem:[%s288 + $0x38] sm:%s281]
                  %305 = vst [vmem:[%s289 + $0x1c] sm:%s281] %v304
                  %v306 = vld [vmem:[%s288 + $0x40] sm:%s281]
                  %307 = vst [vmem:[%s289 + $0x20] sm:%s281] %v306
                  %v308 = vld [vmem:[%s288 + $0x48] sm:%s281]
                  %309 = vst [vmem:[%s289 + $0x24] sm:%s281] %v308
                  %v310 = vld [vmem:[%s288 + $0x50] sm:%s281]
                  %311 = vst [vmem:[%s289 + $0x28] sm:%s281] %v310
                  %v312 = vld [vmem:[%s288 + $0x58] sm:%s281]
                  %313 = vst [vmem:[%s289 + $0x2c] sm:%s281] %v312
                  %v314 = vld [vmem:[%s288 + $0x60] sm:%s281]
                  %315 = vst [vmem:[%s289 + $0x30] sm:%s281] %v314
                  %v316 = vld [vmem:[%s288 + $0x68] sm:%s281]
                  %317 = vst [vmem:[%s289 + $0x34] sm:%s281] %v316
                  %v318 = vld [vmem:[%s288 + $0x70] sm:%s281]
                  %319 = vst [vmem:[%s289 + $0x38] sm:%s281] %v318
                  %v320 = vld [vmem:[%s288 + $0x78] sm:%s281]
                  %321 = vst [vmem:[%s289 + $0x3c] sm:%s281] %v320
                $region59: #{attgan_forward.17} parent=46 // loop_footer
                  %s287 = sadd.s32 1, %s283
                $region60: #{attgan_forward.17} parent=46 // loop_footer_branch
                  %282 = sbr.rel target = $region56
                $region61: #{attgan_forward.17} parent=46 // loop_exit
                  _
              $region47: #{attgan_forward.17} parent=31 // pred_fallthru
                _
            $region32: #{attgan_forward.17} parent=27 // pred_fallthru
              _
            // Predicated region
            $region33: #{attgan_forward.17} parent=27 // pred_check
              _
            $region34: #{attgan_forward.17} parent=27 // pred_check_branch
              %227 = sbr.rel (0) target = $region36
            $region35: #{attgan_forward.17} parent=27 // pred_region
              %s229 = ssub.s32 16, 1
              loop: start=0, step=1, limit=1
              $region37: #{attgan_forward.17} parent=35 // loop_pre_header
                _
              $region38: #{attgan_forward.17} parent=35 // loop_header
                %s231 = sphi 0, %s235
                %p232 = scmp.ge.s32.totalorder %s231, 1
                %s236 = sphi %s221, %s221
                %s237 = sphi %s214, %s214
              $region39: #{attgan_forward.17} parent=35 // loop_header_branch
                %234 = sbr.rel (%p232) target = $region43
              $region40: #{attgan_forward.17} parent=35 // loop_body
                %v238 = vld [vmem:[%s236] sm:%s229]
                %239 = vst [vmem:[%s237] sm:%s229] %v238
                %v240 = vld [vmem:[%s236 + $0x8] sm:%s229]
                %241 = vst [vmem:[%s237 + $0x4] sm:%s229] %v240
                %v242 = vld [vmem:[%s236 + $0x10] sm:%s229]
                %243 = vst [vmem:[%s237 + $0x8] sm:%s229] %v242
                %v244 = vld [vmem:[%s236 + $0x18] sm:%s229]
                %245 = vst [vmem:[%s237 + $0xc] sm:%s229] %v244
                %v246 = vld [vmem:[%s236 + $0x20] sm:%s229]
                %247 = vst [vmem:[%s237 + $0x10] sm:%s229] %v246
                %v248 = vld [vmem:[%s236 + $0x28] sm:%s229]
                %249 = vst [vmem:[%s237 + $0x14] sm:%s229] %v248
                %v250 = vld [vmem:[%s236 + $0x30] sm:%s229]
                %251 = vst [vmem:[%s237 + $0x18] sm:%s229] %v250
                %v252 = vld [vmem:[%s236 + $0x38] sm:%s229]
                %253 = vst [vmem:[%s237 + $0x1c] sm:%s229] %v252
                %v254 = vld [vmem:[%s236 + $0x40] sm:%s229]
                %255 = vst [vmem:[%s237 + $0x20] sm:%s229] %v254
                %v256 = vld [vmem:[%s236 + $0x48] sm:%s229]
                %257 = vst [vmem:[%s237 + $0x24] sm:%s229] %v256
                %v258 = vld [vmem:[%s236 + $0x50] sm:%s229]
                %259 = vst [vmem:[%s237 + $0x28] sm:%s229] %v258
                %v260 = vld [vmem:[%s236 + $0x58] sm:%s229]
                %261 = vst [vmem:[%s237 + $0x2c] sm:%s229] %v260
                %v262 = vld [vmem:[%s236 + $0x60] sm:%s229]
                %263 = vst [vmem:[%s237 + $0x30] sm:%s229] %v262
                %v264 = vld [vmem:[%s236 + $0x68] sm:%s229]
                %265 = vst [vmem:[%s237 + $0x34] sm:%s229] %v264
                %v266 = vld [vmem:[%s236 + $0x70] sm:%s229]
                %267 = vst [vmem:[%s237 + $0x38] sm:%s229] %v266
                %v268 = vld [vmem:[%s236 + $0x78] sm:%s229]
                %269 = vst [vmem:[%s237 + $0x3c] sm:%s229] %v268
              $region41: #{attgan_forward.17} parent=35 // loop_footer
                %s235 = sadd.s32 1, %s231
              $region42: #{attgan_forward.17} parent=35 // loop_footer_branch
                %230 = sbr.rel target = $region38
              $region43: #{attgan_forward.17} parent=35 // loop_exit
                _
            $region36: #{attgan_forward.17} parent=27 // pred_fallthru
              _
          $region28: #{attgan_forward.17} parent=23 // pred_fallthru
            _
          %322 = vnop
        $region24: #{attgan_forward.17} parent=19 // pred_fallthru
          _
        // Predicated region
        $region62: #{attgan_forward.17} parent=19 // pred_check
          %p323 = pneg %p91
        $region63: #{attgan_forward.17} parent=19 // pred_check_branch
          %325 = sbr.rel (%p323) target = $region65
        $region64: #{attgan_forward.17} parent=19 // pred_region
          %s326 = smul.u32 16, %s21
          %p327 = scmp.lt.s32.totalorder %s18, 3
          %s328 = scalar_select %p327, %s18, 3
          %p329 = scmp.lt.s32.totalorder %s326, 31
          %s330 = scalar_select %p329, %s326, 31
          %p331 = scmp.lt.s32.totalorder %s20, 0
          %s332 = scalar_select %p331, %s20, 0
          %s333 = sadd.s32 %s332, %s330
          %s334 = smul.addr %s328, 32
          %s335 = sadd.s32 %s333, %s334
          %s336 = smul.addr %s335, 4
          %s337 = scalar_lea.vmem %s1, %s336
          %s338 = smul.u32 16, %s21
        $region65: #{attgan_forward.17} parent=19 // pred_fallthru
          _
      $region20: #{attgan_forward.17} parent=5 // pred_fallthru
        _
      %p339 = scmp.le.s32.totalorder 1, %s11
      %p340 = scmp.lt.s32.totalorder %s11, 9
      %p341 = pnand %p339, %p340
      %p342 = pneg %p341
      // Predicated region
      $region66: #{attgan_forward.17} parent=5 // pred_check
        _
      $region67: #{attgan_forward.17} parent=5 // pred_check_branch
        %344 = sbr.rel (%p341) target = $region69
      $region68: #{attgan_forward.17} parent=5 // pred_region
        %s345 = ssub.s32 %s11, 1
        %s346 = sand.u32 %s54, 1
        %s347 = sand.u32 %s54, 1
        %s348 = smul.addr %s347, 64
        %s349 = scalar_lea.vmem [#allocation3], %s348
        // Predicated region
        $region70: #{attgan_forward.17} parent=68 // pred_check
          %p350 = pneg %p67
        $region71: #{attgan_forward.17} parent=68 // pred_check_branch
          %352 = sbr.rel (%p350) target = $region73
        $region72: #{attgan_forward.17} parent=68 // pred_region
          _
        $region73: #{attgan_forward.17} parent=68 // pred_fallthru
          _
        %s353 = sand.u32 %s54, 1
        %s354 = sand.u32 %s54, 1
        %s355 = smul.addr %s354, 64
        %s356 = scalar_lea.vmem [#allocation3], %s355
        %p357 = pneg %p67
        %p358 = pneg %p64
        %s359 = smul.u32 16, %s25
        %p360 = scmp.lt.s32.totalorder %s22, 3
        %s361 = scalar_select %p360, %s22, 3
        %p362 = scmp.lt.s32.totalorder %s359, 31
        %s363 = scalar_select %p362, %s359, 31
        %p364 = scmp.lt.s32.totalorder %s24, 0
        %s365 = scalar_select %p364, %s24, 0
        %s366 = sadd.s32 %s365, %s363
        %s367 = smul.addr %s361, 32
        %s368 = sadd.s32 %s366, %s367
        %s369 = smul.addr %s368, 4
        %s370 = scalar_lea.vmem %s1, %s369
        %p371 = pneg %p97
        %p372 = pneg %p94
        %p373 = scmp.lt.s32.totalorder %s24, 0
        %s374 = scalar_select %p373, %s24, 0
        %s375 = scalar_lea.vmem %s2, %s374
        %p376 = pneg %p123
        %p377 = pneg %p120
        %p378 = pneg %p153
        %p379 = pneg %p150
        %s380 = smul.u32 16, %s23
        %p381 = scmp.lt.s32.totalorder %s22, 3
        %s382 = scalar_select %p381, %s22, 3
        %p383 = scmp.lt.s32.totalorder %s380, 15
        %s384 = scalar_select %p383, %s380, 15
        %p385 = scmp.lt.s32.totalorder %s24, 0
        %s386 = scalar_select %p385, %s24, 0
        %s387 = sadd.s32 %s386, %s384
        %s388 = smul.addr %s382, 16
        %s389 = sadd.s32 %s387, %s388
        %s390 = smul.addr %s389, 8
        %s391 = scalar_lea.vmem %s3, %s390
        %p392 = pneg %p183
        %p393 = pneg %p180
        %p394 = scmp.lt.s32.totalorder %s22, 3
        %s395 = scalar_select %p394, %s22, 3
        %p396 = scmp.lt.s32.totalorder %s23, 0
        %s397 = scalar_select %p396, %s23, 0
        %p398 = scmp.lt.s32.totalorder %s24, 0
        %s399 = scalar_select %p398, %s24, 0
        %s400 = sadd.s32 %s399, %s397
        %s401 = sadd.s32 %s400, %s395
        %s402 = smul.addr %s401, 8
        %s403 = scalar_lea.vmem %s4, %s402
        %s404 = smul.u32 16, %s23
        %s405 = smul.u32 16, %s25
        %p406 = scmp.lt.s32.totalorder %s22, 3
        %s407 = scalar_select %p406, %s22, 3
        %p408 = scmp.lt.s32.totalorder %s405, 31
        %s409 = scalar_select %p408, %s405, 31
        %p410 = scmp.lt.s32.totalorder %s24, 0
        %s411 = scalar_select %p410, %s24, 0
        %s412 = sadd.s32 %s411, %s409
        %s413 = smul.addr %s407, 32
        %s414 = sadd.s32 %s412, %s413
        %s415 = smul.addr %s414, 4
        %s416 = scalar_lea.vmem %s1, %s415
        %s417 = smul.u32 16, %s25
        %p418 = scmp.lt.s32.totalorder %s24, 0
        %s419 = scalar_select %p418, %s24, 0
        %s420 = scalar_lea.vmem %s2, %s419
        %s421 = smul.u32 16, %s23
        %p422 = scmp.lt.s32.totalorder %s22, 3
        %s423 = scalar_select %p422, %s22, 3
        %p424 = scmp.lt.s32.totalorder %s421, 15
        %s425 = scalar_select %p424, %s421, 15
        %p426 = scmp.lt.s32.totalorder %s24, 0
        %s427 = scalar_select %p426, %s24, 0
        %s428 = sadd.s32 %s427, %s425
        %s429 = smul.addr %s423, 16
        %s430 = sadd.s32 %s428, %s429
        %s431 = smul.addr %s430, 8
        %s432 = scalar_lea.vmem %s3, %s431
        %s433 = smul.u32 16, %s23
        %p434 = scmp.lt.s32.totalorder %s22, 3
        %s435 = scalar_select %p434, %s22, 3
        %p436 = scmp.lt.s32.totalorder %s23, 0
        %s437 = scalar_select %p436, %s23, 0
        %p438 = scmp.lt.s32.totalorder %s24, 0
        %s439 = scalar_select %p438, %s24, 0
        %s440 = sadd.s32 %s439, %s437
        %s441 = sadd.s32 %s440, %s435
        %s442 = smul.addr %s441, 8
        %s443 = scalar_lea.vmem %s4, %s442
        %p445 = scmp.eq.s32.totalorder %s25, 0
        // Predicated region
        $region74: #{attgan_forward.17} parent=68 // pred_check
          %p446 = pneg %p445
        $region75: #{attgan_forward.17} parent=68 // pred_check_branch
          %448 = sbr.rel (%p446) target = $region77
        $region76: #{attgan_forward.17} parent=68 // pred_region
          %449 = vst [vmem:[#allocation2] sm:$0xff] 0.0
          %450 = vst [vmem:[#allocation2 + $0x8] sm:$0xff] 0.0
          %451 = vst [vmem:[#allocation2 + $0x10] sm:$0xff] 0.0
          %452 = vst [vmem:[#allocation2 + $0x18] sm:$0xff] 0.0
          %453 = vst [vmem:[#allocation2 + $0x20] sm:$0xff] 0.0
          %454 = vst [vmem:[#allocation2 + $0x28] sm:$0xff] 0.0
          %455 = vst [vmem:[#allocation2 + $0x30] sm:$0xff] 0.0
          %456 = vst [vmem:[#allocation2 + $0x38] sm:$0xff] 0.0
          %457 = vst [vmem:[#allocation2 + $0x40] sm:$0xff] 0.0
          %458 = vst [vmem:[#allocation2 + $0x48] sm:$0xff] 0.0
          %459 = vst [vmem:[#allocation2 + $0x50] sm:$0xff] 0.0
          %460 = vst [vmem:[#allocation2 + $0x58] sm:$0xff] 0.0
          %461 = vst [vmem:[#allocation2 + $0x60] sm:$0xff] 0.0
          %462 = vst [vmem:[#allocation2 + $0x68] sm:$0xff] 0.0
          %463 = vst [vmem:[#allocation2 + $0x70] sm:$0xff] 0.0
          %464 = vst [vmem:[#allocation2 + $0x78] sm:$0xff] 0.0
        $region77: #{attgan_forward.17} parent=68 // pred_fallthru
          _
        %v465 = vld [vmem:[#allocation2] sm:$0xff]
        %v466 = vld [vmem:[#allocation2 + $0x8] sm:$0xff]
        %v467 = vld [vmem:[#allocation2 + $0x10] sm:$0xff]
        %v468 = vld [vmem:[#allocation2 + $0x18] sm:$0xff]
        %v469 = vld [vmem:[#allocation2 + $0x20] sm:$0xff]
        %v470 = vld [vmem:[#allocation2 + $0x28] sm:$0xff]
        %v471 = vld [vmem:[#allocation2 + $0x30] sm:$0xff]
        %v472 = vld [vmem:[#allocation2 + $0x38] sm:$0xff]
        %v473 = vld [vmem:[#allocation2 + $0x40] sm:$0xff]
        %v474 = vld [vmem:[#allocation2 + $0x48] sm:$0xff]
        %v475 = vld [vmem:[#allocation2 + $0x50] sm:$0xff]
        %v476 = vld [vmem:[#allocation2 + $0x58] sm:$0xff]
        %v477 = vld [vmem:[#allocation2 + $0x60] sm:$0xff]
        %v478 = vld [vmem:[#allocation2 + $0x68] sm:$0xff]
        %v479 = vld [vmem:[#allocation2 + $0x70] sm:$0xff]
        %v480 = vld [vmem:[#allocation2 + $0x78] sm:$0xff]
        %v481 = vld [vmem:[%s349] sm:$0xf]
        %v482 = vld [vmem:[%s349 + $0x4] sm:$0xf]
        %v483 = vld [vmem:[%s349 + $0x8] sm:$0xf]
        %v484 = vld [vmem:[%s349 + $0xc] sm:$0xf]
        %v485 = vld [vmem:[%s349 + $0x10] sm:$0xf]
        %v486 = vld [vmem:[%s349 + $0x14] sm:$0xf]
        %v487 = vld [vmem:[%s349 + $0x18] sm:$0xf]
        %v488 = vld [vmem:[%s349 + $0x1c] sm:$0xf]
        %v489 = vld [vmem:[%s349 + $0x20] sm:$0xf]
        %v490 = vld [vmem:[%s349 + $0x24] sm:$0xf]
        %v491 = vld [vmem:[%s349 + $0x28] sm:$0xf]
        %v492 = vld [vmem:[%s349 + $0x2c] sm:$0xf]
        %v493 = vld [vmem:[%s349 + $0x30] sm:$0xf]
        %v494 = vld [vmem:[%s349 + $0x34] sm:$0xf]
        %v495 = vld [vmem:[%s349 + $0x38] sm:$0xf]
        %v496 = vld [vmem:[%s349 + $0x3c] sm:$0xf]
        %v497 = vld [vmem:[%s416] sm:$0xf]
        %v498 = vld [vmem:[%s416 + $0x4] sm:$0xf]
        %v499 = vld [vmem:[%s416 + $0x8] sm:$0xf]
        %v500 = vld [vmem:[%s416 + $0xc] sm:$0xf]
        %v501 = vld [vmem:[%s416 + $0x10] sm:$0xf]
        %v502 = vld [vmem:[%s416 + $0x14] sm:$0xf]
        %v503 = vld [vmem:[%s416 + $0x18] sm:$0xf]
        %v504 = vld [vmem:[%s416 + $0x1c] sm:$0xf]
        %v505 = vld [vmem:[%s416 + $0x20] sm:$0xf]
        %v506 = vld [vmem:[%s416 + $0x24] sm:$0xf]
        %v507 = vld [vmem:[%s416 + $0x28] sm:$0xf]
        %v508 = vld [vmem:[%s416 + $0x2c] sm:$0xf]
        %v509 = vld [vmem:[%s416 + $0x30] sm:$0xf]
        %v510 = vld [vmem:[%s416 + $0x34] sm:$0xf]
        %v511 = vld [vmem:[%s416 + $0x38] sm:$0xf]
        %v512 = vld [vmem:[%s416 + $0x3c] sm:$0xf]
        %v529 = vunpack.c.l.b16 %v481
        %v530 = vunpack.c.l.b16 %v482
        %v531 = vunpack.c.l.b16 %v483
        %v532 = vunpack.c.l.b16 %v484
        %v533 = vunpack.c.l.b16 %v485
        %v534 = vunpack.c.l.b16 %v486
        %v535 = vunpack.c.l.b16 %v487
        %v536 = vunpack.c.l.b16 %v488
        %v537 = vunpack.c.l.b16 %v489
        %v538 = vunpack.c.l.b16 %v490
        %v539 = vunpack.c.l.b16 %v491
        %v540 = vunpack.c.l.b16 %v492
        %v541 = vunpack.c.l.b16 %v493
        %v542 = vunpack.c.l.b16 %v494
        %v543 = vunpack.c.l.b16 %v495
        %v544 = vunpack.c.l.b16 %v496
        %v545 = vpack.c.b16 %v530, %v529
        %v546 = vpack.c.b16 %v532, %v531
        %v547 = vpack.c.b16 %v534, %v533
        %v548 = vpack.c.b16 %v536, %v535
        %v549 = vpack.c.b16 %v538, %v537
        %v550 = vpack.c.b16 %v540, %v539
        %v551 = vpack.c.b16 %v542, %v541
        %v552 = vpack.c.b16 %v544, %v543
        %v577 = vunpack.c.l.b16 %v497
        %v578 = vunpack.c.l.b16 %v498
        %v579 = vunpack.c.l.b16 %v499
        %v580 = vunpack.c.l.b16 %v500
        %v581 = vunpack.c.l.b16 %v501
        %v582 = vunpack.c.l.b16 %v502
        %v583 = vunpack.c.l.b16 %v503
        %v584 = vunpack.c.l.b16 %v504
        %v585 = vunpack.c.l.b16 %v505
        %v586 = vunpack.c.l.b16 %v506
        %v587 = vunpack.c.l.b16 %v507
        %v588 = vunpack.c.l.b16 %v508
        %v589 = vunpack.c.l.b16 %v509
        %v590 = vunpack.c.l.b16 %v510
        %v591 = vunpack.c.l.b16 %v511
        %v592 = vunpack.c.l.b16 %v512
        %v593 = vpack.c.b16 %v578, %v577
        %v594 = vpack.c.b16 %v580, %v579
        %v595 = vpack.c.b16 %v582, %v581
        %v596 = vpack.c.b16 %v584, %v583
        %v597 = vpack.c.b16 %v586, %v585
        %v598 = vpack.c.b16 %v588, %v587
        %v599 = vpack.c.b16 %v590, %v589
        %v600 = vpack.c.b16 %v592, %v591
        %609 = vmatprep.subr.bf16.mxu0 0
        %610 = vmatpush1.bf16.msra.mxu0 %v600
        %611 = vmatprep.subr.bf16.mxu0 0
        %612 = vmatpush1.bf16.msra.mxu0 %v599
        %613 = vmatprep.subr.bf16.mxu0 0
        %614 = vmatpush1.bf16.msra.mxu0 %v598
        %615 = vmatprep.subr.bf16.mxu0 0
        %616 = vmatpush1.bf16.msra.mxu0 %v597
        %617 = vmatprep.subr.bf16.mxu0 0
        %618 = vmatpush1.bf16.msra.mxu0 %v596
        %619 = vmatprep.subr.bf16.mxu0 0
        %620 = vmatpush1.bf16.msra.mxu0 %v595
        %621 = vmatprep.subr.bf16.mxu0 0
        %622 = vmatpush1.bf16.msra.mxu0 %v594
        %623 = vmatprep.subr.bf16.mxu0 0
        %624 = vmatpush1.bf16.msra.mxu0 %v593
        %625 = vmatprep.subr.bf16.mxu0 0
        %626 = vmatpush2.bf16.msra.mxu0 0
        %627 = vmatprep.subr.bf16.mxu0 0
        %628 = vmatpush2.bf16.msra.mxu0 0
        %629 = vmatprep.subr.bf16.mxu0 0
        %630 = vmatpush2.bf16.msra.mxu0 0
        %631 = vmatprep.subr.bf16.mxu0 0
        %632 = vmatpush2.bf16.msra.mxu0 0
        %633 = vmatprep.subr.bf16.mxu0 0
        %634 = vmatpush2.bf16.msra.mxu0 0
        %635 = vmatprep.subr.bf16.mxu0 0
        %636 = vmatpush2.bf16.msra.mxu0 0
        %637 = vmatprep.subr.bf16.mxu0 0
        %638 = vmatpush2.bf16.msra.mxu0 0
        %639 = vmatprep.subr.bf16.mxu0 0
        %640 = vmatpush2.bf16.msra.mxu0 0
        %641 = vmatprep.mubr.bf16.mxu0 0
        %642 = vmatmul.mubr.bf16.gmra.mxu0 %v545
        %v643 = vpop.f32.mrf.mxu0
        %v644 = vadd.f32 0.0, %v643
        %v645 = vpop.f32.mrf.mxu0
        %v646 = vpop.f32.mrf.mxu0
        %v647 = vadd.f32 0.0, %v646
        %v648 = vpop.f32.mrf.mxu0
        %649 = vmatprep.mubr.bf16.mxu0 0
        %650 = vmatmul.mubr.bf16.gmra.mxu0 %v546
        %v651 = vpop.f32.mrf.mxu0
        %v652 = vadd.f32 0.0, %v651
        %v653 = vpop.f32.mrf.mxu0
        %v654 = vpop.f32.mrf.mxu0
        %v655 = vadd.f32 0.0, %v654
        %v656 = vpop.f32.mrf.mxu0
        %657 = vmatprep.mubr.bf16.mxu0 0
        %658 = vmatmul.mubr.bf16.gmra.mxu0 %v547
        %v659 = vpop.f32.mrf.mxu0
        %v660 = vadd.f32 0.0, %v659
        %v661 = vpop.f32.mrf.mxu0
        %v662 = vpop.f32.mrf.mxu0
        %v663 = vadd.f32 0.0, %v662
        %v664 = vpop.f32.mrf.mxu0
        %665 = vmatprep.mubr.bf16.mxu0 0
        %666 = vmatmul.mubr.bf16.gmra.mxu0 %v548
        %v667 = vpop.f32.mrf.mxu0
        %v668 = vadd.f32 0.0, %v667
        %v669 = vpop.f32.mrf.mxu0
        %v670 = vpop.f32.mrf.mxu0
        %v671 = vadd.f32 0.0, %v670
        %v672 = vpop.f32.mrf.mxu0
        %673 = vmatprep.mubr.bf16.mxu0 0
        %674 = vmatmul.mubr.bf16.gmra.mxu0 %v549
        %v675 = vpop.f32.mrf.mxu0
        %v676 = vadd.f32 0.0, %v675
        %v677 = vpop.f32.mrf.mxu0
        %v678 = vpop.f32.mrf.mxu0
        %v679 = vadd.f32 0.0, %v678
        %v680 = vpop.f32.mrf.mxu0
        %681 = vmatprep.mubr.bf16.mxu0 0
        %682 = vmatmul.mubr.bf16.gmra.mxu0 %v550
        %v683 = vpop.f32.mrf.mxu0
        %v684 = vadd.f32 0.0, %v683
        %v685 = vpop.f32.mrf.mxu0
        %v686 = vpop.f32.mrf.mxu0
        %v687 = vadd.f32 0.0, %v686
        %v688 = vpop.f32.mrf.mxu0
        %689 = vmatprep.mubr.bf16.mxu0 0
        %690 = vmatmul.mubr.bf16.gmra.mxu0 %v551
        %v691 = vpop.f32.mrf.mxu0
        %v692 = vadd.f32 0.0, %v691
        %v693 = vpop.f32.mrf.mxu0
        %v694 = vpop.f32.mrf.mxu0
        %v695 = vadd.f32 0.0, %v694
        %v696 = vpop.f32.mrf.mxu0
        %697 = vmatprep.mubr.bf16.mxu0 0
        %698 = vmatmul.mubr.bf16.gmra.mxu0 %v552
        %v699 = vpop.f32.mrf.mxu0
        %v700 = vadd.f32 0.0, %v699
        %v701 = vpop.f32.mrf.mxu0
        %v702 = vpop.f32.mrf.mxu0
        %v703 = vadd.f32 0.0, %v702
        %v704 = vpop.f32.mrf.mxu0
        %705 = vdwg.mxu0
        %v706 = vadd.f32 %v465, %v644
        %v707 = vadd.f32 %v466, %v647
        %v708 = vadd.f32 %v467, %v652
        %v709 = vadd.f32 %v468, %v655
        %v710 = vadd.f32 %v469, %v660
        %v711 = vadd.f32 %v470, %v663
        %v712 = vadd.f32 %v471, %v668
        %v713 = vadd.f32 %v472, %v671
        %v714 = vadd.f32 %v473, %v676
        %v715 = vadd.f32 %v474, %v679
        %v716 = vadd.f32 %v475, %v684
        %v717 = vadd.f32 %v476, %v687
        %v718 = vadd.f32 %v477, %v692
        %v719 = vadd.f32 %v478, %v695
        %v720 = vadd.f32 %v479, %v700
        %v721 = vadd.f32 %v480, %v703
        %722 = vst [vmem:[#allocation2] sm:$0xff] %v706
        %723 = vst [vmem:[#allocation2 + $0x8] sm:$0xff] %v707
        %724 = vst [vmem:[#allocation2 + $0x10] sm:$0xff] %v708
        %725 = vst [vmem:[#allocation2 + $0x18] sm:$0xff] %v709
        %726 = vst [vmem:[#allocation2 + $0x20] sm:$0xff] %v710
        %727 = vst [vmem:[#allocation2 + $0x28] sm:$0xff] %v711
        %728 = vst [vmem:[#allocation2 + $0x30] sm:$0xff] %v712
        %729 = vst [vmem:[#allocation2 + $0x38] sm:$0xff] %v713
        %730 = vst [vmem:[#allocation2 + $0x40] sm:$0xff] %v714
        %731 = vst [vmem:[#allocation2 + $0x48] sm:$0xff] %v715
        %732 = vst [vmem:[#allocation2 + $0x50] sm:$0xff] %v716
        %733 = vst [vmem:[#allocation2 + $0x58] sm:$0xff] %v717
        %734 = vst [vmem:[#allocation2 + $0x60] sm:$0xff] %v718
        %735 = vst [vmem:[#allocation2 + $0x68] sm:$0xff] %v719
        %736 = vst [vmem:[#allocation2 + $0x70] sm:$0xff] %v720
        %737 = vst [vmem:[#allocation2 + $0x78] sm:$0xff] %v721
        %p738 = scmp.eq.s32.totalorder %s25, 1
        // Predicated region
        $region78: #{attgan_forward.17} parent=68 // pred_check
          %p739 = pneg %p738
        $region79: #{attgan_forward.17} parent=68 // pred_check_branch
          %741 = sbr.rel (%p739) target = $region81
        $region80: #{attgan_forward.17} parent=68 // pred_region
          %v742 = vld [vmem:[#allocation2] sm:$0xff]
          %v743 = vld [vmem:[#allocation2 + $0x8] sm:$0xff]
          %v744 = vld [vmem:[#allocation2 + $0x10] sm:$0xff]
          %v745 = vld [vmem:[#allocation2 + $0x18] sm:$0xff]
          %v746 = vld [vmem:[#allocation2 + $0x20] sm:$0xff]
          %v747 = vld [vmem:[#allocation2 + $0x28] sm:$0xff]
          %v748 = vld [vmem:[#allocation2 + $0x30] sm:$0xff]
          %v749 = vld [vmem:[#allocation2 + $0x38] sm:$0xff]
          %v750 = vld [vmem:[#allocation2 + $0x40] sm:$0xff]
          %v751 = vld [vmem:[#allocation2 + $0x48] sm:$0xff]
          %v752 = vld [vmem:[#allocation2 + $0x50] sm:$0xff]
          %v753 = vld [vmem:[#allocation2 + $0x58] sm:$0xff]
          %v754 = vld [vmem:[#allocation2 + $0x60] sm:$0xff]
          %v755 = vld [vmem:[#allocation2 + $0x68] sm:$0xff]
          %v756 = vld [vmem:[#allocation2 + $0x70] sm:$0xff]
          %v757 = vld [vmem:[#allocation2 + $0x78] sm:$0xff]
          %v758 = vadd.f32 %v742, %v743
          %v759 = vadd.f32 %v758, %v744
          %v760 = vadd.f32 %v759, %v745
          %v761 = vadd.f32 %v760, %v746
          %v762 = vadd.f32 %v761, %v747
          %v763 = vadd.f32 %v762, %v748
          %v764 = vadd.f32 %v763, %v749
          %v765 = vadd.f32 %v764, %v750
          %v766 = vadd.f32 %v765, %v751
          %v767 = vadd.f32 %v766, %v752
          %v768 = vadd.f32 %v767, %v753
          %v769 = vadd.f32 %v768, %v754
          %v770 = vadd.f32 %v769, %v755
          %v771 = vadd.f32 %v770, %v756
          %v772 = vadd.f32 %v771, %v757
          %v773 = vrot.slane %v772, 4
          %v774 = vadd.f32 %v772, %v773
          %v775 = vrot.slane %v774, 2
          %v776 = vadd.f32 %v774, %v775
          %v777 = vrot.slane %v776, 1
          %v778 = vadd.f32 %v776, %v777
          %v779 = vmul.f32 %v742, %v742
          %v780 = vmul.f32 %v743, %v743
          %v781 = vmul.f32 %v744, %v744
          %v782 = vmul.f32 %v745, %v745
          %v783 = vmul.f32 %v746, %v746
          %v784 = vmul.f32 %v747, %v747
          %v785 = vmul.f32 %v748, %v748
          %v786 = vmul.f32 %v749, %v749
          %v787 = vmul.f32 %v750, %v750
          %v788 = vmul.f32 %v751, %v751
          %v789 = vmul.f32 %v752, %v752
          %v790 = vmul.f32 %v753, %v753
          %v791 = vmul.f32 %v754, %v754
          %v792 = vmul.f32 %v755, %v755
          %v793 = vmul.f32 %v756, %v756
          %v794 = vmul.f32 %v757, %v757
          %v795 = vadd.f32 %v779, %v780
          %v796 = vadd.f32 %v795, %v781
          %v797 = vadd.f32 %v796, %v782
          %v798 = vadd.f32 %v797, %v783
          %v799 = vadd.f32 %v798, %v784
          %v800 = vadd.f32 %v799, %v785
          %v801 = vadd.f32 %v800, %v786
          %v802 = vadd.f32 %v801, %v787
          %v803 = vadd.f32 %v802, %v788
          %v804 = vadd.f32 %v803, %v789
          %v805 = vadd.f32 %v804, %v790
          %v806 = vadd.f32 %v805, %v791
          %v807 = vadd.f32 %v806, %v792
          %v808 = vadd.f32 %v807, %v793
          %v809 = vadd.f32 %v808, %v794
          %v810 = vrot.slane %v809, 4
          %v811 = vadd.f32 %v809, %v810
          %v812 = vrot.slane %v811, 2
          %v813 = vadd.f32 %v811, %v812
          %v814 = vrot.slane %v813, 1
          %v815 = vadd.f32 %v813, %v814
          %vm816 = vcmask 1040384
          %v817 = vsel %vm816, %v778, %v815
          %vm818 = vcmask 1041408
          %v819 = vsel %vm818, %v817, 0.0
          %820 = vst [vmem:[%s443] sm:$0xff] %v819
          %v821 = vld [vmem:[%s420] sm:$0x1]
          %v823 = vlaneseq
          %v824 = vshrl.u32 %v823, 7
          %v825 = vsub.s32 0, %v824
          %v826 = vrot.slane %v821, %v825
          %v828 = vadd.f32 %v742, %v826
          %v829 = vadd.f32 %v743, %v826
          %v830 = vadd.f32 %v744, %v826
          %v831 = vadd.f32 %v745, %v826
          %v832 = vadd.f32 %v746, %v826
          %v833 = vadd.f32 %v747, %v826
          %v834 = vadd.f32 %v748, %v826
          %v835 = vadd.f32 %v749, %v826
          %v836 = vadd.f32 %v750, %v826
          %v837 = vadd.f32 %v751, %v826
          %v838 = vadd.f32 %v752, %v826
          %v839 = vadd.f32 %v753, %v826
          %v840 = vadd.f32 %v754, %v826
          %v841 = vadd.f32 %v755, %v826
          %v842 = vadd.f32 %v756, %v826
          %v843 = vadd.f32 %v757, %v826
          %844 = vst [vmem:[%s432] sm:$0xff] %v828
          %845 = vst [vmem:[%s432 + $0x8] sm:$0xff] %v829
          %846 = vst [vmem:[%s432 + $0x10] sm:$0xff] %v830
          %847 = vst [vmem:[%s432 + $0x18] sm:$0xff] %v831
          %848 = vst [vmem:[%s432 + $0x20] sm:$0xff] %v832
          %849 = vst [vmem:[%s432 + $0x28] sm:$0xff] %v833
          %850 = vst [vmem:[%s432 + $0x30] sm:$0xff] %v834
          %851 = vst [vmem:[%s432 + $0x38] sm:$0xff] %v835
          %852 = vst [vmem:[%s432 + $0x40] sm:$0xff] %v836
          %853 = vst [vmem:[%s432 + $0x48] sm:$0xff] %v837
          %854 = vst [vmem:[%s432 + $0x50] sm:$0xff] %v838
          %855 = vst [vmem:[%s432 + $0x58] sm:$0xff] %v839
          %856 = vst [vmem:[%s432 + $0x60] sm:$0xff] %v840
          %857 = vst [vmem:[%s432 + $0x68] sm:$0xff] %v841
          %858 = vst [vmem:[%s432 + $0x70] sm:$0xff] %v842
          %859 = vst [vmem:[%s432 + $0x78] sm:$0xff] %v843
        $region81: #{attgan_forward.17} parent=68 // pred_fallthru
          _
        %s860 = smul.u32 16, %s23
        %p861 = scmp.lt.s32.totalorder %s22, 3
        %s862 = scalar_select %p861, %s22, 3
        %p863 = scmp.lt.s32.totalorder %s860, 15
        %s864 = scalar_select %p863, %s860, 15
        %p865 = scmp.lt.s32.totalorder %s24, 0
        %s866 = scalar_select %p865, %s24, 0
        %s867 = sadd.s32 %s866, %s864
        %s868 = smul.addr %s862, 16
        %s869 = sadd.s32 %s867, %s868
        %s870 = smul.addr %s869, 8
        %s871 = scalar_lea.vmem %s3, %s870
        %p872 = scmp.lt.s32.totalorder %s22, 3
        %s873 = scalar_select %p872, %s22, 3
        %p874 = scmp.lt.s32.totalorder %s23, 0
        %s875 = scalar_select %p874, %s23, 0
        %p876 = scmp.lt.s32.totalorder %s24, 0
        %s877 = scalar_select %p876, %s24, 0
        %s878 = sadd.s32 %s877, %s875
        %s879 = sadd.s32 %s878, %s873
        %s880 = smul.addr %s879, 8
        %s881 = scalar_lea.vmem %s4, %s880
        // Predicated region
        $region82: #{attgan_forward.17} parent=68 // pred_check
          %p882 = pneg %p150
        $region83: #{attgan_forward.17} parent=68 // pred_check_branch
          %884 = sbr.rel (%p882) target = $region85
        $region84: #{attgan_forward.17} parent=68 // pred_region
          %s885 = smul.u32 16, %s23
        $region85: #{attgan_forward.17} parent=68 // pred_fallthru
          _
        // Predicated region
        $region86: #{attgan_forward.17} parent=68 // pred_check
          %p886 = pneg %p180
        $region87: #{attgan_forward.17} parent=68 // pred_check_branch
          %888 = sbr.rel (%p886) target = $region89
        $region88: #{attgan_forward.17} parent=68 // pred_region
          _
        $region89: #{attgan_forward.17} parent=68 // pred_fallthru
          _
      $region69: #{attgan_forward.17} parent=5 // pred_fallthru
        _
      %p889 = scmp.le.s32.totalorder 2, %s11
      // Predicated region
      $region90: #{attgan_forward.17} parent=5 // pred_check
        %p890 = pneg %p889
      $region91: #{attgan_forward.17} parent=5 // pred_check_branch
        %892 = sbr.rel (%p890) target = $region93
      $region92: #{attgan_forward.17} parent=5 // pred_region
        %s893 = ssub.s32 %s11, 2
        // Predicated region
        $region94: #{attgan_forward.17} parent=92 // pred_check
          %p894 = pneg %p156
        $region95: #{attgan_forward.17} parent=92 // pred_check_branch
          %896 = sbr.rel (%p894) target = $region97
        $region96: #{attgan_forward.17} parent=92 // pred_region
          %s897 = smul.u32 16, %s27
          %p898 = scmp.lt.s32.totalorder %s26, 3
          %s899 = scalar_select %p898, %s26, 3
          %p900 = scmp.lt.s32.totalorder %s897, 15
          %s901 = scalar_select %p900, %s897, 15
          %p902 = scmp.lt.s32.totalorder %s28, 0
          %s903 = scalar_select %p902, %s28, 0
          %s904 = sadd.s32 %s903, %s901
          %s905 = smul.addr %s899, 16
          %s906 = sadd.s32 %s904, %s905
          %s907 = smul.addr %s906, 8
          %s908 = scalar_lea.vmem %s3, %s907
        $region97: #{attgan_forward.17} parent=92 // pred_fallthru
          _
        // Predicated region
        $region98: #{attgan_forward.17} parent=92 // pred_check
          %p909 = pneg %p186
        $region99: #{attgan_forward.17} parent=92 // pred_check_branch
          %911 = sbr.rel (%p909) target = $region101
        $region100: #{attgan_forward.17} parent=92 // pred_region
          %p912 = scmp.lt.s32.totalorder %s26, 3
          %s913 = scalar_select %p912, %s26, 3
          %p914 = scmp.lt.s32.totalorder %s27, 0
          %s915 = scalar_select %p914, %s27, 0
          %p916 = scmp.lt.s32.totalorder %s28, 0
          %s917 = scalar_select %p916, %s28, 0
          %s918 = sadd.s32 %s917, %s915
          %s919 = sadd.s32 %s918, %s913
          %s920 = smul.addr %s919, 8
          %s921 = scalar_lea.vmem %s4, %s920
        $region101: #{attgan_forward.17} parent=92 // pred_fallthru
          _
      $region93: #{attgan_forward.17} parent=5 // pred_fallthru
        _
    $region6: #{attgan_forward.17} parent=1 // loop_footer
      %s15 = sadd.s32 1, %s11
    $region7: #{attgan_forward.17} parent=1 // loop_footer_branch
      %10 = sbr.rel target = $region3
    $region8: #{attgan_forward.17} parent=1 // loop_exit
      _

// kernel: attgan_forward.21
$region0: #{attgan_forward.21}
  #allocation0 [shape = 'u32[]', space=smem, size = 0x4, offset = 0x4, fixed_abs, tag = 'smem constant byte address 0x4 - core index']
  #allocation1 [shape = 'u32[144,128]{1,0:T(1,128)}', space=vmem, size = 0x12000, scoped, tag = 'internal scratch']
  #allocation2 [shape = 'f32[128,128]{1,0:T(8,128)}', space=vmem, size = 0x10000, scoped, tag = 'scratch operand']
  %s0 = inlined_call_operand.vmem [shape: bf16[4,128,128], index: 0, kind: input, shape index: {}]
  %s1 = inlined_call_operand.vmem [shape: bf16[4,128,128], index: 1, kind: input, shape index: {}]
  %s2 = inlined_call_operand.vmem [shape: f32[1,128], index: 2, kind: input, shape index: {}]
  %s3 = inlined_call_operand.vmem [shape: f32[4,128,128], index: 3, kind: output, shape index: {0}]
  %s4 = inlined_call_operand.hbm [shape: f32[4,8,128], index: 4, kind: output, shape index: {1}]
  %5 = xla_tuple %s3, %s4
  %s6 = sld [smem:[#allocation0]]
  $region61: #{attgan_forward.21} parent=0
    _
  %s8 = ssub.s32 1, %s6
  %s9 = scalar_select 0, %s8, %s6
  $region1: #{attgan_forward.21} parent=0
    #allocation3 [shape = 'u8[8192]{0}', space=vmem, size = 0x2000, scoped, tag = 'output window, operand 1']
    #allocation4 [shape = 's32[2]{0}', space=sflag, size = 0x8, scoped, tag = 'scoped memory for attgan_forward.21']
    %10 = vsyncpa [#allocation4], 0
    %s11 = scalar_lea.sflag [#allocation4], 1
    %12 = vsyncpa %s11, 0
    loop: start=0, step=1, limit=6
    $region2: #{attgan_forward.21} parent=1 // loop_pre_header
      _
    $region3: #{attgan_forward.21} parent=1 // loop_header
      %s14 = sphi 0, %s18
      %p15 = scmp.ge.s32.totalorder %s14, 6
      %s21 = sphi 0, %s47
      %s22 = sphi 0, %s43
      %s23 = sphi 0, %s39
      %s24 = sphi 0, %s35
      %s25 = sphi 0, %s21
      %s26 = sphi 0, %s22
      %s27 = sphi 0, %s23
      %s28 = sphi 0, %s24
      %s29 = sphi 0, %s25
      %s30 = sphi 0, %s26
      %s31 = sphi 0, %s27
      %s32 = sphi 0, %s28
      %s54 = sphi 0, %s56
      %s57 = sphi 0, %s54
      %s58 = sphi 0, %s57
      %s74 = sphi 0, %s58
      %s84 = sphi 0, %s86
      %s87 = sphi 0, %s84
      %s88 = sphi 0, %s87
      %s104 = sphi 0, %s88
      %s110 = sphi 0, %s112
      %s113 = sphi 0, %s110
      %s114 = sphi 0, %s113
      %s130 = sphi 0, %s114
      %s140 = sphi 0, %s142
      %s143 = sphi 0, %s140
      %s144 = sphi 0, %s143
      %s160 = sphi 0, %s144
      %s170 = sphi 0, %s172
      %s173 = sphi 0, %s170
      %s174 = sphi 0, %s173
      %s190 = sphi 0, %s174
    $region4: #{attgan_forward.21} parent=1 // loop_header_branch
      %17 = sbr.rel (%p15) target = $region8
    $region5: #{attgan_forward.21} parent=1 // loop_body
      %s19 = ssub.s32 %s14, 1
      %s20 = ssub.s32 %s14, 2
      %s33 = sadd.s32 1, %s24
      %p34 = scmp.ge.s32.totalorder %s33, 1
      %s35 = scalar_select %p34, 0, %s33
      %s36 = sadd.s32 1, %s23
      %s37 = scalar_select %p34, %s36, %s23
      %p38 = scmp.ge.s32.totalorder %s37, 1
      %s39 = scalar_select %p38, 0, %s37
      %s40 = sadd.s32 1, %s22
      %s41 = scalar_select %p38, %s40, %s22
      %p42 = scmp.ge.s32.totalorder %s41, 1
      %s43 = scalar_select %p42, 0, %s41
      %s44 = sadd.s32 1, %s21
      %s45 = scalar_select %p42, %s44, %s21
      %p46 = scmp.ge.s32.totalorder %s45, 4
      %s47 = scalar_select %p46, 0, %s45
      %s48 = ssub.s32 %s21, %s47
      %s49 = ssub.s32 %s22, %s43
      %s50 = sor.u32 %s48, %s49
      %s51 = ssub.s32 %s24, %s35
      %s52 = sor.u32 %s50, %s51
      %p53 = scmp.eq.s32.totalorder %s52, 0
      %s55 = sadd.s32 %s54, 1
      %s56 = scalar_select %p53, %s54, %s55
      %p59 = pneg %p53
      %p60 = scmp.eq.s32.totalorder %s14, 3
      %p61 = por %p59, %p60
      %p62 = scmp.ne.s32.totalorder %s54, %s57
      %p63 = scmp.eq.s32.totalorder %s14, 0
      %p64 = por %p62, %p63
      %p65 = scmp.ne.s32.totalorder %s54, %s57
      %p66 = scmp.eq.s32.totalorder %s19, 3
      %p67 = por %p65, %p66
      %p68 = scmp.ne.s32.totalorder %s57, %s58
      %p69 = scmp.eq.s32.totalorder %s19, 0
      %p70 = por %p68, %p69
      %p71 = scmp.ne.s32.totalorder %s57, %s58
      %p72 = scmp.eq.s32.totalorder %s20, 3
      %p73 = por %p71, %p72
      %p75 = scmp.ne.s32.totalorder %s58, %s74
      %p76 = scmp.eq.s32.totalorder %s20, 0
      %p77 = por %p75, %p76
      %s78 = ssub.s32 %s21, %s47
      %s79 = ssub.s32 %s24, %s35
      %s80 = sor.u32 %s78, %s79
      %s81 = ssub.s32 %s23, %s39
      %s82 = sor.u32 %s80, %s81
      %p83 = scmp.eq.s32.totalorder %s82, 0
      %s85 = sadd.s32 %s84, 1
      %s86 = scalar_select %p83, %s84, %s85
      %p89 = pneg %p83
      %p90 = scmp.eq.s32.totalorder %s14, 3
      %p91 = por %p89, %p90
      %p92 = scmp.ne.s32.totalorder %s84, %s87
      %p93 = scmp.eq.s32.totalorder %s14, 0
      %p94 = por %p92, %p93
      %p95 = scmp.ne.s32.totalorder %s84, %s87
      %p96 = scmp.eq.s32.totalorder %s19, 3
      %p97 = por %p95, %p96
      %p98 = scmp.ne.s32.totalorder %s87, %s88
      %p99 = scmp.eq.s32.totalorder %s19, 0
      %p100 = por %p98, %p99
      %p101 = scmp.ne.s32.totalorder %s87, %s88
      %p102 = scmp.eq.s32.totalorder %s20, 3
      %p103 = por %p101, %p102
      %p105 = scmp.ne.s32.totalorder %s88, %s104
      %p106 = scmp.eq.s32.totalorder %s20, 0
      %p107 = por %p105, %p106
      %s108 = ssub.s32 %s23, %s39
      %p109 = scmp.eq.s32.totalorder %s108, 0
      %s111 = sadd.s32 %s110, 1
      %s112 = scalar_select %p109, %s110, %s111
      %p115 = pneg %p109
      %p116 = scmp.eq.s32.totalorder %s14, 3
      %p117 = por %p115, %p116
      %p118 = scmp.ne.s32.totalorder %s110, %s113
      %p119 = scmp.eq.s32.totalorder %s14, 0
      %p120 = por %p118, %p119
      %p121 = scmp.ne.s32.totalorder %s110, %s113
      %p122 = scmp.eq.s32.totalorder %s19, 3
      %p123 = por %p121, %p122
      %p124 = scmp.ne.s32.totalorder %s113, %s114
      %p125 = scmp.eq.s32.totalorder %s19, 0
      %p126 = por %p124, %p125
      %p127 = scmp.ne.s32.totalorder %s113, %s114
      %p128 = scmp.eq.s32.totalorder %s20, 3
      %p129 = por %p127, %p128
      %p131 = scmp.ne.s32.totalorder %s114, %s130
      %p132 = scmp.eq.s32.totalorder %s20, 0
      %p133 = por %p131, %p132
      %s134 = ssub.s32 %s21, %s47
      %s135 = ssub.s32 %s22, %s43
      %s136 = sor.u32 %s134, %s135
      %s137 = ssub.s32 %s23, %s39
      %s138 = sor.u32 %s136, %s137
      %p139 = scmp.eq.s32.totalorder %s138, 0
      %s141 = sadd.s32 %s140, 1
      %s142 = scalar_select %p139, %s140, %s141
      %p145 = pneg %p139
      %p146 = scmp.eq.s32.totalorder %s14, 3
      %p147 = por %p145, %p146
      %p148 = scmp.ne.s32.totalorder %s140, %s143
      %p149 = scmp.eq.s32.totalorder %s14, 0
      %p150 = por %p148, %p149
      %p151 = scmp.ne.s32.totalorder %s140, %s143
      %p152 = scmp.eq.s32.totalorder %s19, 3
      %p153 = por %p151, %p152
      %p154 = scmp.ne.s32.totalorder %s143, %s144
      %p155 = scmp.eq.s32.totalorder %s19, 0
      %p156 = por %p154, %p155
      %p157 = scmp.ne.s32.totalorder %s143, %s144
      %p158 = scmp.eq.s32.totalorder %s20, 3
      %p159 = por %p157, %p158
      %p161 = scmp.ne.s32.totalorder %s144, %s160
      %p162 = scmp.eq.s32.totalorder %s20, 0
      %p163 = por %p161, %p162
      %s164 = ssub.s32 %s21, %s47
      %s165 = ssub.s32 %s22, %s43
      %s166 = sor.u32 %s164, %s165
      %s167 = ssub.s32 %s23, %s39
      %s168 = sor.u32 %s166, %s167
      %p169 = scmp.eq.s32.totalorder %s168, 0
      %s171 = sadd.s32 %s170, 1
      %s172 = scalar_select %p169, %s170, %s171
      %p175 = pneg %p169
      %p176 = scmp.eq.s32.totalorder %s14, 3
      %p177 = por %p175, %p176
      %p178 = scmp.ne.s32.totalorder %s170, %s173
      %p179 = scmp.eq.s32.totalorder %s14, 0
      %p180 = por %p178, %p179
      %p181 = scmp.ne.s32.totalorder %s170, %s173
      %p182 = scmp.eq.s32.totalorder %s19, 3
      %p183 = por %p181, %p182
      %p184 = scmp.ne.s32.totalorder %s173, %s174
      %p185 = scmp.eq.s32.totalorder %s19, 0
      %p186 = por %p184, %p185
      %p187 = scmp.ne.s32.totalorder %s173, %s174
      %p188 = scmp.eq.s32.totalorder %s20, 3
      %p189 = por %p187, %p188
      %p191 = scmp.ne.s32.totalorder %s174, %s190
      %p192 = scmp.eq.s32.totalorder %s20, 0
      %p193 = por %p191, %p192
      %p194 = scmp.le.s32.totalorder 1, %s14
      %p195 = scmp.lt.s32.totalorder %s14, 5
      %p196 = pnand %p194, %p195
      %p197 = pneg %p196
      // Predicated region
      $region9: #{attgan_forward.21} parent=5 // pred_check
        _
      $region10: #{attgan_forward.21} parent=5 // pred_check_branch
        %199 = sbr.rel (%p196) target = $region12
      $region11: #{attgan_forward.21} parent=5 // pred_region
        %s200 = ssub.s32 %s14, 1
        // Predicated region
        $region13: #{attgan_forward.21} parent=11 // pred_check
          %p201 = pneg %p126
        $region14: #{attgan_forward.21} parent=11 // pred_check_branch
          %203 = sbr.rel (%p201) target = $region16
        $region15: #{attgan_forward.21} parent=11 // pred_region
          %p204 = scmp.lt.s32.totalorder %s27, 0
          %s205 = scalar_select %p204, %s27, 0
          %s206 = scalar_lea.vmem %s2, %s205
        $region16: #{attgan_forward.21} parent=11 // pred_fallthru
          _
      $region12: #{attgan_forward.21} parent=5 // pred_fallthru
        _
      %p207 = scmp.lt.s32.totalorder %s14, 4
      // Predicated region
      $region17: #{attgan_forward.21} parent=5 // pred_check
        %p208 = pneg %p207
      $region18: #{attgan_forward.21} parent=5 // pred_check_branch
        %210 = sbr.rel (%p208) target = $region20
      $region19: #{attgan_forward.21} parent=5 // pred_region
        // Predicated region
        $region21: #{attgan_forward.21} parent=19 // pred_check
          %p211 = pneg %p64
        $region22: #{attgan_forward.21} parent=19 // pred_check_branch
          %213 = sbr.rel (%p211) target = $region24
        $region23: #{attgan_forward.21} parent=19 // pred_region
          %s214 = smul.u32 16, %s22
          %p215 = scmp.lt.s32.totalorder %s21, 3
          %s216 = scalar_select %p215, %s21, 3
          %p217 = scmp.lt.s32.totalorder %s214, 15
          %s218 = scalar_select %p217, %s214, 15
          %p219 = scmp.lt.s32.totalorder %s24, 0
          %s220 = scalar_select %p219, %s24, 0
          %s221 = sadd.s32 %s220, %s218
          %s222 = smul.addr %s216, 16
          %s223 = sadd.s32 %s221, %s222
          %s224 = smul.addr %s223, 4
          %s225 = scalar_lea.vmem %s0, %s224
          %s226 = smul.u32 16, %s22
        $region24: #{attgan_forward.21} parent=19 // pred_fallthru
          _
        // Predicated region
        $region25: #{attgan_forward.21} parent=19 // pred_check
          %p227 = pneg %p94
        $region26: #{attgan_forward.21} parent=19 // pred_check_branch
          %229 = sbr.rel (%p227) target = $region28
        $region27: #{attgan_forward.21} parent=19 // pred_region
          %s230 = smul.u32 16, %s24
          %p231 = scmp.lt.s32.totalorder %s21, 3
          %s232 = scalar_select %p231, %s21, 3
          %p233 = scmp.lt.s32.totalorder %s230, 15
          %s234 = scalar_select %p233, %s230, 15
          %p235 = scmp.lt.s32.totalorder %s23, 0
          %s236 = scalar_select %p235, %s23, 0
          %s237 = sadd.s32 %s236, %s234
          %s238 = smul.addr %s232, 16
          %s239 = sadd.s32 %s237, %s238
          %s240 = smul.addr %s239, 4
          %s241 = scalar_lea.vmem %s1, %s240
          %s242 = smul.u32 16, %s24
        $region28: #{attgan_forward.21} parent=19 // pred_fallthru
          _
      $region20: #{attgan_forward.21} parent=5 // pred_fallthru
        _
      %p243 = scmp.le.s32.totalorder 1, %s14
      %p244 = scmp.lt.s32.totalorder %s14, 5
      %p245 = pnand %p243, %p244
      %p246 = pneg %p245
      // Predicated region
      $region29: #{attgan_forward.21} parent=5 // pred_check
        _
      $region30: #{attgan_forward.21} parent=5 // pred_check_branch
        %248 = sbr.rel (%p245) target = $region32
      $region31: #{attgan_forward.21} parent=5 // pred_region
        %s249 = ssub.s32 %s14, 1
        %s250 = smul.u32 16, %s26
        %p251 = scmp.lt.s32.totalorder %s25, 3
        %s252 = scalar_select %p251, %s25, 3
        %p253 = scmp.lt.s32.totalorder %s250, 15
        %s254 = scalar_select %p253, %s250, 15
        %p255 = scmp.lt.s32.totalorder %s28, 0
        %s256 = scalar_select %p255, %s28, 0
        %s257 = sadd.s32 %s256, %s254
        %s258 = smul.addr %s252, 16
        %s259 = sadd.s32 %s257, %s258
        %s260 = smul.addr %s259, 4
        %s261 = scalar_lea.vmem %s0, %s260
        %p262 = pneg %p70
        %p263 = pneg %p67
        %s264 = smul.u32 16, %s28
        %p265 = scmp.lt.s32.totalorder %s25, 3
        %s266 = scalar_select %p265, %s25, 3
        %p267 = scmp.lt.s32.totalorder %s264, 15
        %s268 = scalar_select %p267, %s264, 15
        %p269 = scmp.lt.s32.totalorder %s27, 0
        %s270 = scalar_select %p269, %s27, 0
        %s271 = sadd.s32 %s270, %s268
        %s272 = smul.addr %s266, 16
        %s273 = sadd.s32 %s271, %s272
        %s274 = smul.addr %s273, 4
        %s275 = scalar_lea.vmem %s1, %s274
        %p276 = pneg %p100
        %p277 = pneg %p97
        %p278 = scmp.lt.s32.totalorder %s27, 0
        %s279 = scalar_select %p278, %s27, 0
        %s280 = scalar_lea.vmem %s2, %s279
        %p281 = pneg %p126
        %p282 = pneg %p123
        %p283 = pneg %p156
        %p284 = pneg %p153
        %s285 = smul.u32 16, %s26
        %p286 = scmp.lt.s32.totalorder %s25, 3
        %s287 = scalar_select %p286, %s25, 3
        %p288 = scmp.lt.s32.totalorder %s285, 15
        %s289 = scalar_select %p288, %s285, 15
        %p290 = scmp.lt.s32.totalorder %s27, 0
        %s291 = scalar_select %p290, %s27, 0
        %s292 = sadd.s32 %s291, %s289
        %s293 = smul.addr %s287, 16
        %s294 = sadd.s32 %s292, %s293
        %s295 = smul.addr %s294, 8
        %s296 = scalar_lea.vmem %s3, %s295
        %p297 = pneg %p186
        %p298 = pneg %p183
        %s299 = sand.u32 %s173, 1
        %s300 = scalar_lea.sflag [#allocation4], %s299
        %s301 = sand.u32 %s173, 1
        %s302 = smul.addr %s301, 8
        %s303 = scalar_lea.vmem [#allocation3], %s302
        %s304 = smul.u32 16, %s26
        %p305 = scmp.lt.s32.totalorder %s25, 3
        %s306 = scalar_select %p305, %s25, 3
        %p307 = scmp.lt.s32.totalorder %s304, 15
        %s308 = scalar_select %p307, %s304, 15
        %p309 = scmp.lt.s32.totalorder %s28, 0
        %s310 = scalar_select %p309, %s28, 0
        %s311 = sadd.s32 %s310, %s308
        %s312 = smul.addr %s306, 16
        %s313 = sadd.s32 %s311, %s312
        %s314 = smul.addr %s313, 4
        %s315 = scalar_lea.vmem %s0, %s314
        %s316 = smul.u32 16, %s26
        %s317 = smul.u32 16, %s28
        %p318 = scmp.lt.s32.totalorder %s25, 3
        %s319 = scalar_select %p318, %s25, 3
        %p320 = scmp.lt.s32.totalorder %s317, 15
        %s321 = scalar_select %p320, %s317, 15
        %p322 = scmp.lt.s32.totalorder %s27, 0
        %s323 = scalar_select %p322, %s27, 0
        %s324 = sadd.s32 %s323, %s321
        %s325 = smul.addr %s319, 16
        %s326 = sadd.s32 %s324, %s325
        %s327 = smul.addr %s326, 4
        %s328 = scalar_lea.vmem %s1, %s327
        %s329 = smul.u32 16, %s28
        %p330 = scmp.lt.s32.totalorder %s27, 0
        %s331 = scalar_select %p330, %s27, 0
        %s332 = scalar_lea.vmem %s2, %s331
        %s333 = smul.u32 16, %s26
        %p334 = scmp.lt.s32.totalorder %s25, 3
        %s335 = scalar_select %p334, %s25, 3
        %p336 = scmp.lt.s32.totalorder %s333, 15
        %s337 = scalar_select %p336, %s333, 15
        %p338 = scmp.lt.s32.totalorder %s27, 0
        %s339 = scalar_select %p338, %s27, 0
        %s340 = sadd.s32 %s339, %s337
        %s341 = smul.addr %s335, 16
        %s342 = sadd.s32 %s340, %s341
        %s343 = smul.addr %s342, 8
        %s344 = scalar_lea.vmem %s3, %s343
        %s345 = smul.u32 16, %s26
        %p347 = scmp.eq.s32.totalorder %s28, 0
        // Predicated region
        $region33: #{attgan_forward.21} parent=31 // pred_check
          %p348 = pneg %p347
        $region34: #{attgan_forward.21} parent=31 // pred_check_branch
          %350 = sbr.rel (%p348) target = $region36
        $region35: #{attgan_forward.21} parent=31 // pred_region
          %351 = vst [vmem:[#allocation2] sm:$0xff] 0.0
          %352 = vst [vmem:[#allocation2 + $0x8] sm:$0xff] 0.0
          %353 = vst [vmem:[#allocation2 + $0x10] sm:$0xff] 0.0
          %354 = vst [vmem:[#allocation2 + $0x18] sm:$0xff] 0.0
          %355 = vst [vmem:[#allocation2 + $0x20] sm:$0xff] 0.0
          %356 = vst [vmem:[#allocation2 + $0x28] sm:$0xff] 0.0
          %357 = vst [vmem:[#allocation2 + $0x30] sm:$0xff] 0.0
          %358 = vst [vmem:[#allocation2 + $0x38] sm:$0xff] 0.0
          %359 = vst [vmem:[#allocation2 + $0x40] sm:$0xff] 0.0
          %360 = vst [vmem:[#allocation2 + $0x48] sm:$0xff] 0.0
          %361 = vst [vmem:[#allocation2 + $0x50] sm:$0xff] 0.0
          %362 = vst [vmem:[#allocation2 + $0x58] sm:$0xff] 0.0
          %363 = vst [vmem:[#allocation2 + $0x60] sm:$0xff] 0.0
          %364 = vst [vmem:[#allocation2 + $0x68] sm:$0xff] 0.0
          %365 = vst [vmem:[#allocation2 + $0x70] sm:$0xff] 0.0
          %366 = vst [vmem:[#allocation2 + $0x78] sm:$0xff] 0.0
        $region36: #{attgan_forward.21} parent=31 // pred_fallthru
          _
        %v367 = vld [vmem:[#allocation2] sm:$0xff]
        %v368 = vld [vmem:[#allocation2 + $0x8] sm:$0xff]
        %v369 = vld [vmem:[#allocation2 + $0x10] sm:$0xff]
        %v370 = vld [vmem:[#allocation2 + $0x18] sm:$0xff]
        %v371 = vld [vmem:[#allocation2 + $0x20] sm:$0xff]
        %v372 = vld [vmem:[#allocation2 + $0x28] sm:$0xff]
        %v373 = vld [vmem:[#allocation2 + $0x30] sm:$0xff]
        %v374 = vld [vmem:[#allocation2 + $0x38] sm:$0xff]
        %v375 = vld [vmem:[#allocation2 + $0x40] sm:$0xff]
        %v376 = vld [vmem:[#allocation2 + $0x48] sm:$0xff]
        %v377 = vld [vmem:[#allocation2 + $0x50] sm:$0xff]
        %v378 = vld [vmem:[#allocation2 + $0x58] sm:$0xff]
        %v379 = vld [vmem:[#allocation2 + $0x60] sm:$0xff]
        %v380 = vld [vmem:[#allocation2 + $0x68] sm:$0xff]
        %v381 = vld [vmem:[#allocation2 + $0x70] sm:$0xff]
        %v382 = vld [vmem:[#allocation2 + $0x78] sm:$0xff]
        %v383 = vld [vmem:[%s315] sm:$0xf]
        %v384 = vld [vmem:[%s315 + $0x4] sm:$0xf]
        %v385 = vld [vmem:[%s315 + $0x8] sm:$0xf]
        %v386 = vld [vmem:[%s315 + $0xc] sm:$0xf]
        %v387 = vld [vmem:[%s315 + $0x10] sm:$0xf]
        %v388 = vld [vmem:[%s315 + $0x14] sm:$0xf]
        %v389 = vld [vmem:[%s315 + $0x18] sm:$0xf]
        %v390 = vld [vmem:[%s315 + $0x1c] sm:$0xf]
        %v391 = vld [vmem:[%s315 + $0x20] sm:$0xf]
        %v392 = vld [vmem:[%s315 + $0x24] sm:$0xf]
        %v393 = vld [vmem:[%s315 + $0x28] sm:$0xf]
        %v394 = vld [vmem:[%s315 + $0x2c] sm:$0xf]
        %v395 = vld [vmem:[%s315 + $0x30] sm:$0xf]
        %v396 = vld [vmem:[%s315 + $0x34] sm:$0xf]
        %v397 = vld [vmem:[%s315 + $0x38] sm:$0xf]
        %v398 = vld [vmem:[%s315 + $0x3c] sm:$0xf]
        %v399 = vld [vmem:[%s328] sm:$0xf]
        %v400 = vld [vmem:[%s328 + $0x4] sm:$0xf]
        %v401 = vld [vmem:[%s328 + $0x8] sm:$0xf]
        %v402 = vld [vmem:[%s328 + $0xc] sm:$0xf]
        %v403 = vld [vmem:[%s328 + $0x10] sm:$0xf]
        %v404 = vld [vmem:[%s328 + $0x14] sm:$0xf]
        %v405 = vld [vmem:[%s328 + $0x18] sm:$0xf]
        %v406 = vld [vmem:[%s328 + $0x1c] sm:$0xf]
        %v407 = vld [vmem:[%s328 + $0x20] sm:$0xf]
        %v408 = vld [vmem:[%s328 + $0x24] sm:$0xf]
        %v409 = vld [vmem:[%s328 + $0x28] sm:$0xf]
        %v410 = vld [vmem:[%s328 + $0x2c] sm:$0xf]
        %v411 = vld [vmem:[%s328 + $0x30] sm:$0xf]
        %v412 = vld [vmem:[%s328 + $0x34] sm:$0xf]
        %v413 = vld [vmem:[%s328 + $0x38] sm:$0xf]
        %v414 = vld [vmem:[%s328 + $0x3c] sm:$0xf]
        %v431 = vunpack.c.l.b16 %v383
        %v432 = vunpack.c.l.b16 %v384
        %v433 = vunpack.c.l.b16 %v385
        %v434 = vunpack.c.l.b16 %v386
        %v435 = vunpack.c.l.b16 %v387
        %v436 = vunpack.c.l.b16 %v388
        %v437 = vunpack.c.l.b16 %v389
        %v438 = vunpack.c.l.b16 %v390
        %v439 = vunpack.c.l.b16 %v391
        %v440 = vunpack.c.l.b16 %v392
        %v441 = vunpack.c.l.b16 %v393
        %v442 = vunpack.c.l.b16 %v394
        %v443 = vunpack.c.l.b16 %v395
        %v444 = vunpack.c.l.b16 %v396
        %v445 = vunpack.c.l.b16 %v397
        %v446 = vunpack.c.l.b16 %v398
        %v447 = vpack.c.b16 %v432, %v431
        %v448 = vpack.c.b16 %v434, %v433
        %v449 = vpack.c.b16 %v436, %v435
        %v450 = vpack.c.b16 %v438, %v437
        %v451 = vpack.c.b16 %v440, %v439
        %v452 = vpack.c.b16 %v442, %v441
        %v453 = vpack.c.b16 %v444, %v443
        %v454 = vpack.c.b16 %v446, %v445
        %v479 = vunpack.c.l.b16 %v399
        %v480 = vunpack.c.l.b16 %v400
        %v481 = vunpack.c.l.b16 %v401
        %v482 = vunpack.c.l.b16 %v402
        %v483 = vunpack.c.l.b16 %v403
        %v484 = vunpack.c.l.b16 %v404
        %v485 = vunpack.c.l.b16 %v405
        %v486 = vunpack.c.l.b16 %v406
        %v487 = vunpack.c.l.b16 %v407
        %v488 = vunpack.c.l.b16 %v408
        %v489 = vunpack.c.l.b16 %v409
        %v490 = vunpack.c.l.b16 %v410
        %v491 = vunpack.c.l.b16 %v411
        %v492 = vunpack.c.l.b16 %v412
        %v493 = vunpack.c.l.b16 %v413
        %v494 = vunpack.c.l.b16 %v414
        %v495 = vpack.c.b16 %v480, %v479
        %v496 = vpack.c.b16 %v482, %v481
        %v497 = vpack.c.b16 %v484, %v483
        %v498 = vpack.c.b16 %v486, %v485
        %v499 = vpack.c.b16 %v488, %v487
        %v500 = vpack.c.b16 %v490, %v489
        %v501 = vpack.c.b16 %v492, %v491
        %v502 = vpack.c.b16 %v494, %v493
        %511 = vmatprep.subr.bf16.mxu0 0
        %512 = vmatpush1.bf16.msra.mxu0 %v502
        %513 = vmatprep.subr.bf16.mxu0 0
        %514 = vmatpush1.bf16.msra.mxu0 %v501
        %515 = vmatprep.subr.bf16.mxu0 0
        %516 = vmatpush1.bf16.msra.mxu0 %v500
        %517 = vmatprep.subr.bf16.mxu0 0
        %518 = vmatpush1.bf16.msra.mxu0 %v499
        %519 = vmatprep.subr.bf16.mxu0 0
        %520 = vmatpush1.bf16.msra.mxu0 %v498
        %521 = vmatprep.subr.bf16.mxu0 0
        %522 = vmatpush1.bf16.msra.mxu0 %v497
        %523 = vmatprep.subr.bf16.mxu0 0
        %524 = vmatpush1.bf16.msra.mxu0 %v496
        %525 = vmatprep.subr.bf16.mxu0 0
        %526 = vmatpush1.bf16.msra.mxu0 %v495
        %527 = vmatprep.subr.bf16.mxu0 0
        %528 = vmatpush2.bf16.msra.mxu0 0
        %529 = vmatprep.subr.bf16.mxu0 0
        %530 = vmatpush2.bf16.msra.mxu0 0
        %531 = vmatprep.subr.bf16.mxu0 0
        %532 = vmatpush2.bf16.msra.mxu0 0
        %533 = vmatprep.subr.bf16.mxu0 0
        %534 = vmatpush2.bf16.msra.mxu0 0
        %535 = vmatprep.subr.bf16.mxu0 0
        %536 = vmatpush2.bf16.msra.mxu0 0
        %537 = vmatprep.subr.bf16.mxu0 0
        %538 = vmatpush2.bf16.msra.mxu0 0
        %539 = vmatprep.subr.bf16.mxu0 0
        %540 = vmatpush2.bf16.msra.mxu0 0
        %541 = vmatprep.subr.bf16.mxu0 0
        %542 = vmatpush2.bf16.msra.mxu0 0
        %543 = vmatprep.mubr.bf16.mxu0 0
        %544 = vmatmul.mubr.bf16.gmra.mxu0 %v447
        %v545 = vpop.f32.mrf.mxu0
        %v546 = vadd.f32 0.0, %v545
        %v547 = vpop.f32.mrf.mxu0
        %v548 = vpop.f32.mrf.mxu0
        %v549 = vadd.f32 0.0, %v548
        %v550 = vpop.f32.mrf.mxu0
        %551 = vmatprep.mubr.bf16.mxu0 0
        %552 = vmatmul.mubr.bf16.gmra.mxu0 %v448
        %v553 = vpop.f32.mrf.mxu0
        %v554 = vadd.f32 0.0, %v553
        %v555 = vpop.f32.mrf.mxu0
        %v556 = vpop.f32.mrf.mxu0
        %v557 = vadd.f32 0.0, %v556
        %v558 = vpop.f32.mrf.mxu0
        %559 = vmatprep.mubr.bf16.mxu0 0
        %560 = vmatmul.mubr.bf16.gmra.mxu0 %v449
        %v561 = vpop.f32.mrf.mxu0
        %v562 = vadd.f32 0.0, %v561
        %v563 = vpop.f32.mrf.mxu0
        %v564 = vpop.f32.mrf.mxu0
        %v565 = vadd.f32 0.0, %v564
        %v566 = vpop.f32.mrf.mxu0
        %567 = vmatprep.mubr.bf16.mxu0 0
        %568 = vmatmul.mubr.bf16.gmra.mxu0 %v450
        %v569 = vpop.f32.mrf.mxu0
        %v570 = vadd.f32 0.0, %v569
        %v571 = vpop.f32.mrf.mxu0
        %v572 = vpop.f32.mrf.mxu0
        %v573 = vadd.f32 0.0, %v572
        %v574 = vpop.f32.mrf.mxu0
        %575 = vmatprep.mubr.bf16.mxu0 0
        %576 = vmatmul.mubr.bf16.gmra.mxu0 %v451
        %v577 = vpop.f32.mrf.mxu0
        %v578 = vadd.f32 0.0, %v577
        %v579 = vpop.f32.mrf.mxu0
        %v580 = vpop.f32.mrf.mxu0
        %v581 = vadd.f32 0.0, %v580
        %v582 = vpop.f32.mrf.mxu0
        %583 = vmatprep.mubr.bf16.mxu0 0
        %584 = vmatmul.mubr.bf16.gmra.mxu0 %v452
        %v585 = vpop.f32.mrf.mxu0
        %v586 = vadd.f32 0.0, %v585
        %v587 = vpop.f32.mrf.mxu0
        %v588 = vpop.f32.mrf.mxu0
        %v589 = vadd.f32 0.0, %v588
        %v590 = vpop.f32.mrf.mxu0
        %591 = vmatprep.mubr.bf16.mxu0 0
        %592 = vmatmul.mubr.bf16.gmra.mxu0 %v453
        %v593 = vpop.f32.mrf.mxu0
        %v594 = vadd.f32 0.0, %v593
        %v595 = vpop.f32.mrf.mxu0
        %v596 = vpop.f32.mrf.mxu0
        %v597 = vadd.f32 0.0, %v596
        %v598 = vpop.f32.mrf.mxu0
        %599 = vmatprep.mubr.bf16.mxu0 0
        %600 = vmatmul.mubr.bf16.gmra.mxu0 %v454
        %v601 = vpop.f32.mrf.mxu0
        %v602 = vadd.f32 0.0, %v601
        %v603 = vpop.f32.mrf.mxu0
        %v604 = vpop.f32.mrf.mxu0
        %v605 = vadd.f32 0.0, %v604
        %v606 = vpop.f32.mrf.mxu0
        %607 = vdwg.mxu0
        %v608 = vadd.f32 %v367, %v546
        %v609 = vadd.f32 %v368, %v549
        %v610 = vadd.f32 %v369, %v554
        %v611 = vadd.f32 %v370, %v557
        %v612 = vadd.f32 %v371, %v562
        %v613 = vadd.f32 %v372, %v565
        %v614 = vadd.f32 %v373, %v570
        %v615 = vadd.f32 %v374, %v573
        %v616 = vadd.f32 %v375, %v578
        %v617 = vadd.f32 %v376, %v581
        %v618 = vadd.f32 %v377, %v586
        %v619 = vadd.f32 %v378, %v589
        %v620 = vadd.f32 %v379, %v594
        %v621 = vadd.f32 %v380, %v597
        %v622 = vadd.f32 %v381, %v602
        %v623 = vadd.f32 %v382, %v605
        %624 = vst [vmem:[#allocation2] sm:$0xff] %v608
        %625 = vst [vmem:[#allocation2 + $0x8] sm:$0xff] %v609
        %626 = vst [vmem:[#allocation2 + $0x10] sm:$0xff] %v610
        %627 = vst [vmem:[#allocation2 + $0x18] sm:$0xff] %v611
        %628 = vst [vmem:[#allocation2 + $0x20] sm:$0xff] %v612
        %629 = vst [vmem:[#allocation2 + $0x28] sm:$0xff] %v613
        %630 = vst [vmem:[#allocation2 + $0x30] sm:$0xff] %v614
        %631 = vst [vmem:[#allocation2 + $0x38] sm:$0xff] %v615
        %632 = vst [vmem:[#allocation2 + $0x40] sm:$0xff] %v616
        %633 = vst [vmem:[#allocation2 + $0x48] sm:$0xff] %v617
        %634 = vst [vmem:[#allocation2 + $0x50] sm:$0xff] %v618
        %635 = vst [vmem:[#allocation2 + $0x58] sm:$0xff] %v619
        %636 = vst [vmem:[#allocation2 + $0x60] sm:$0xff] %v620
        %637 = vst [vmem:[#allocation2 + $0x68] sm:$0xff] %v621
        %638 = vst [vmem:[#allocation2 + $0x70] sm:$0xff] %v622
        %639 = vst [vmem:[#allocation2 + $0x78] sm:$0xff] %v623
        // Predicated region
        $region37: #{attgan_forward.21} parent=31 // pred_check
          %p640 = pneg %p347
        $region38: #{attgan_forward.21} parent=31 // pred_check_branch
          %642 = sbr.rel (%p640) target = $region40
        $region39: #{attgan_forward.21} parent=31 // pred_region
          %v643 = vld [vmem:[#allocation2] sm:$0xff]
          %v644 = vld [vmem:[#allocation2 + $0x8] sm:$0xff]
          %v645 = vld [vmem:[#allocation2 + $0x10] sm:$0xff]
          %v646 = vld [vmem:[#allocation2 + $0x18] sm:$0xff]
          %v647 = vld [vmem:[#allocation2 + $0x20] sm:$0xff]
          %v648 = vld [vmem:[#allocation2 + $0x28] sm:$0xff]
          %v649 = vld [vmem:[#allocation2 + $0x30] sm:$0xff]
          %v650 = vld [vmem:[#allocation2 + $0x38] sm:$0xff]
          %v651 = vld [vmem:[#allocation2 + $0x40] sm:$0xff]
          %v652 = vld [vmem:[#allocation2 + $0x48] sm:$0xff]
          %v653 = vld [vmem:[#allocation2 + $0x50] sm:$0xff]
          %v654 = vld [vmem:[#allocation2 + $0x58] sm:$0xff]
          %v655 = vld [vmem:[#allocation2 + $0x60] sm:$0xff]
          %v656 = vld [vmem:[#allocation2 + $0x68] sm:$0xff]
          %v657 = vld [vmem:[#allocation2 + $0x70] sm:$0xff]
          %v658 = vld [vmem:[#allocation2 + $0x78] sm:$0xff]
          %v659 = vadd.f32 %v643, %v644
          %v660 = vadd.f32 %v659, %v645
          %v661 = vadd.f32 %v660, %v646
          %v662 = vadd.f32 %v661, %v647
          %v663 = vadd.f32 %v662, %v648
          %v664 = vadd.f32 %v663, %v649
          %v665 = vadd.f32 %v664, %v650
          %v666 = vadd.f32 %v665, %v651
          %v667 = vadd.f32 %v666, %v652
          %v668 = vadd.f32 %v667, %v653
          %v669 = vadd.f32 %v668, %v654
          %v670 = vadd.f32 %v669, %v655
          %v671 = vadd.f32 %v670, %v656
          %v672 = vadd.f32 %v671, %v657
          %v673 = vadd.f32 %v672, %v658
          %v674 = vrot.slane %v673, 4
          %v675 = vadd.f32 %v673, %v674
          %v676 = vrot.slane %v675, 2
          %v677 = vadd.f32 %v675, %v676
          %v678 = vrot.slane %v677, 1
          %v679 = vadd.f32 %v677, %v678
          %v680 = vmul.f32 %v643, %v643
          %v681 = vmul.f32 %v644, %v644
          %v682 = vmul.f32 %v645, %v645
          %v683 = vmul.f32 %v646, %v646
          %v684 = vmul.f32 %v647, %v647
          %v685 = vmul.f32 %v648, %v648
          %v686 = vmul.f32 %v649, %v649
          %v687 = vmul.f32 %v650, %v650
          %v688 = vmul.f32 %v651, %v651
          %v689 = vmul.f32 %v652, %v652
          %v690 = vmul.f32 %v653, %v653
          %v691 = vmul.f32 %v654, %v654
          %v692 = vmul.f32 %v655, %v655
          %v693 = vmul.f32 %v656, %v656
          %v694 = vmul.f32 %v657, %v657
          %v695 = vmul.f32 %v658, %v658
          %v696 = vadd.f32 %v680, %v681
          %v697 = vadd.f32 %v696, %v682
          %v698 = vadd.f32 %v697, %v683
          %v699 = vadd.f32 %v698, %v684
          %v700 = vadd.f32 %v699, %v685
          %v701 = vadd.f32 %v700, %v686
          %v702 = vadd.f32 %v701, %v687
          %v703 = vadd.f32 %v702, %v688
          %v704 = vadd.f32 %v703, %v689
          %v705 = vadd.f32 %v704, %v690
          %v706 = vadd.f32 %v705, %v691
          %v707 = vadd.f32 %v706, %v692
          %v708 = vadd.f32 %v707, %v693
          %v709 = vadd.f32 %v708, %v694
          %v710 = vadd.f32 %v709, %v695
          %v711 = vrot.slane %v710, 4
          %v712 = vadd.f32 %v710, %v711
          %v713 = vrot.slane %v712, 2
          %v714 = vadd.f32 %v712, %v713
          %v715 = vrot.slane %v714, 1
          %v716 = vadd.f32 %v714, %v715
          %vm717 = vcmask 1040384
          %v718 = vsel %vm717, %v679, %v716
          %vm719 = vcmask 1041408
          %v720 = vsel %vm719, %v718, 0.0
          %721 = vst [vmem:[%s303] sm:$0xff] %v720
          %v722 = vld [vmem:[%s332] sm:$0x1]
          %v724 = vlaneseq
          %v725 = vshrl.u32 %v724, 7
          %v726 = vsub.s32 0, %v725
          %v727 = vrot.slane %v722, %v726
          %v729 = vadd.f32 %v643, %v727
          %v730 = vadd.f32 %v644, %v727
          %v731 = vadd.f32 %v645, %v727
          %v732 = vadd.f32 %v646, %v727
          %v733 = vadd.f32 %v647, %v727
          %v734 = vadd.f32 %v648, %v727
          %v735 = vadd.f32 %v649, %v727
          %v736 = vadd.f32 %v650, %v727
          %v737 = vadd.f32 %v651, %v727
          %v738 = vadd.f32 %v652, %v727
          %v739 = vadd.f32 %v653, %v727
          %v740 = vadd.f32 %v654, %v727
          %v741 = vadd.f32 %v655, %v727
          %v742 = vadd.f32 %v656, %v727
          %v743 = vadd.f32 %v657, %v727
          %v744 = vadd.f32 %v658, %v727
          %v745 = vtanh.pop %v729
          %v746 = vtanh.pop %v730
          %v747 = vtanh.pop %v731
          %v748 = vtanh.pop %v732
          %v749 = vtanh.pop %v733
          %v750 = vtanh.pop %v734
          %v751 = vtanh.pop %v735
          %v752 = vtanh.pop %v736
          %v753 = vtanh.pop %v737
          %v754 = vtanh.pop %v738
          %v755 = vtanh.pop %v739
          %v756 = vtanh.pop %v740
          %v757 = vtanh.pop %v741
          %v758 = vtanh.pop %v742
          %v759 = vtanh.pop %v743
          %v760 = vtanh.pop %v744
          %761 = vst [vmem:[%s344] sm:$0xff] %v745
          %762 = vst [vmem:[%s344 + $0x8] sm:$0xff] %v746
          %763 = vst [vmem:[%s344 + $0x10] sm:$0xff] %v747
          %764 = vst [vmem:[%s344 + $0x18] sm:$0xff] %v748
          %765 = vst [vmem:[%s344 + $0x20] sm:$0xff] %v749
          %766 = vst [vmem:[%s344 + $0x28] sm:$0xff] %v750
          %767 = vst [vmem:[%s344 + $0x30] sm:$0xff] %v751
          %768 = vst [vmem:[%s344 + $0x38] sm:$0xff] %v752
          %769 = vst [vmem:[%s344 + $0x40] sm:$0xff] %v753
          %770 = vst [vmem:[%s344 + $0x48] sm:$0xff] %v754
          %771 = vst [vmem:[%s344 + $0x50] sm:$0xff] %v755
          %772 = vst [vmem:[%s344 + $0x58] sm:$0xff] %v756
          %773 = vst [vmem:[%s344 + $0x60] sm:$0xff] %v757
          %774 = vst [vmem:[%s344 + $0x68] sm:$0xff] %v758
          %775 = vst [vmem:[%s344 + $0x70] sm:$0xff] %v759
          %776 = vst [vmem:[%s344 + $0x78] sm:$0xff] %v760
        $region40: #{attgan_forward.21} parent=31 // pred_fallthru
          _
        %s777 = smul.u32 16, %s26
        %p778 = scmp.lt.s32.totalorder %s25, 3
        %s779 = scalar_select %p778, %s25, 3
        %p780 = scmp.lt.s32.totalorder %s777, 15
        %s781 = scalar_select %p780, %s777, 15
        %p782 = scmp.lt.s32.totalorder %s27, 0
        %s783 = scalar_select %p782, %s27, 0
        %s784 = sadd.s32 %s783, %s781
        %s785 = smul.addr %s779, 16
        %s786 = sadd.s32 %s784, %s785
        %s787 = smul.addr %s786, 8
        %s788 = scalar_lea.vmem %s3, %s787
        %s789 = sand.u32 %s173, 1
        %s790 = scalar_lea.sflag [#allocation4], %s789
        %s791 = sand.u32 %s173, 1
        %s792 = smul.addr %s791, 8
        %s793 = scalar_lea.vmem [#allocation3], %s792
        // Predicated region
        $region41: #{attgan_forward.21} parent=31 // pred_check
          %p794 = pneg %p153
        $region42: #{attgan_forward.21} parent=31 // pred_check_branch
          %796 = sbr.rel (%p794) target = $region44
        $region43: #{attgan_forward.21} parent=31 // pred_region
          %s797 = smul.u32 16, %s26
        $region44: #{attgan_forward.21} parent=31 // pred_fallthru
          _
        // Predicated region
        $region45: #{attgan_forward.21} parent=31 // pred_check
          %p798 = pneg %p183
        $region46: #{attgan_forward.21} parent=31 // pred_check_branch
          %800 = sbr.rel (%p798) target = $region48
        $region47: #{attgan_forward.21} parent=31 // pred_region
          %s802 = ssub.s32 128, 128
          %803 = vsyncadd %s790, %s802
          %s804 = sadd.s32 %s27, %s26
          %s805 = sadd.s32 %s804, %s25
          %s806 = smul.addr %s805, 128
          %s807 = scalar_lea.hbm %s4, %s806
          %s809 = sshll.u32 %s793, 4
          %s810 = int_to_ptr.vmem [resolvable:$true] %s809
          %812 = dma.vmem_to_hbm [thread:$0]  %s810, 128, %s807, %s790
        $region48: #{attgan_forward.21} parent=31 // pred_fallthru
          _
      $region32: #{attgan_forward.21} parent=5 // pred_fallthru
        _
      %p813 = scmp.le.s32.totalorder 2, %s14
      // Predicated region
      $region49: #{attgan_forward.21} parent=5 // pred_check
        %p814 = pneg %p813
      $region50: #{attgan_forward.21} parent=5 // pred_check_branch
        %816 = sbr.rel (%p814) target = $region52
      $region51: #{attgan_forward.21} parent=5 // pred_region
        %s817 = ssub.s32 %s14, 2
        // Predicated region
        $region53: #{attgan_forward.21} parent=51 // pred_check
          %p818 = pneg %p159
        $region54: #{attgan_forward.21} parent=51 // pred_check_branch
          %820 = sbr.rel (%p818) target = $region56
        $region55: #{attgan_forward.21} parent=51 // pred_region
          %s821 = smul.u32 16, %s30
          %p822 = scmp.lt.s32.totalorder %s29, 3
          %s823 = scalar_select %p822, %s29, 3
          %p824 = scmp.lt.s32.totalorder %s821, 15
          %s825 = scalar_select %p824, %s821, 15
          %p826 = scmp.lt.s32.totalorder %s31, 0
          %s827 = scalar_select %p826, %s31, 0
          %s828 = sadd.s32 %s827, %s825
          %s829 = smul.addr %s823, 16
          %s830 = sadd.s32 %s828, %s829
          %s831 = smul.addr %s830, 8
          %s832 = scalar_lea.vmem %s3, %s831
        $region56: #{attgan_forward.21} parent=51 // pred_fallthru
          _
        // Predicated region
        $region57: #{attgan_forward.21} parent=51 // pred_check
          %p833 = pneg %p189
        $region58: #{attgan_forward.21} parent=51 // pred_check_branch
          %835 = sbr.rel (%p833) target = $region60
        $region59: #{attgan_forward.21} parent=51 // pred_region
          %s836 = sand.u32 %s174, 1
          %s837 = scalar_lea.sflag [#allocation4], %s836
          %s838 = sand.u32 %s174, 1
          %s839 = smul.addr %s838, 8
          %s840 = scalar_lea.vmem [#allocation3], %s839
          %841 = dma.done %s837, 128
        $region60: #{attgan_forward.21} parent=51 // pred_fallthru
          _
      $region52: #{attgan_forward.21} parent=5 // pred_fallthru
        _
    $region6: #{attgan_forward.21} parent=1 // loop_footer
      %s18 = sadd.s32 1, %s14
    $region7: #{attgan_forward.21} parent=1 // loop_footer_branch
      %13 = sbr.rel target = $region3
    $region8: #{attgan_forward.21} parent=1 // loop_exit
      _
    %842 = vsyncpa [#allocation4], 1
    %s843 = scalar_lea.sflag [#allocation4], 1
    %844 = vsyncpa %s843, 1

</llo_original>
